<compile_context>
chip_gen: v6e
topology: v6e:2x2x1
jax: 0.10.0
libtpu: 0.0.40
codegen_flags: <defaults>
</compile_context>

<pallas_src>
import jax
import jax.numpy as jnp
from jax.experimental import pallas as pl
from jax.experimental.pallas import tpu as pltpu

# ---------------- static config (mirrors `opt` used in AEN_SIMPLE.__init__) -------------
B = 4              # batch size
GRID_BLOCKS = 2    # grid steps: 2 keeps both v7x TCs busy; v5e/v6e pay ~0.35us extra/step
BB = B // GRID_BLOCKS   # examples fused per grid step (stacked along matmul rows)
LC = 16            # context sequence length
LT = 8             # target sequence length
VOCAB = 64         # synthetic vocab for the bert stand-in embedding
BERT_DIM = 32      # opt.bert_dim
HIDDEN = 32        # opt.hidden_dim
N_HEAD = 2         # opt.mha_heads
HD = BERT_DIM // N_HEAD   # Attention per-head hidden dim (default: embed_dim // n_head)
LSTM_HID = 32      # opt.lstm_hid   (opt.lstm_layer = 1, opt.lstm_bidir = False)
POL = 3            # opt.polarities_dim
OUT_PAD = 128      # lane-dense classifier width (real logits live in [:, :POL])

assert B % GRID_BLOCKS == 0


def aen_kernel(ctx_ref, tgt_ref,
               wk_ref, bk_ref, wq_ref, bq_ref,
               wkblk_ref, wqblk_ref,
               projw_ref, projb_ref,
               ffw1_ref, ffb1_ref, ffw2_ref, ffb2_ref,
               wih_ref, whh_ref, lstmb_ref,
               dw_ref, db_ref,
               out_ref,
               attn_scr):
    # batch-fused activations: BB examples stacked along the row (sublane) axis
    ctx = ctx_ref[...].reshape(BB * LC, BERT_DIM)   # (BB*LC, BERT_DIM)
    tgt = tgt_ref[...].reshape(BB * LT, BERT_DIM)   # (BB*LT, BERT_DIM)

    # ---- Attention(k=context, q=target), score_function='mlp' ----
    kx = jnp.dot(ctx, wk_ref[...], preferred_element_type=jnp.float32) + bk_ref[...]  # (BB*LC, N_HEAD*HD)
    qx = jnp.dot(tgt, wq_ref[...], preferred_element_type=jnp.float32) + bq_ref[...]  # (BB*LT, N_HEAD*HD)

    # all heads' MLP scores with two block-diagonal matmuls (no per-head matvecs)
    ksc = jnp.dot(kx, wkblk_ref[...], preferred_element_type=jnp.float32)   # (BB*LC, N_HEAD)
    qsc = jnp.dot(qx, wqblk_ref[...], preferred_element_type=jnp.float32)   # (BB*LT, N_HEAD)
    ksc_t = ksc.T                                                           # (N_HEAD, BB*LC), one small transpose

    for b in range(BB):                 # static, unrolled
        for h in range(N_HEAD):         # static, unrolled
            qcol = qsc[b * LT:(b + 1) * LT, h:h + 1]              # (LT, 1)
            krow = ksc_t[h:h + 1, b * LC:(b + 1) * LC]            # (1, LC)
            # scores are tanh-bounded to [-1, 1] -> exp cannot overflow; skip max-subtract
            e = jnp.exp(jnp.tanh(qcol + krow))                    # (LT, LC)
            attn = e * pl.reciprocal(jnp.sum(e, axis=-1, keepdims=True), approx=True)
            kx_bh = kx[b * LC:(b + 1) * LC, h * HD:(h + 1) * HD]  # (LC, HD)
            # write each head's context straight into its lane slice (no concatenate)
            attn_scr[b * LT:(b + 1) * LT, h * HD:(h + 1) * HD] = jnp.dot(
                attn, kx_bh, preferred_element_type=jnp.float32)  # (LT, HD)

    attn_out = attn_scr[...]                                                     # (BB*LT, N_HEAD*HD)
    ht = jnp.dot(attn_out, projw_ref[...], preferred_element_type=jnp.float32) + projb_ref[...]  # (BB*LT, HIDDEN)
    # attention output dropout: identity (inference)

    # ---- PositionwiseFeedForward: two 1x1 Conv1d == position-wise linears, ReLU, no residual ----
    f1 = jnp.maximum(
        jnp.dot(ht, ffw1_ref[...], preferred_element_type=jnp.float32) + ffb1_ref[...], 0.0)
    ffn = jnp.dot(f1, ffw2_ref[...], preferred_element_type=jnp.float32) + ffb2_ref[...]          # (BB*LT, HIDDEN)
    # ffn dropout: identity (inference)

    # ---- single-layer unidirectional LSTM; input-to-hidden matmul hoisted out of the loop ----
    xg = jnp.dot(ffn, wih_ref[...], preferred_element_type=jnp.float32) + lstmb_ref[...]  # (BB*LT, 4*LSTM_HID)
    xg = xg.reshape(BB, LT, 4 * LSTM_HID)

    h_st = jnp.zeros((BB, LSTM_HID), jnp.float32)
    c_st = jnp.zeros((BB, LSTM_HID), jnp.float32)
    for t in range(LT):                 # static, unrolled recurrence (only h @ W_hh in the chain)
        gates = xg[:, t, :] + jnp.dot(h_st, whh_ref[...], preferred_element_type=jnp.float32)  # (BB, 4*LSTM_HID)
        sig = jax.nn.sigmoid(gates)     # whole-row nonlinearities, then lane slices
        tg = jnp.tanh(gates)
        i_g = sig[:, 0 * LSTM_HID:1 * LSTM_HID]
        f_g = sig[:, 1 * LSTM_HID:2 * LSTM_HID]
        g_g = tg[:, 2 * LSTM_HID:3 * LSTM_HID]
        o_g = sig[:, 3 * LSTM_HID:4 * LSTM_HID]
        c_st = f_g * c_st + i_g * g_g
        h_st = o_g * jnp.tanh(c_st)

    # ---- lane-dense classifier on last LSTM output (weights zero-padded to 128 lanes) ----
    out = jnp.dot(h_st, dw_ref[...], preferred_element_type=jnp.float32) + db_ref[...]   # (BB, OUT_PAD)
    out_ref[...] = out.reshape(1, BB, OUT_PAD)


def aen_simple_forward(context_tok, target_tok, p):
    # lengths (mirrors reference; with all-nonzero synthetic tokens SqueezeEmbedding is identity)
    context_len = jnp.sum(context_tok != 0, axis=-1)
    target_len = jnp.sum(target_tok != 0, axis=-1).astype(jnp.float32)  # cast, unused downstream
    del context_len, target_len

    # TODO(synk): self.bert is an externally injected module; modeled as a deterministic
    # embedding-table lookup (glue, not the hot path).
    ctx = jnp.take(p["emb"], context_tok, axis=0)   # (B, LC, BERT_DIM)
    tgt = jnp.take(p["emb"], target_tok, axis=0)    # (B, LT, BERT_DIM)

    # fold the mlp-score vector into per-side block-diagonal matrices:
    # column h holds w_kpart / w_qpart in rows h*HD:(h+1)*HD
    wk_blk = jnp.zeros((N_HEAD * HD, N_HEAD), jnp.float32)
    wq_blk = jnp.zeros((N_HEAD * HD, N_HEAD), jnp.float32)
    for h in range(N_HEAD):
        wk_blk = wk_blk.at[h * HD:(h + 1) * HD, h].set(p["attw"][:HD, 0])
        wq_blk = wq_blk.at[h * HD:(h + 1) * HD, h].set(p["attw"][HD:, 0])

    # lane-dense classifier weights (zero-padded to 128 output lanes)
    dw_pad = jnp.zeros((LSTM_HID, OUT_PAD), jnp.float32).at[:, :POL].set(p["dw"])
    db_pad = jnp.zeros((1, OUT_PAD), jnp.float32).at[:, :POL].set(p["db"])

    weights = [p["wk"], p["bk"], p["wq"], p["bq"], wk_blk, wq_blk,
               p["projw"], p["projb"],
               p["ffw1"], p["ffb1"], p["ffw2"], p["ffb2"],
               p["wih"], p["whh"], p["lstmb"],
               dw_pad, db_pad]

    def full_spec(arr):
        nd = arr.ndim
        return pl.BlockSpec(arr.shape, lambda i, nd=nd: (0,) * nd)

    in_specs = (
        [pl.BlockSpec((BB, LC, BERT_DIM), lambda i: (i, 0, 0)),
         pl.BlockSpec((BB, LT, BERT_DIM), lambda i: (i, 0, 0))]
        + [full_spec(w) for w in weights]
    )

    out = pl.pallas_call(
        aen_kernel,
        out_shape=jax.ShapeDtypeStruct((GRID_BLOCKS, BB, OUT_PAD), jnp.float32),
        grid=(GRID_BLOCKS,),
        in_specs=in_specs,
        out_specs=pl.BlockSpec((1, BB, OUT_PAD), lambda i: (i, 0, 0)),
        scratch_shapes=[pltpu.VMEM((BB * LT, N_HEAD * HD), jnp.float32)],
        compiler_params=pltpu.CompilerParams(dimension_semantics=("parallel",)),
    )(ctx, tgt, *weights)

    return out.reshape(B, OUT_PAD)[:, :POL]              # (B, POL)


def make_params(key):
    ks = jax.random.split(key, 20)
    s = 0.1
    n = lambda k, shape: (jax.random.normal(k, shape, jnp.float32) * s)
    return {
        "emb":   n(ks[0], (VOCAB, BERT_DIM)),
        # Attention (w_k, w_q: Linear(BERT_DIM, N_HEAD*HD); mlp score weight; proj: Linear -> HIDDEN)
        "wk":    n(ks[1], (BERT_DIM, N_HEAD * HD)),
        "bk":    n(ks[2], (1, N_HEAD * HD)),
        "wq":    n(ks[3], (BERT_DIM, N_HEAD * HD)),
        "bq":    n(ks[4], (1, N_HEAD * HD)),
        "attw":  n(ks[5], (2 * HD, 1)),
        "projw": n(ks[6], (N_HEAD * HD, HIDDEN)),
        "projb": n(ks[7], (1, HIDDEN)),
        # PositionwiseFeedForward (Conv1d k=1 weights stored as (in, out))
        "ffw1":  n(ks[8], (HIDDEN, HIDDEN)),
        "ffb1":  n(ks[9], (1, HIDDEN)),
        "ffw2":  n(ks[10], (HIDDEN, HIDDEN)),
        "ffb2":  n(ks[11], (1, HIDDEN)),
        # LSTM (single layer, unidirectional; W_ih/W_hh stored transposed, biases fused, gate order i,f,g,o)
        "wih":   n(ks[12], (HIDDEN, 4 * LSTM_HID)),
        "whh":   n(ks[13], (LSTM_HID, 4 * LSTM_HID)),
        "lstmb": n(ks[14], (1, 4 * LSTM_HID)),
        # dense classifier
        "dw":    n(ks[15], (LSTM_HID, POL)),
        "db":    n(ks[16], (1, POL)),
    }


if __name__ == "__main__":
    key = jax.random.PRNGKey(0)
    k_ctx, k_tgt, k_par = jax.random.split(key, 3)

    # tokens drawn from [1, VOCAB) so every position is non-padding (SqueezeEmbedding == identity)
    context_tok = jax.random.randint(k_ctx, (B, LC), 1, VOCAB, dtype=jnp.int32)
    target_tok = jax.random.randint(k_tgt, (B, LT), 1, VOCAB, dtype=jnp.int32)
    params = make_params(k_par)

    out = aen_simple_forward(context_tok, target_tok, params)
    out = jax.block_until_ready(out)

    assert out.shape == (B, POL), out.shape
    assert bool(jnp.all(jnp.isfinite(out)))
    print("KERNEL_OK")
</pallas_src>

<mosaic_0001>
module attributes {stable_mosaic.version = 11 : i64} {
  func.func @aen_kernel(%arg0: i32, %arg1: memref<2x16x32xf32, #tpu.memory_space<vmem>>, %arg2: memref<2x8x32xf32, #tpu.memory_space<vmem>>, %arg3: memref<32x32xf32, #tpu.memory_space<vmem>>, %arg4: memref<1x32xf32, #tpu.memory_space<vmem>>, %arg5: memref<32x32xf32, #tpu.memory_space<vmem>>, %arg6: memref<1x32xf32, #tpu.memory_space<vmem>>, %arg7: memref<32x2xf32, #tpu.memory_space<vmem>>, %arg8: memref<32x2xf32, #tpu.memory_space<vmem>>, %arg9: memref<32x32xf32, #tpu.memory_space<vmem>>, %arg10: memref<1x32xf32, #tpu.memory_space<vmem>>, %arg11: memref<32x32xf32, #tpu.memory_space<vmem>>, %arg12: memref<1x32xf32, #tpu.memory_space<vmem>>, %arg13: memref<32x32xf32, #tpu.memory_space<vmem>>, %arg14: memref<1x32xf32, #tpu.memory_space<vmem>>, %arg15: memref<32x128xf32, #tpu.memory_space<vmem>>, %arg16: memref<32x128xf32, #tpu.memory_space<vmem>>, %arg17: memref<1x128xf32, #tpu.memory_space<vmem>>, %arg18: memref<32x128xf32, #tpu.memory_space<vmem>>, %arg19: memref<1x128xf32, #tpu.memory_space<vmem>>, %arg20: memref<1x2x128xf32, #tpu.memory_space<vmem>>, %arg21: memref<16x32xf32, #tpu.memory_space<vmem>>) attributes {dimension_semantics = [#tpu.dimension_semantics<parallel>], iteration_bounds = array<i64: 2>, scalar_prefetch = 0 : i64, scratch_operands = 1 : i64, tpu.core_type = #tpu.core_type<tc>, window_params = [{transform_indices = @transform_0, window_bounds = array<i64: 2, 16, 32>}, {transform_indices = @transform_1, window_bounds = array<i64: 2, 8, 32>}, {pipeline_mode = #tpu.pipeline_mode<synchronous>, transform_indices = @transform_2, window_bounds = array<i64: 32, 32>}, {pipeline_mode = #tpu.pipeline_mode<synchronous>, transform_indices = @transform_3, window_bounds = array<i64: 1, 32>}, {pipeline_mode = #tpu.pipeline_mode<synchronous>, transform_indices = @transform_4, window_bounds = array<i64: 32, 32>}, {pipeline_mode = #tpu.pipeline_mode<synchronous>, transform_indices = @transform_5, window_bounds = array<i64: 1, 32>}, {pipeline_mode = #tpu.pipeline_mode<synchronous>, transform_indices = @transform_6, window_bounds = array<i64: 32, 2>}, {pipeline_mode = #tpu.pipeline_mode<synchronous>, transform_indices = @transform_7, window_bounds = array<i64: 32, 2>}, {pipeline_mode = #tpu.pipeline_mode<synchronous>, transform_indices = @transform_8, window_bounds = array<i64: 32, 32>}, {pipeline_mode = #tpu.pipeline_mode<synchronous>, transform_indices = @transform_9, window_bounds = array<i64: 1, 32>}, {pipeline_mode = #tpu.pipeline_mode<synchronous>, transform_indices = @transform_10, window_bounds = array<i64: 32, 32>}, {pipeline_mode = #tpu.pipeline_mode<synchronous>, transform_indices = @transform_11, window_bounds = array<i64: 1, 32>}, {pipeline_mode = #tpu.pipeline_mode<synchronous>, transform_indices = @transform_12, window_bounds = array<i64: 32, 32>}, {pipeline_mode = #tpu.pipeline_mode<synchronous>, transform_indices = @transform_13, window_bounds = array<i64: 1, 32>}, {pipeline_mode = #tpu.pipeline_mode<synchronous>, transform_indices = @transform_14, window_bounds = array<i64: 32, 128>}, {pipeline_mode = #tpu.pipeline_mode<synchronous>, transform_indices = @transform_15, window_bounds = array<i64: 32, 128>}, {pipeline_mode = #tpu.pipeline_mode<synchronous>, transform_indices = @transform_16, window_bounds = array<i64: 1, 128>}, {pipeline_mode = #tpu.pipeline_mode<synchronous>, transform_indices = @transform_17, window_bounds = array<i64: 32, 128>}, {pipeline_mode = #tpu.pipeline_mode<synchronous>, transform_indices = @transform_18, window_bounds = array<i64: 1, 128>}, {transform_indices = @transform_19, window_bounds = array<i64: 1, 2, 128>}]} {
    %c0 = arith.constant 0 : index
    %c0_0 = arith.constant 0 : index
    %c0_1 = arith.constant 0 : index
    %0 = vector.load %arg1[%c0, %c0_0, %c0_1] : memref<2x16x32xf32, #tpu.memory_space<vmem>>, vector<2x16x32xf32>
    %1 = vector.shape_cast %0 : vector<2x16x32xf32> to vector<32x32xf32>
    %c0_2 = arith.constant 0 : index
    %c0_3 = arith.constant 0 : index
    %c0_4 = arith.constant 0 : index
    %2 = vector.load %arg2[%c0_2, %c0_3, %c0_4] : memref<2x8x32xf32, #tpu.memory_space<vmem>>, vector<2x8x32xf32>
    %3 = vector.shape_cast %2 : vector<2x8x32xf32> to vector<16x32xf32>
    %c0_5 = arith.constant 0 : index
    %c0_6 = arith.constant 0 : index
    %4 = vector.load %arg3[%c0_5, %c0_6] : memref<32x32xf32, #tpu.memory_space<vmem>>, vector<32x32xf32>
    %cst = arith.constant dense<0.000000e+00> : vector<32x32xf32>
    %5 = tpu.matmul %1, %4, %cst {dimension_numbers = #tpu.dot_dimension_numbers<[1], [0], [0], [1], [0, 0, 1, 1], [], []>} : vector<32x32xf32>, vector<32x32xf32>, vector<32x32xf32> -> vector<32x32xf32>
    %c0_7 = arith.constant 0 : index
    %c0_8 = arith.constant 0 : index
    %6 = vector.load %arg4[%c0_7, %c0_8] : memref<1x32xf32, #tpu.memory_space<vmem>>, vector<1x32xf32>
    %7 = vector.broadcast %6 : vector<1x32xf32> to vector<32x32xf32>
    %8 = arith.addf %5, %7 : vector<32x32xf32>
    %c0_9 = arith.constant 0 : index
    %c0_10 = arith.constant 0 : index
    %9 = vector.load %arg5[%c0_9, %c0_10] : memref<32x32xf32, #tpu.memory_space<vmem>>, vector<32x32xf32>
    %cst_11 = arith.constant dense<0.000000e+00> : vector<16x32xf32>
    %10 = tpu.matmul %3, %9, %cst_11 {dimension_numbers = #tpu.dot_dimension_numbers<[1], [0], [0], [1], [0, 0, 1, 1], [], []>} : vector<16x32xf32>, vector<32x32xf32>, vector<16x32xf32> -> vector<16x32xf32>
    %c0_12 = arith.constant 0 : index
    %c0_13 = arith.constant 0 : index
    %11 = vector.load %arg6[%c0_12, %c0_13] : memref<1x32xf32, #tpu.memory_space<vmem>>, vector<1x32xf32>
    %12 = vector.broadcast %11 : vector<1x32xf32> to vector<16x32xf32>
    %13 = arith.addf %10, %12 : vector<16x32xf32>
    %c0_14 = arith.constant 0 : index
    %c0_15 = arith.constant 0 : index
    %14 = vector.load %arg7[%c0_14, %c0_15] : memref<32x2xf32, #tpu.memory_space<vmem>>, vector<32x2xf32>
    %cst_16 = arith.constant dense<0.000000e+00> : vector<32x2xf32>
    %15 = tpu.matmul %8, %14, %cst_16 {dimension_numbers = #tpu.dot_dimension_numbers<[1], [0], [0], [1], [0, 0, 1, 1], [], []>} : vector<32x32xf32>, vector<32x2xf32>, vector<32x2xf32> -> vector<32x2xf32>
    %c0_17 = arith.constant 0 : index
    %c0_18 = arith.constant 0 : index
    %16 = vector.load %arg8[%c0_17, %c0_18] : memref<32x2xf32, #tpu.memory_space<vmem>>, vector<32x2xf32>
    %cst_19 = arith.constant dense<0.000000e+00> : vector<16x2xf32>
    %17 = tpu.matmul %13, %16, %cst_19 {dimension_numbers = #tpu.dot_dimension_numbers<[1], [0], [0], [1], [0, 0, 1, 1], [], []>} : vector<16x32xf32>, vector<32x2xf32>, vector<16x2xf32> -> vector<16x2xf32>
    %18 = tpu.transpose %15, [1, 0] : vector<32x2xf32> -> vector<2x32xf32>
    %19 = vector.extract_strided_slice %17 {offsets = [0, 0], sizes = [8, 1], strides = [1, 1]} : vector<16x2xf32> to vector<8x1xf32>
    %20 = vector.extract_strided_slice %18 {offsets = [0, 0], sizes = [1, 16], strides = [1, 1]} : vector<2x32xf32> to vector<1x16xf32>
    %21 = vector.broadcast %19 : vector<8x1xf32> to vector<8x16xf32>
    %22 = vector.broadcast %20 : vector<1x16xf32> to vector<8x16xf32>
    %23 = arith.addf %21, %22 : vector<8x16xf32>
    %24 = math.tanh %23 : vector<8x16xf32>
    %25 = math.exp %24 : vector<8x16xf32>
    %cst_20 = arith.constant dense<0.000000e+00> : vector<8xf32>
    %26 = vector.multi_reduction <add>, %25, %cst_20 [1] : vector<8x16xf32> to vector<8xf32>
    %27 = vector.shape_cast %26 : vector<8xf32> to vector<8x1xf32>
    %28 = tpu.reciprocal %27 {approx = true} : vector<8x1xf32> -> vector<8x1xf32>
    %29 = vector.broadcast %28 : vector<8x1xf32> to vector<8x16xf32>
    %30 = arith.mulf %25, %29 : vector<8x16xf32>
    %31 = vector.extract_strided_slice %8 {offsets = [0, 0], sizes = [16, 16], strides = [1, 1]} : vector<32x32xf32> to vector<16x16xf32>
    %cst_21 = arith.constant dense<0.000000e+00> : vector<8x16xf32>
    %32 = tpu.matmul %30, %31, %cst_21 {dimension_numbers = #tpu.dot_dimension_numbers<[1], [0], [0], [1], [0, 0, 1, 1], [], []>} : vector<8x16xf32>, vector<16x16xf32>, vector<8x16xf32> -> vector<8x16xf32>
    %c0_22 = arith.constant 0 : index
    %c0_23 = arith.constant 0 : index
    %33 = vector.load %arg21[%c0_22, %c0_23] : memref<16x32xf32, #tpu.memory_space<vmem>>, vector<8x16xf32>
    tpu.vector_store %arg21[%c0_22, %c0_23], %32 {strides = array<i32>} : memref<16x32xf32, #tpu.memory_space<vmem>>, vector<8x16xf32>,
    %34 = vector.extract_strided_slice %17 {offsets = [0, 1], sizes = [8, 1], strides = [1, 1]} : vector<16x2xf32> to vector<8x1xf32>
    %35 = vector.extract_strided_slice %18 {offsets = [1, 0], sizes = [1, 16], strides = [1, 1]} : vector<2x32xf32> to vector<1x16xf32>
    %36 = vector.broadcast %34 : vector<8x1xf32> to vector<8x16xf32>
    %37 = vector.broadcast %35 : vector<1x16xf32> to vector<8x16xf32>
    %38 = arith.addf %36, %37 : vector<8x16xf32>
    %39 = math.tanh %38 : vector<8x16xf32>
    %40 = math.exp %39 : vector<8x16xf32>
    %cst_24 = arith.constant dense<0.000000e+00> : vector<8xf32>
    %41 = vector.multi_reduction <add>, %40, %cst_24 [1] : vector<8x16xf32> to vector<8xf32>
    %42 = vector.shape_cast %41 : vector<8xf32> to vector<8x1xf32>
    %43 = tpu.reciprocal %42 {approx = true} : vector<8x1xf32> -> vector<8x1xf32>
    %44 = vector.broadcast %43 : vector<8x1xf32> to vector<8x16xf32>
    %45 = arith.mulf %40, %44 : vector<8x16xf32>
    %46 = vector.extract_strided_slice %8 {offsets = [0, 16], sizes = [16, 16], strides = [1, 1]} : vector<32x32xf32> to vector<16x16xf32>
    %cst_25 = arith.constant dense<0.000000e+00> : vector<8x16xf32>
    %47 = tpu.matmul %45, %46, %cst_25 {dimension_numbers = #tpu.dot_dimension_numbers<[1], [0], [0], [1], [0, 0, 1, 1], [], []>} : vector<8x16xf32>, vector<16x16xf32>, vector<8x16xf32> -> vector<8x16xf32>
    %c0_26 = arith.constant 0 : index
    %c16 = arith.constant 16 : index
    %48 = vector.load %arg21[%c0_26, %c16] : memref<16x32xf32, #tpu.memory_space<vmem>>, vector<8x16xf32>
    tpu.vector_store %arg21[%c0_26, %c16], %47 {strides = array<i32>} : memref<16x32xf32, #tpu.memory_space<vmem>>, vector<8x16xf32>,
    %49 = vector.extract_strided_slice %17 {offsets = [8, 0], sizes = [8, 1], strides = [1, 1]} : vector<16x2xf32> to vector<8x1xf32>
    %50 = vector.extract_strided_slice %18 {offsets = [0, 16], sizes = [1, 16], strides = [1, 1]} : vector<2x32xf32> to vector<1x16xf32>
    %51 = vector.broadcast %49 : vector<8x1xf32> to vector<8x16xf32>
    %52 = vector.broadcast %50 : vector<1x16xf32> to vector<8x16xf32>
    %53 = arith.addf %51, %52 : vector<8x16xf32>
    %54 = math.tanh %53 : vector<8x16xf32>
    %55 = math.exp %54 : vector<8x16xf32>
    %cst_27 = arith.constant dense<0.000000e+00> : vector<8xf32>
    %56 = vector.multi_reduction <add>, %55, %cst_27 [1] : vector<8x16xf32> to vector<8xf32>
    %57 = vector.shape_cast %56 : vector<8xf32> to vector<8x1xf32>
    %58 = tpu.reciprocal %57 {approx = true} : vector<8x1xf32> -> vector<8x1xf32>
    %59 = vector.broadcast %58 : vector<8x1xf32> to vector<8x16xf32>
    %60 = arith.mulf %55, %59 : vector<8x16xf32>
    %61 = vector.extract_strided_slice %8 {offsets = [16, 0], sizes = [16, 16], strides = [1, 1]} : vector<32x32xf32> to vector<16x16xf32>
    %cst_28 = arith.constant dense<0.000000e+00> : vector<8x16xf32>
    %62 = tpu.matmul %60, %61, %cst_28 {dimension_numbers = #tpu.dot_dimension_numbers<[1], [0], [0], [1], [0, 0, 1, 1], [], []>} : vector<8x16xf32>, vector<16x16xf32>, vector<8x16xf32> -> vector<8x16xf32>
    %c8 = arith.constant 8 : index
    %c0_29 = arith.constant 0 : index
    %63 = vector.load %arg21[%c8, %c0_29] : memref<16x32xf32, #tpu.memory_space<vmem>>, vector<8x16xf32>
    tpu.vector_store %arg21[%c8, %c0_29], %62 {strides = array<i32>} : memref<16x32xf32, #tpu.memory_space<vmem>>, vector<8x16xf32>,
    %64 = vector.extract_strided_slice %17 {offsets = [8, 1], sizes = [8, 1], strides = [1, 1]} : vector<16x2xf32> to vector<8x1xf32>
    %65 = vector.extract_strided_slice %18 {offsets = [1, 16], sizes = [1, 16], strides = [1, 1]} : vector<2x32xf32> to vector<1x16xf32>
    %66 = vector.broadcast %64 : vector<8x1xf32> to vector<8x16xf32>
    %67 = vector.broadcast %65 : vector<1x16xf32> to vector<8x16xf32>
    %68 = arith.addf %66, %67 : vector<8x16xf32>
    %69 = math.tanh %68 : vector<8x16xf32>
    %70 = math.exp %69 : vector<8x16xf32>
    %cst_30 = arith.constant dense<0.000000e+00> : vector<8xf32>
    %71 = vector.multi_reduction <add>, %70, %cst_30 [1] : vector<8x16xf32> to vector<8xf32>
    %72 = vector.shape_cast %71 : vector<8xf32> to vector<8x1xf32>
    %73 = tpu.reciprocal %72 {approx = true} : vector<8x1xf32> -> vector<8x1xf32>
    %74 = vector.broadcast %73 : vector<8x1xf32> to vector<8x16xf32>
    %75 = arith.mulf %70, %74 : vector<8x16xf32>
    %76 = vector.extract_strided_slice %8 {offsets = [16, 16], sizes = [16, 16], strides = [1, 1]} : vector<32x32xf32> to vector<16x16xf32>
    %cst_31 = arith.constant dense<0.000000e+00> : vector<8x16xf32>
    %77 = tpu.matmul %75, %76, %cst_31 {dimension_numbers = #tpu.dot_dimension_numbers<[1], [0], [0], [1], [0, 0, 1, 1], [], []>} : vector<8x16xf32>, vector<16x16xf32>, vector<8x16xf32> -> vector<8x16xf32>
    %c8_32 = arith.constant 8 : index
    %c16_33 = arith.constant 16 : index
    %78 = vector.load %arg21[%c8_32, %c16_33] : memref<16x32xf32, #tpu.memory_space<vmem>>, vector<8x16xf32>
    tpu.vector_store %arg21[%c8_32, %c16_33], %77 {strides = array<i32>} : memref<16x32xf32, #tpu.memory_space<vmem>>, vector<8x16xf32>,
    %c0_34 = arith.constant 0 : index
    %c0_35 = arith.constant 0 : index
    %79 = vector.load %arg21[%c0_34, %c0_35] : memref<16x32xf32, #tpu.memory_space<vmem>>, vector<16x32xf32>
    %c0_36 = arith.constant 0 : index
    %c0_37 = arith.constant 0 : index
    %80 = vector.load %arg9[%c0_36, %c0_37] : memref<32x32xf32, #tpu.memory_space<vmem>>, vector<32x32xf32>
    %cst_38 = arith.constant dense<0.000000e+00> : vector<16x32xf32>
    %81 = tpu.matmul %79, %80, %cst_38 {dimension_numbers = #tpu.dot_dimension_numbers<[1], [0], [0], [1], [0, 0, 1, 1], [], []>} : vector<16x32xf32>, vector<32x32xf32>, vector<16x32xf32> -> vector<16x32xf32>
    %c0_39 = arith.constant 0 : index
    %c0_40 = arith.constant 0 : index
    %82 = vector.load %arg10[%c0_39, %c0_40] : memref<1x32xf32, #tpu.memory_space<vmem>>, vector<1x32xf32>
    %83 = vector.broadcast %82 : vector<1x32xf32> to vector<16x32xf32>
    %84 = arith.addf %81, %83 : vector<16x32xf32>
    %c0_41 = arith.constant 0 : index
    %c0_42 = arith.constant 0 : index
    %85 = vector.load %arg11[%c0_41, %c0_42] : memref<32x32xf32, #tpu.memory_space<vmem>>, vector<32x32xf32>
    %cst_43 = arith.constant dense<0.000000e+00> : vector<16x32xf32>
    %86 = tpu.matmul %84, %85, %cst_43 {dimension_numbers = #tpu.dot_dimension_numbers<[1], [0], [0], [1], [0, 0, 1, 1], [], []>} : vector<16x32xf32>, vector<32x32xf32>, vector<16x32xf32> -> vector<16x32xf32>
    %c0_44 = arith.constant 0 : index
    %c0_45 = arith.constant 0 : index
    %87 = vector.load %arg12[%c0_44, %c0_45] : memref<1x32xf32, #tpu.memory_space<vmem>>, vector<1x32xf32>
    %88 = vector.broadcast %87 : vector<1x32xf32> to vector<16x32xf32>
    %89 = arith.addf %86, %88 : vector<16x32xf32>
    %cst_46 = arith.constant 0.000000e+00 : f32
    %90 = vector.broadcast %cst_46 : f32 to vector<16x32xf32>
    %91 = arith.maximumf %89, %90 : vector<16x32xf32>
    %c0_47 = arith.constant 0 : index
    %c0_48 = arith.constant 0 : index
    %92 = vector.load %arg13[%c0_47, %c0_48] : memref<32x32xf32, #tpu.memory_space<vmem>>, vector<32x32xf32>
    %cst_49 = arith.constant dense<0.000000e+00> : vector<16x32xf32>
    %93 = tpu.matmul %91, %92, %cst_49 {dimension_numbers = #tpu.dot_dimension_numbers<[1], [0], [0], [1], [0, 0, 1, 1], [], []>} : vector<16x32xf32>, vector<32x32xf32>, vector<16x32xf32> -> vector<16x32xf32>
    %c0_50 = arith.constant 0 : index
    %c0_51 = arith.constant 0 : index
    %94 = vector.load %arg14[%c0_50, %c0_51] : memref<1x32xf32, #tpu.memory_space<vmem>>, vector<1x32xf32>
    %95 = vector.broadcast %94 : vector<1x32xf32> to vector<16x32xf32>
    %96 = arith.addf %93, %95 : vector<16x32xf32>
    %c0_52 = arith.constant 0 : index
    %c0_53 = arith.constant 0 : index
    %97 = vector.load %arg15[%c0_52, %c0_53] : memref<32x128xf32, #tpu.memory_space<vmem>>, vector<32x128xf32>
    %cst_54 = arith.constant dense<0.000000e+00> : vector<16x128xf32>
    %98 = tpu.matmul %96, %97, %cst_54 {dimension_numbers = #tpu.dot_dimension_numbers<[1], [0], [0], [1], [0, 0, 1, 1], [], []>} : vector<16x32xf32>, vector<32x128xf32>, vector<16x128xf32> -> vector<16x128xf32>
    %c0_55 = arith.constant 0 : index
    %c0_56 = arith.constant 0 : index
    %99 = vector.load %arg17[%c0_55, %c0_56] : memref<1x128xf32, #tpu.memory_space<vmem>>, vector<1x128xf32>
    %100 = vector.broadcast %99 : vector<1x128xf32> to vector<16x128xf32>
    %101 = arith.addf %98, %100 : vector<16x128xf32>
    %102 = vector.shape_cast %101 : vector<16x128xf32> to vector<2x8x128xf32>
    %cst_57 = arith.constant 0.000000e+00 : f32
    %103 = vector.broadcast %cst_57 : f32 to vector<2x32xf32>
    %cst_58 = arith.constant 0.000000e+00 : f32
    %104 = vector.broadcast %cst_58 : f32 to vector<2x32xf32>
    %105 = vector.extract_strided_slice %102 {offsets = [0, 0, 0], sizes = [2, 1, 128], strides = [1, 1, 1]} : vector<2x8x128xf32> to vector<2x1x128xf32>
    %106 = vector.shape_cast %105 : vector<2x1x128xf32> to vector<2x128xf32>
    %c0_59 = arith.constant 0 : index
    %c0_60 = arith.constant 0 : index
    %107 = vector.load %arg16[%c0_59, %c0_60] : memref<32x128xf32, #tpu.memory_space<vmem>>, vector<32x128xf32>
    %cst_61 = arith.constant dense<0.000000e+00> : vector<2x128xf32>
    %108 = tpu.matmul %103, %107, %cst_61 {dimension_numbers = #tpu.dot_dimension_numbers<[1], [0], [0], [1], [0, 0, 1, 1], [], []>} : vector<2x32xf32>, vector<32x128xf32>, vector<2x128xf32> -> vector<2x128xf32>
    %109 = arith.addf %106, %108 : vector<2x128xf32>
    %110 = arith.negf %109 : vector<2x128xf32>
    %111 = math.exp %110 : vector<2x128xf32>
    %cst_62 = arith.constant 1.000000e+00 : f32
    %112 = vector.broadcast %cst_62 : f32 to vector<2x128xf32>
    %113 = arith.addf %112, %111 : vector<2x128xf32>
    %114 = arith.divf %112, %113 : vector<2x128xf32>
    %115 = math.tanh %109 : vector<2x128xf32>
    %116 = vector.extract_strided_slice %114 {offsets = [0, 0], sizes = [2, 32], strides = [1, 1]} : vector<2x128xf32> to vector<2x32xf32>
    %117 = vector.extract_strided_slice %114 {offsets = [0, 32], sizes = [2, 32], strides = [1, 1]} : vector<2x128xf32> to vector<2x32xf32>
    %118 = vector.extract_strided_slice %115 {offsets = [0, 64], sizes = [2, 32], strides = [1, 1]} : vector<2x128xf32> to vector<2x32xf32>
    %119 = vector.extract_strided_slice %114 {offsets = [0, 96], sizes = [2, 32], strides = [1, 1]} : vector<2x128xf32> to vector<2x32xf32>
    %120 = arith.mulf %117, %104 : vector<2x32xf32>
    %121 = arith.mulf %116, %118 : vector<2x32xf32>
    %122 = arith.addf %120, %121 : vector<2x32xf32>
    %123 = math.tanh %122 : vector<2x32xf32>
    %124 = arith.mulf %119, %123 : vector<2x32xf32>
    %125 = vector.extract_strided_slice %102 {offsets = [0, 1, 0], sizes = [2, 1, 128], strides = [1, 1, 1]} : vector<2x8x128xf32> to vector<2x1x128xf32>
    %126 = vector.shape_cast %125 : vector<2x1x128xf32> to vector<2x128xf32>
    %c0_63 = arith.constant 0 : index
    %c0_64 = arith.constant 0 : index
    %127 = vector.load %arg16[%c0_63, %c0_64] : memref<32x128xf32, #tpu.memory_space<vmem>>, vector<32x128xf32>
    %cst_65 = arith.constant dense<0.000000e+00> : vector<2x128xf32>
    %128 = tpu.matmul %124, %127, %cst_65 {dimension_numbers = #tpu.dot_dimension_numbers<[1], [0], [0], [1], [0, 0, 1, 1], [], []>} : vector<2x32xf32>, vector<32x128xf32>, vector<2x128xf32> -> vector<2x128xf32>
    %129 = arith.addf %126, %128 : vector<2x128xf32>
    %130 = arith.negf %129 : vector<2x128xf32>
    %131 = math.exp %130 : vector<2x128xf32>
    %cst_66 = arith.constant 1.000000e+00 : f32
    %132 = vector.broadcast %cst_66 : f32 to vector<2x128xf32>
    %133 = arith.addf %132, %131 : vector<2x128xf32>
    %134 = arith.divf %132, %133 : vector<2x128xf32>
    %135 = math.tanh %129 : vector<2x128xf32>
    %136 = vector.extract_strided_slice %134 {offsets = [0, 0], sizes = [2, 32], strides = [1, 1]} : vector<2x128xf32> to vector<2x32xf32>
    %137 = vector.extract_strided_slice %134 {offsets = [0, 32], sizes = [2, 32], strides = [1, 1]} : vector<2x128xf32> to vector<2x32xf32>
    %138 = vector.extract_strided_slice %135 {offsets = [0, 64], sizes = [2, 32], strides = [1, 1]} : vector<2x128xf32> to vector<2x32xf32>
    %139 = vector.extract_strided_slice %134 {offsets = [0, 96], sizes = [2, 32], strides = [1, 1]} : vector<2x128xf32> to vector<2x32xf32>
    %140 = arith.mulf %137, %122 : vector<2x32xf32>
    %141 = arith.mulf %136, %138 : vector<2x32xf32>
    %142 = arith.addf %140, %141 : vector<2x32xf32>
    %143 = math.tanh %142 : vector<2x32xf32>
    %144 = arith.mulf %139, %143 : vector<2x32xf32>
    %145 = vector.extract_strided_slice %102 {offsets = [0, 2, 0], sizes = [2, 1, 128], strides = [1, 1, 1]} : vector<2x8x128xf32> to vector<2x1x128xf32>
    %146 = vector.shape_cast %145 : vector<2x1x128xf32> to vector<2x128xf32>
    %c0_67 = arith.constant 0 : index
    %c0_68 = arith.constant 0 : index
    %147 = vector.load %arg16[%c0_67, %c0_68] : memref<32x128xf32, #tpu.memory_space<vmem>>, vector<32x128xf32>
    %cst_69 = arith.constant dense<0.000000e+00> : vector<2x128xf32>
    %148 = tpu.matmul %144, %147, %cst_69 {dimension_numbers = #tpu.dot_dimension_numbers<[1], [0], [0], [1], [0, 0, 1, 1], [], []>} : vector<2x32xf32>, vector<32x128xf32>, vector<2x128xf32> -> vector<2x128xf32>
    %149 = arith.addf %146, %148 : vector<2x128xf32>
    %150 = arith.negf %149 : vector<2x128xf32>
    %151 = math.exp %150 : vector<2x128xf32>
    %cst_70 = arith.constant 1.000000e+00 : f32
    %152 = vector.broadcast %cst_70 : f32 to vector<2x128xf32>
    %153 = arith.addf %152, %151 : vector<2x128xf32>
    %154 = arith.divf %152, %153 : vector<2x128xf32>
    %155 = math.tanh %149 : vector<2x128xf32>
    %156 = vector.extract_strided_slice %154 {offsets = [0, 0], sizes = [2, 32], strides = [1, 1]} : vector<2x128xf32> to vector<2x32xf32>
    %157 = vector.extract_strided_slice %154 {offsets = [0, 32], sizes = [2, 32], strides = [1, 1]} : vector<2x128xf32> to vector<2x32xf32>
    %158 = vector.extract_strided_slice %155 {offsets = [0, 64], sizes = [2, 32], strides = [1, 1]} : vector<2x128xf32> to vector<2x32xf32>
    %159 = vector.extract_strided_slice %154 {offsets = [0, 96], sizes = [2, 32], strides = [1, 1]} : vector<2x128xf32> to vector<2x32xf32>
    %160 = arith.mulf %157, %142 : vector<2x32xf32>
    %161 = arith.mulf %156, %158 : vector<2x32xf32>
    %162 = arith.addf %160, %161 : vector<2x32xf32>
    %163 = math.tanh %162 : vector<2x32xf32>
    %164 = arith.mulf %159, %163 : vector<2x32xf32>
    %165 = vector.extract_strided_slice %102 {offsets = [0, 3, 0], sizes = [2, 1, 128], strides = [1, 1, 1]} : vector<2x8x128xf32> to vector<2x1x128xf32>
    %166 = vector.shape_cast %165 : vector<2x1x128xf32> to vector<2x128xf32>
    %c0_71 = arith.constant 0 : index
    %c0_72 = arith.constant 0 : index
    %167 = vector.load %arg16[%c0_71, %c0_72] : memref<32x128xf32, #tpu.memory_space<vmem>>, vector<32x128xf32>
    %cst_73 = arith.constant dense<0.000000e+00> : vector<2x128xf32>
    %168 = tpu.matmul %164, %167, %cst_73 {dimension_numbers = #tpu.dot_dimension_numbers<[1], [0], [0], [1], [0, 0, 1, 1], [], []>} : vector<2x32xf32>, vector<32x128xf32>, vector<2x128xf32> -> vector<2x128xf32>
    %169 = arith.addf %166, %168 : vector<2x128xf32>
    %170 = arith.negf %169 : vector<2x128xf32>
    %171 = math.exp %170 : vector<2x128xf32>
    %cst_74 = arith.constant 1.000000e+00 : f32
    %172 = vector.broadcast %cst_74 : f32 to vector<2x128xf32>
    %173 = arith.addf %172, %171 : vector<2x128xf32>
    %174 = arith.divf %172, %173 : vector<2x128xf32>
    %175 = math.tanh %169 : vector<2x128xf32>
    %176 = vector.extract_strided_slice %174 {offsets = [0, 0], sizes = [2, 32], strides = [1, 1]} : vector<2x128xf32> to vector<2x32xf32>
    %177 = vector.extract_strided_slice %174 {offsets = [0, 32], sizes = [2, 32], strides = [1, 1]} : vector<2x128xf32> to vector<2x32xf32>
    %178 = vector.extract_strided_slice %175 {offsets = [0, 64], sizes = [2, 32], strides = [1, 1]} : vector<2x128xf32> to vector<2x32xf32>
    %179 = vector.extract_strided_slice %174 {offsets = [0, 96], sizes = [2, 32], strides = [1, 1]} : vector<2x128xf32> to vector<2x32xf32>
    %180 = arith.mulf %177, %162 : vector<2x32xf32>
    %181 = arith.mulf %176, %178 : vector<2x32xf32>
    %182 = arith.addf %180, %181 : vector<2x32xf32>
    %183 = math.tanh %182 : vector<2x32xf32>
    %184 = arith.mulf %179, %183 : vector<2x32xf32>
    %185 = vector.extract_strided_slice %102 {offsets = [0, 4, 0], sizes = [2, 1, 128], strides = [1, 1, 1]} : vector<2x8x128xf32> to vector<2x1x128xf32>
    %186 = vector.shape_cast %185 : vector<2x1x128xf32> to vector<2x128xf32>
    %c0_75 = arith.constant 0 : index
    %c0_76 = arith.constant 0 : index
    %187 = vector.load %arg16[%c0_75, %c0_76] : memref<32x128xf32, #tpu.memory_space<vmem>>, vector<32x128xf32>
    %cst_77 = arith.constant dense<0.000000e+00> : vector<2x128xf32>
    %188 = tpu.matmul %184, %187, %cst_77 {dimension_numbers = #tpu.dot_dimension_numbers<[1], [0], [0], [1], [0, 0, 1, 1], [], []>} : vector<2x32xf32>, vector<32x128xf32>, vector<2x128xf32> -> vector<2x128xf32>
    %189 = arith.addf %186, %188 : vector<2x128xf32>
    %190 = arith.negf %189 : vector<2x128xf32>
    %191 = math.exp %190 : vector<2x128xf32>
    %cst_78 = arith.constant 1.000000e+00 : f32
    %192 = vector.broadcast %cst_78 : f32 to vector<2x128xf32>
    %193 = arith.addf %192, %191 : vector<2x128xf32>
    %194 = arith.divf %192, %193 : vector<2x128xf32>
    %195 = math.tanh %189 : vector<2x128xf32>
    %196 = vector.extract_strided_slice %194 {offsets = [0, 0], sizes = [2, 32], strides = [1, 1]} : vector<2x128xf32> to vector<2x32xf32>
    %197 = vector.extract_strided_slice %194 {offsets = [0, 32], sizes = [2, 32], strides = [1, 1]} : vector<2x128xf32> to vector<2x32xf32>
    %198 = vector.extract_strided_slice %195 {offsets = [0, 64], sizes = [2, 32], strides = [1, 1]} : vector<2x128xf32> to vector<2x32xf32>
    %199 = vector.extract_strided_slice %194 {offsets = [0, 96], sizes = [2, 32], strides = [1, 1]} : vector<2x128xf32> to vector<2x32xf32>
    %200 = arith.mulf %197, %182 : vector<2x32xf32>
    %201 = arith.mulf %196, %198 : vector<2x32xf32>
    %202 = arith.addf %200, %201 : vector<2x32xf32>
    %203 = math.tanh %202 : vector<2x32xf32>
    %204 = arith.mulf %199, %203 : vector<2x32xf32>
    %205 = vector.extract_strided_slice %102 {offsets = [0, 5, 0], sizes = [2, 1, 128], strides = [1, 1, 1]} : vector<2x8x128xf32> to vector<2x1x128xf32>
    %206 = vector.shape_cast %205 : vector<2x1x128xf32> to vector<2x128xf32>
    %c0_79 = arith.constant 0 : index
    %c0_80 = arith.constant 0 : index
    %207 = vector.load %arg16[%c0_79, %c0_80] : memref<32x128xf32, #tpu.memory_space<vmem>>, vector<32x128xf32>
    %cst_81 = arith.constant dense<0.000000e+00> : vector<2x128xf32>
    %208 = tpu.matmul %204, %207, %cst_81 {dimension_numbers = #tpu.dot_dimension_numbers<[1], [0], [0], [1], [0, 0, 1, 1], [], []>} : vector<2x32xf32>, vector<32x128xf32>, vector<2x128xf32> -> vector<2x128xf32>
    %209 = arith.addf %206, %208 : vector<2x128xf32>
    %210 = arith.negf %209 : vector<2x128xf32>
    %211 = math.exp %210 : vector<2x128xf32>
    %cst_82 = arith.constant 1.000000e+00 : f32
    %212 = vector.broadcast %cst_82 : f32 to vector<2x128xf32>
    %213 = arith.addf %212, %211 : vector<2x128xf32>
    %214 = arith.divf %212, %213 : vector<2x128xf32>
    %215 = math.tanh %209 : vector<2x128xf32>
    %216 = vector.extract_strided_slice %214 {offsets = [0, 0], sizes = [2, 32], strides = [1, 1]} : vector<2x128xf32> to vector<2x32xf32>
    %217 = vector.extract_strided_slice %214 {offsets = [0, 32], sizes = [2, 32], strides = [1, 1]} : vector<2x128xf32> to vector<2x32xf32>
    %218 = vector.extract_strided_slice %215 {offsets = [0, 64], sizes = [2, 32], strides = [1, 1]} : vector<2x128xf32> to vector<2x32xf32>
    %219 = vector.extract_strided_slice %214 {offsets = [0, 96], sizes = [2, 32], strides = [1, 1]} : vector<2x128xf32> to vector<2x32xf32>
    %220 = arith.mulf %217, %202 : vector<2x32xf32>
    %221 = arith.mulf %216, %218 : vector<2x32xf32>
    %222 = arith.addf %220, %221 : vector<2x32xf32>
    %223 = math.tanh %222 : vector<2x32xf32>
    %224 = arith.mulf %219, %223 : vector<2x32xf32>
    %225 = vector.extract_strided_slice %102 {offsets = [0, 6, 0], sizes = [2, 1, 128], strides = [1, 1, 1]} : vector<2x8x128xf32> to vector<2x1x128xf32>
    %226 = vector.shape_cast %225 : vector<2x1x128xf32> to vector<2x128xf32>
    %c0_83 = arith.constant 0 : index
    %c0_84 = arith.constant 0 : index
    %227 = vector.load %arg16[%c0_83, %c0_84] : memref<32x128xf32, #tpu.memory_space<vmem>>, vector<32x128xf32>
    %cst_85 = arith.constant dense<0.000000e+00> : vector<2x128xf32>
    %228 = tpu.matmul %224, %227, %cst_85 {dimension_numbers = #tpu.dot_dimension_numbers<[1], [0], [0], [1], [0, 0, 1, 1], [], []>} : vector<2x32xf32>, vector<32x128xf32>, vector<2x128xf32> -> vector<2x128xf32>
    %229 = arith.addf %226, %228 : vector<2x128xf32>
    %230 = arith.negf %229 : vector<2x128xf32>
    %231 = math.exp %230 : vector<2x128xf32>
    %cst_86 = arith.constant 1.000000e+00 : f32
    %232 = vector.broadcast %cst_86 : f32 to vector<2x128xf32>
    %233 = arith.addf %232, %231 : vector<2x128xf32>
    %234 = arith.divf %232, %233 : vector<2x128xf32>
    %235 = math.tanh %229 : vector<2x128xf32>
    %236 = vector.extract_strided_slice %234 {offsets = [0, 0], sizes = [2, 32], strides = [1, 1]} : vector<2x128xf32> to vector<2x32xf32>
    %237 = vector.extract_strided_slice %234 {offsets = [0, 32], sizes = [2, 32], strides = [1, 1]} : vector<2x128xf32> to vector<2x32xf32>
    %238 = vector.extract_strided_slice %235 {offsets = [0, 64], sizes = [2, 32], strides = [1, 1]} : vector<2x128xf32> to vector<2x32xf32>
    %239 = vector.extract_strided_slice %234 {offsets = [0, 96], sizes = [2, 32], strides = [1, 1]} : vector<2x128xf32> to vector<2x32xf32>
    %240 = arith.mulf %237, %222 : vector<2x32xf32>
    %241 = arith.mulf %236, %238 : vector<2x32xf32>
    %242 = arith.addf %240, %241 : vector<2x32xf32>
    %243 = math.tanh %242 : vector<2x32xf32>
    %244 = arith.mulf %239, %243 : vector<2x32xf32>
    %245 = vector.extract_strided_slice %102 {offsets = [0, 7, 0], sizes = [2, 1, 128], strides = [1, 1, 1]} : vector<2x8x128xf32> to vector<2x1x128xf32>
    %246 = vector.shape_cast %245 : vector<2x1x128xf32> to vector<2x128xf32>
    %c0_87 = arith.constant 0 : index
    %c0_88 = arith.constant 0 : index
    %247 = vector.load %arg16[%c0_87, %c0_88] : memref<32x128xf32, #tpu.memory_space<vmem>>, vector<32x128xf32>
    %cst_89 = arith.constant dense<0.000000e+00> : vector<2x128xf32>
    %248 = tpu.matmul %244, %247, %cst_89 {dimension_numbers = #tpu.dot_dimension_numbers<[1], [0], [0], [1], [0, 0, 1, 1], [], []>} : vector<2x32xf32>, vector<32x128xf32>, vector<2x128xf32> -> vector<2x128xf32>
    %249 = arith.addf %246, %248 : vector<2x128xf32>
    %250 = arith.negf %249 : vector<2x128xf32>
    %251 = math.exp %250 : vector<2x128xf32>
    %cst_90 = arith.constant 1.000000e+00 : f32
    %252 = vector.broadcast %cst_90 : f32 to vector<2x128xf32>
    %253 = arith.addf %252, %251 : vector<2x128xf32>
    %254 = arith.divf %252, %253 : vector<2x128xf32>
    %255 = math.tanh %249 : vector<2x128xf32>
    %256 = vector.extract_strided_slice %254 {offsets = [0, 0], sizes = [2, 32], strides = [1, 1]} : vector<2x128xf32> to vector<2x32xf32>
    %257 = vector.extract_strided_slice %254 {offsets = [0, 32], sizes = [2, 32], strides = [1, 1]} : vector<2x128xf32> to vector<2x32xf32>
    %258 = vector.extract_strided_slice %255 {offsets = [0, 64], sizes = [2, 32], strides = [1, 1]} : vector<2x128xf32> to vector<2x32xf32>
    %259 = vector.extract_strided_slice %254 {offsets = [0, 96], sizes = [2, 32], strides = [1, 1]} : vector<2x128xf32> to vector<2x32xf32>
    %260 = arith.mulf %257, %242 : vector<2x32xf32>
    %261 = arith.mulf %256, %258 : vector<2x32xf32>
    %262 = arith.addf %260, %261 : vector<2x32xf32>
    %263 = math.tanh %262 : vector<2x32xf32>
    %264 = arith.mulf %259, %263 : vector<2x32xf32>
    %c0_91 = arith.constant 0 : index
    %c0_92 = arith.constant 0 : index
    %265 = vector.load %arg18[%c0_91, %c0_92] : memref<32x128xf32, #tpu.memory_space<vmem>>, vector<32x128xf32>
    %cst_93 = arith.constant dense<0.000000e+00> : vector<2x128xf32>
    %266 = tpu.matmul %264, %265, %cst_93 {dimension_numbers = #tpu.dot_dimension_numbers<[1], [0], [0], [1], [0, 0, 1, 1], [], []>} : vector<2x32xf32>, vector<32x128xf32>, vector<2x128xf32> -> vector<2x128xf32>
    %c0_94 = arith.constant 0 : index
    %c0_95 = arith.constant 0 : index
    %267 = vector.load %arg19[%c0_94, %c0_95] : memref<1x128xf32, #tpu.memory_space<vmem>>, vector<1x128xf32>
    %268 = vector.broadcast %267 : vector<1x128xf32> to vector<2x128xf32>
    %269 = arith.addf %266, %268 : vector<2x128xf32>
    %270 = vector.shape_cast %269 : vector<2x128xf32> to vector<1x2x128xf32>
    %c0_96 = arith.constant 0 : index
    %c0_97 = arith.constant 0 : index
    %c0_98 = arith.constant 0 : index
    %271 = vector.load %arg20[%c0_96, %c0_97, %c0_98] : memref<1x2x128xf32, #tpu.memory_space<vmem>>, vector<1x2x128xf32>
    tpu.vector_store %arg20[%c0_96, %c0_97, %c0_98], %270 {strides = array<i32>} : memref<1x2x128xf32, #tpu.memory_space<vmem>>, vector<1x2x128xf32>,
    return
  }
  func.func @transform_0(%arg0: i32) -> (i32, i32, i32) {
    %c0_i32 = arith.constant 0 : i32
    %c0_i32_0 = arith.constant 0 : i32
    %c0_i32_1 = arith.constant 0 : i32
    return %arg0, %c0_i32, %c0_i32_0 : i32, i32, i32
  }
  func.func @transform_1(%arg0: i32) -> (i32, i32, i32) {
    %c0_i32 = arith.constant 0 : i32
    %c0_i32_0 = arith.constant 0 : i32
    %c0_i32_1 = arith.constant 0 : i32
    return %arg0, %c0_i32, %c0_i32_0 : i32, i32, i32
  }
  func.func @transform_2(%arg0: i32) -> (i32, i32) {
    %c0_i32 = arith.constant 0 : i32
    %c0_i32_0 = arith.constant 0 : i32
    %c0_i32_1 = arith.constant 0 : i32
    return %c0_i32, %c0_i32_0 : i32, i32
  }
  func.func @transform_3(%arg0: i32) -> (i32, i32) {
    %c0_i32 = arith.constant 0 : i32
    %c0_i32_0 = arith.constant 0 : i32
    %c0_i32_1 = arith.constant 0 : i32
    return %c0_i32, %c0_i32_0 : i32, i32
  }
  func.func @transform_4(%arg0: i32) -> (i32, i32) {
    %c0_i32 = arith.constant 0 : i32
    %c0_i32_0 = arith.constant 0 : i32
    %c0_i32_1 = arith.constant 0 : i32
    return %c0_i32, %c0_i32_0 : i32, i32
  }
  func.func @transform_5(%arg0: i32) -> (i32, i32) {
    %c0_i32 = arith.constant 0 : i32
    %c0_i32_0 = arith.constant 0 : i32
    %c0_i32_1 = arith.constant 0 : i32
    return %c0_i32, %c0_i32_0 : i32, i32
  }
  func.func @transform_6(%arg0: i32) -> (i32, i32) {
    %c0_i32 = arith.constant 0 : i32
    %c0_i32_0 = arith.constant 0 : i32
    %c0_i32_1 = arith.constant 0 : i32
    return %c0_i32, %c0_i32_0 : i32, i32
  }
  func.func @transform_7(%arg0: i32) -> (i32, i32) {
    %c0_i32 = arith.constant 0 : i32
    %c0_i32_0 = arith.constant 0 : i32
    %c0_i32_1 = arith.constant 0 : i32
    return %c0_i32, %c0_i32_0 : i32, i32
  }
  func.func @transform_8(%arg0: i32) -> (i32, i32) {
    %c0_i32 = arith.constant 0 : i32
    %c0_i32_0 = arith.constant 0 : i32
    %c0_i32_1 = arith.constant 0 : i32
    return %c0_i32, %c0_i32_0 : i32, i32
  }
  func.func @transform_9(%arg0: i32) -> (i32, i32) {
    %c0_i32 = arith.constant 0 : i32
    %c0_i32_0 = arith.constant 0 : i32
    %c0_i32_1 = arith.constant 0 : i32
    return %c0_i32, %c0_i32_0 : i32, i32
  }
  func.func @transform_10(%arg0: i32) -> (i32, i32) {
    %c0_i32 = arith.constant 0 : i32
    %c0_i32_0 = arith.constant 0 : i32
    %c0_i32_1 = arith.constant 0 : i32
    return %c0_i32, %c0_i32_0 : i32, i32
  }
  func.func @transform_11(%arg0: i32) -> (i32, i32) {
    %c0_i32 = arith.constant 0 : i32
    %c0_i32_0 = arith.constant 0 : i32
    %c0_i32_1 = arith.constant 0 : i32
    return %c0_i32, %c0_i32_0 : i32, i32
  }
  func.func @transform_12(%arg0: i32) -> (i32, i32) {
    %c0_i32 = arith.constant 0 : i32
    %c0_i32_0 = arith.constant 0 : i32
    %c0_i32_1 = arith.constant 0 : i32
    return %c0_i32, %c0_i32_0 : i32, i32
  }
  func.func @transform_13(%arg0: i32) -> (i32, i32) {
    %c0_i32 = arith.constant 0 : i32
    %c0_i32_0 = arith.constant 0 : i32
    %c0_i32_1 = arith.constant 0 : i32
    return %c0_i32, %c0_i32_0 : i32, i32
  }
  func.func @transform_14(%arg0: i32) -> (i32, i32) {
    %c0_i32 = arith.constant 0 : i32
    %c0_i32_0 = arith.constant 0 : i32
    %c0_i32_1 = arith.constant 0 : i32
    return %c0_i32, %c0_i32_0 : i32, i32
  }
  func.func @transform_15(%arg0: i32) -> (i32, i32) {
    %c0_i32 = arith.constant 0 : i32
    %c0_i32_0 = arith.constant 0 : i32
    %c0_i32_1 = arith.constant 0 : i32
    return %c0_i32, %c0_i32_0 : i32, i32
  }
  func.func @transform_16(%arg0: i32) -> (i32, i32) {
    %c0_i32 = arith.constant 0 : i32
    %c0_i32_0 = arith.constant 0 : i32
    %c0_i32_1 = arith.constant 0 : i32
    return %c0_i32, %c0_i32_0 : i32, i32
  }
  func.func @transform_17(%arg0: i32) -> (i32, i32) {
    %c0_i32 = arith.constant 0 : i32
    %c0_i32_0 = arith.constant 0 : i32
    %c0_i32_1 = arith.constant 0 : i32
    return %c0_i32, %c0_i32_0 : i32, i32
  }
  func.func @transform_18(%arg0: i32) -> (i32, i32) {
    %c0_i32 = arith.constant 0 : i32
    %c0_i32_0 = arith.constant 0 : i32
    %c0_i32_1 = arith.constant 0 : i32
    return %c0_i32, %c0_i32_0 : i32, i32
  }
  func.func @transform_19(%arg0: i32) -> (i32, i32, i32) {
    %c0_i32 = arith.constant 0 : i32
    %c0_i32_0 = arith.constant 0 : i32
    %c0_i32_1 = arith.constant 0 : i32
    return %arg0, %c0_i32, %c0_i32_0 : i32, i32, i32
  }
}

</mosaic_0001>

<llo_original>
// kernel: tpu_custom_call.1
$region0: #{tpu_custom_call.1}
  #allocation0 [shape = 'u32[]', space=smem, size = 0x4, offset = 0x4, fixed_abs, tag = 'smem constant byte address 0x4 - core index']
  #allocation1 [shape = 'u32[144,128]{1,0:T(1,128)}', space=vmem, size = 0x12000, scoped, tag = 'internal scratch']
  #allocation2 [shape = 'f32[16,32]{1,0:T(8,128)}', space=vmem, size = 0x2000, scoped, tag = 'scratch operand']
  %s0 = inlined_call_operand.vmem [shape: f32[4,16,32], index: 0, kind: input, shape index: {}]
  %s1 = inlined_call_operand.hbm [shape: f32[4,8,32], index: 1, kind: input, shape index: {}]
  %s2 = inlined_call_operand.hbm [shape: f32[32,32], index: 2, kind: input, shape index: {}]
  %s3 = inlined_call_operand.vmem [shape: f32[1,32], index: 3, kind: input, shape index: {}]
  %s4 = inlined_call_operand.hbm [shape: f32[32,32], index: 4, kind: input, shape index: {}]
  %s5 = inlined_call_operand.hbm [shape: f32[1,32], index: 5, kind: input, shape index: {}]
  %s6 = inlined_call_operand.vmem [shape: f32[32,2], index: 6, kind: input, shape index: {}]
  %s7 = inlined_call_operand.vmem [shape: f32[32,2], index: 7, kind: input, shape index: {}]
  %s8 = inlined_call_operand.hbm [shape: f32[32,32], index: 8, kind: input, shape index: {}]
  %s9 = inlined_call_operand.hbm [shape: f32[1,32], index: 9, kind: input, shape index: {}]
  %s10 = inlined_call_operand.hbm [shape: f32[32,32], index: 10, kind: input, shape index: {}]
  %s11 = inlined_call_operand.hbm [shape: f32[1,32], index: 11, kind: input, shape index: {}]
  %s12 = inlined_call_operand.hbm [shape: f32[32,32], index: 12, kind: input, shape index: {}]
  %s13 = inlined_call_operand.hbm [shape: f32[1,32], index: 13, kind: input, shape index: {}]
  %s14 = inlined_call_operand.hbm [shape: f32[32,128], index: 14, kind: input, shape index: {}]
  %s15 = inlined_call_operand.hbm [shape: f32[32,128], index: 15, kind: input, shape index: {}]
  %s16 = inlined_call_operand.hbm [shape: f32[1,128], index: 16, kind: input, shape index: {}]
  %s17 = inlined_call_operand.vmem [shape: f32[32,128], index: 17, kind: input, shape index: {}]
  %s18 = inlined_call_operand.vmem [shape: f32[1,128], index: 18, kind: input, shape index: {}]
  %s19 = inlined_call_operand.hbm [shape: f32[2,2,128], index: 19, kind: output, shape index: {}]
  %s20 = sld [smem:[#allocation0]]
  $region161: #{tpu_custom_call.1} parent=0
    _
  %s22 = ssub.s32 1, %s20
  %s23 = scalar_select 0, %s22, %s20
  $region1: #{tpu_custom_call.1} parent=0
    #allocation3 [shape = 'u8[16384]{0}', space=vmem, size = 0x4000, scoped, tag = 'input window, operand 1']
    #allocation4 [shape = 's32[2]{0}', space=sflag, size = 0x8, scoped, tag = 'scoped memory for tpu_custom_call.1']
    #allocation5 [shape = 's32[2]{0}', space=sflag, size = 0x8, scoped, tag = 'scoped memory for tpu_custom_call.1']
    #allocation6 [shape = 'u8[16384]{0}', space=vmem, size = 0x4000, scoped, tag = 'input window, operand 2, single buffered']
    #allocation7 [shape = 's32[1]{0}', space=sflag, size = 0x4, scoped, tag = 'scoped memory for tpu_custom_call.1']
    #allocation8 [shape = 'u8[16384]{0}', space=vmem, size = 0x4000, scoped, tag = 'input window, operand 4, single buffered']
    #allocation9 [shape = 'u8[512]{0}', space=vmem, size = 0x400, scoped, tag = 'input window, operand 5, single buffered']
    #allocation10 [shape = 's32[1]{0}', space=sflag, size = 0x4, scoped, tag = 'scoped memory for tpu_custom_call.1']
    #allocation11 [shape = 'u8[16384]{0}', space=vmem, size = 0x4000, scoped, tag = 'input window, operand 8, single buffered']
    #allocation12 [shape = 'u8[512]{0}', space=vmem, size = 0x400, scoped, tag = 'input window, operand 9, single buffered']
    #allocation13 [shape = 's32[1]{0}', space=sflag, size = 0x4, scoped, tag = 'scoped memory for tpu_custom_call.1']
    #allocation14 [shape = 'u8[16384]{0}', space=vmem, size = 0x4000, scoped, tag = 'input window, operand 10, single buffered']
    #allocation15 [shape = 'u8[512]{0}', space=vmem, size = 0x400, scoped, tag = 'input window, operand 11, single buffered']
    #allocation16 [shape = 's32[1]{0}', space=sflag, size = 0x4, scoped, tag = 'scoped memory for tpu_custom_call.1']
    #allocation17 [shape = 'u8[16384]{0}', space=vmem, size = 0x4000, scoped, tag = 'input window, operand 12, single buffered']
    #allocation18 [shape = 'u8[512]{0}', space=vmem, size = 0x400, scoped, tag = 'input window, operand 13, single buffered']
    #allocation19 [shape = 's32[1]{0}', space=sflag, size = 0x4, scoped, tag = 'scoped memory for tpu_custom_call.1']
    #allocation20 [shape = 'u8[16384]{0}', space=vmem, size = 0x4000, scoped, tag = 'input window, operand 14, single buffered']
    #allocation21 [shape = 'u8[16384]{0}', space=vmem, size = 0x4000, scoped, tag = 'input window, operand 15, single buffered']
    #allocation22 [shape = 's32[1]{0}', space=sflag, size = 0x4, scoped, tag = 'scoped memory for tpu_custom_call.1']
    #allocation23 [shape = 'u8[512]{0}', space=vmem, size = 0x400, scoped, tag = 'input window, operand 16, single buffered']
    #allocation24 [shape = 'u8[2048]{0}', space=vmem, size = 0x800, scoped, tag = 'output window, operand 0']
    %24 = vsyncpa [#allocation4], 0
    %s25 = scalar_lea.sflag [#allocation4], 1
    %26 = vsyncpa %s25, 0
    %27 = vsyncpa [#allocation7], 0
    %28 = vsyncpa [#allocation10], 0
    %29 = vsyncpa [#allocation13], 0
    %30 = vsyncpa [#allocation16], 0
    %31 = vsyncpa [#allocation19], 0
    %32 = vsyncpa [#allocation22], 0
    %33 = vsyncpa [#allocation5], 0
    %s34 = scalar_lea.sflag [#allocation5], 1
    %35 = vsyncpa %s34, 0
    loop: start=0, step=1, limit=4
    $region2: #{tpu_custom_call.1} parent=1 // loop_pre_header
      _
    $region3: #{tpu_custom_call.1} parent=1 // loop_header
      %s37 = sphi 0, %s41
      %p38 = scmp.ge.s32.totalorder %s37, 4
      %s47 = sphi 0, %s49
      %s50 = sphi 0, %s47
      %s51 = sphi 0, %s50
      %s67 = sphi 0, %s51
      %s73 = sphi 0, %s75
      %s76 = sphi 0, %s73
      %s77 = sphi 0, %s76
      %s93 = sphi 0, %s77
      %s97 = sphi 0, %s97
      %s99 = sphi 0, %s97
      %s100 = sphi 0, %s99
      %s114 = sphi 0, %s100
      %s118 = sphi 0, %s118
      %s120 = sphi 0, %s118
      %s121 = sphi 0, %s120
      %s135 = sphi 0, %s121
      %s139 = sphi 0, %s139
      %s141 = sphi 0, %s139
      %s142 = sphi 0, %s141
      %s156 = sphi 0, %s142
      %s160 = sphi 0, %s160
      %s162 = sphi 0, %s160
      %s163 = sphi 0, %s162
      %s177 = sphi 0, %s163
      %s181 = sphi 0, %s181
      %s183 = sphi 0, %s181
      %s184 = sphi 0, %s183
      %s198 = sphi 0, %s184
      %s202 = sphi 0, %s202
      %s204 = sphi 0, %s202
      %s205 = sphi 0, %s204
      %s219 = sphi 0, %s205
      %s223 = sphi 0, %s223
      %s225 = sphi 0, %s223
      %s226 = sphi 0, %s225
      %s240 = sphi 0, %s226
      %s244 = sphi 0, %s244
      %s246 = sphi 0, %s244
      %s247 = sphi 0, %s246
      %s261 = sphi 0, %s247
      %s265 = sphi 0, %s265
      %s267 = sphi 0, %s265
      %s268 = sphi 0, %s267
      %s282 = sphi 0, %s268
      %s286 = sphi 0, %s286
      %s288 = sphi 0, %s286
      %s289 = sphi 0, %s288
      %s303 = sphi 0, %s289
      %s307 = sphi 0, %s307
      %s309 = sphi 0, %s307
      %s310 = sphi 0, %s309
      %s324 = sphi 0, %s310
      %s328 = sphi 0, %s328
      %s330 = sphi 0, %s328
      %s331 = sphi 0, %s330
      %s345 = sphi 0, %s331
      %s349 = sphi 0, %s349
      %s351 = sphi 0, %s349
      %s352 = sphi 0, %s351
      %s366 = sphi 0, %s352
      %s370 = sphi 0, %s370
      %s372 = sphi 0, %s370
      %s373 = sphi 0, %s372
      %s387 = sphi 0, %s373
      %s391 = sphi 0, %s391
      %s393 = sphi 0, %s391
      %s394 = sphi 0, %s393
      %s408 = sphi 0, %s394
      %s412 = sphi 0, %s412
      %s414 = sphi 0, %s412
      %s415 = sphi 0, %s414
      %s429 = sphi 0, %s415
      %s433 = sphi 0, %s433
      %s435 = sphi 0, %s433
      %s436 = sphi 0, %s435
      %s450 = sphi 0, %s436
      %s456 = sphi 0, %s458
      %s459 = sphi 0, %s456
      %s460 = sphi 0, %s459
      %s476 = sphi 0, %s460
    $region4: #{tpu_custom_call.1} parent=1 // loop_header_branch
      %40 = sbr.rel (%p38) target = $region8
    $region5: #{tpu_custom_call.1} parent=1 // loop_body
      %s42 = ssub.s32 %s37, 1
      %s43 = ssub.s32 %s37, 2
      %s44 = sadd.s32 %s37, 1
      %s45 = ssub.s32 %s37, %s44
      %p46 = scmp.eq.s32.totalorder %s45, 0
      %s48 = sadd.s32 %s47, 1
      %s49 = scalar_select %p46, %s47, %s48
      %p52 = pneg %p46
      %p53 = scmp.eq.s32.totalorder %s37, 1
      %p54 = por %p52, %p53
      %p55 = scmp.ne.s32.totalorder %s47, %s50
      %p56 = scmp.eq.s32.totalorder %s37, 0
      %p57 = por %p55, %p56
      %p58 = scmp.ne.s32.totalorder %s47, %s50
      %p59 = scmp.eq.s32.totalorder %s42, 1
      %p60 = por %p58, %p59
      %p61 = scmp.ne.s32.totalorder %s50, %s51
      %p62 = scmp.eq.s32.totalorder %s42, 0
      %p63 = por %p61, %p62
      %p64 = scmp.ne.s32.totalorder %s50, %s51
      %p65 = scmp.eq.s32.totalorder %s43, 1
      %p66 = por %p64, %p65
      %p68 = scmp.ne.s32.totalorder %s51, %s67
      %p69 = scmp.eq.s32.totalorder %s43, 0
      %p70 = por %p68, %p69
      %s71 = ssub.s32 %s37, %s44
      %p72 = scmp.eq.s32.totalorder %s71, 0
      %s74 = sadd.s32 %s73, 1
      %s75 = scalar_select %p72, %s73, %s74
      %p78 = pneg %p72
      %p79 = scmp.eq.s32.totalorder %s37, 1
      %p80 = por %p78, %p79
      %p81 = scmp.ne.s32.totalorder %s73, %s76
      %p82 = scmp.eq.s32.totalorder %s37, 0
      %p83 = por %p81, %p82
      %p84 = scmp.ne.s32.totalorder %s73, %s76
      %p85 = scmp.eq.s32.totalorder %s42, 1
      %p86 = por %p84, %p85
      %p87 = scmp.ne.s32.totalorder %s76, %s77
      %p88 = scmp.eq.s32.totalorder %s42, 0
      %p89 = por %p87, %p88
      %p90 = scmp.ne.s32.totalorder %s76, %s77
      %p91 = scmp.eq.s32.totalorder %s43, 1
      %p92 = por %p90, %p91
      %p94 = scmp.ne.s32.totalorder %s77, %s93
      %p95 = scmp.eq.s32.totalorder %s43, 0
      %p96 = por %p94, %p95
      %s98 = sadd.s32 %s97, 1
      %p101 = scmp.eq.s32.totalorder %s37, 1
      %p102 = scmp.ne.s32.totalorder %s97, %s99
      %p103 = scmp.eq.s32.totalorder %s37, 0
      %p104 = por %p102, %p103
      %p105 = scmp.ne.s32.totalorder %s97, %s99
      %p106 = scmp.eq.s32.totalorder %s42, 1
      %p107 = por %p105, %p106
      %p108 = scmp.ne.s32.totalorder %s99, %s100
      %p109 = scmp.eq.s32.totalorder %s42, 0
      %p110 = por %p108, %p109
      %p111 = scmp.ne.s32.totalorder %s99, %s100
      %p112 = scmp.eq.s32.totalorder %s43, 1
      %p113 = por %p111, %p112
      %p115 = scmp.ne.s32.totalorder %s100, %s114
      %p116 = scmp.eq.s32.totalorder %s43, 0
      %p117 = por %p115, %p116
      %s119 = sadd.s32 %s118, 1
      %p122 = scmp.eq.s32.totalorder %s37, 1
      %p123 = scmp.ne.s32.totalorder %s118, %s120
      %p124 = scmp.eq.s32.totalorder %s37, 0
      %p125 = por %p123, %p124
      %p126 = scmp.ne.s32.totalorder %s118, %s120
      %p127 = scmp.eq.s32.totalorder %s42, 1
      %p128 = por %p126, %p127
      %p129 = scmp.ne.s32.totalorder %s120, %s121
      %p130 = scmp.eq.s32.totalorder %s42, 0
      %p131 = por %p129, %p130
      %p132 = scmp.ne.s32.totalorder %s120, %s121
      %p133 = scmp.eq.s32.totalorder %s43, 1
      %p134 = por %p132, %p133
      %p136 = scmp.ne.s32.totalorder %s121, %s135
      %p137 = scmp.eq.s32.totalorder %s43, 0
      %p138 = por %p136, %p137
      %s140 = sadd.s32 %s139, 1
      %p143 = scmp.eq.s32.totalorder %s37, 1
      %p144 = scmp.ne.s32.totalorder %s139, %s141
      %p145 = scmp.eq.s32.totalorder %s37, 0
      %p146 = por %p144, %p145
      %p147 = scmp.ne.s32.totalorder %s139, %s141
      %p148 = scmp.eq.s32.totalorder %s42, 1
      %p149 = por %p147, %p148
      %p150 = scmp.ne.s32.totalorder %s141, %s142
      %p151 = scmp.eq.s32.totalorder %s42, 0
      %p152 = por %p150, %p151
      %p153 = scmp.ne.s32.totalorder %s141, %s142
      %p154 = scmp.eq.s32.totalorder %s43, 1
      %p155 = por %p153, %p154
      %p157 = scmp.ne.s32.totalorder %s142, %s156
      %p158 = scmp.eq.s32.totalorder %s43, 0
      %p159 = por %p157, %p158
      %s161 = sadd.s32 %s160, 1
      %p164 = scmp.eq.s32.totalorder %s37, 1
      %p165 = scmp.ne.s32.totalorder %s160, %s162
      %p166 = scmp.eq.s32.totalorder %s37, 0
      %p167 = por %p165, %p166
      %p168 = scmp.ne.s32.totalorder %s160, %s162
      %p169 = scmp.eq.s32.totalorder %s42, 1
      %p170 = por %p168, %p169
      %p171 = scmp.ne.s32.totalorder %s162, %s163
      %p172 = scmp.eq.s32.totalorder %s42, 0
      %p173 = por %p171, %p172
      %p174 = scmp.ne.s32.totalorder %s162, %s163
      %p175 = scmp.eq.s32.totalorder %s43, 1
      %p176 = por %p174, %p175
      %p178 = scmp.ne.s32.totalorder %s163, %s177
      %p179 = scmp.eq.s32.totalorder %s43, 0
      %p180 = por %p178, %p179
      %s182 = sadd.s32 %s181, 1
      %p185 = scmp.eq.s32.totalorder %s37, 1
      %p186 = scmp.ne.s32.totalorder %s181, %s183
      %p187 = scmp.eq.s32.totalorder %s37, 0
      %p188 = por %p186, %p187
      %p189 = scmp.ne.s32.totalorder %s181, %s183
      %p190 = scmp.eq.s32.totalorder %s42, 1
      %p191 = por %p189, %p190
      %p192 = scmp.ne.s32.totalorder %s183, %s184
      %p193 = scmp.eq.s32.totalorder %s42, 0
      %p194 = por %p192, %p193
      %p195 = scmp.ne.s32.totalorder %s183, %s184
      %p196 = scmp.eq.s32.totalorder %s43, 1
      %p197 = por %p195, %p196
      %p199 = scmp.ne.s32.totalorder %s184, %s198
      %p200 = scmp.eq.s32.totalorder %s43, 0
      %p201 = por %p199, %p200
      %s203 = sadd.s32 %s202, 1
      %p206 = scmp.eq.s32.totalorder %s37, 1
      %p207 = scmp.ne.s32.totalorder %s202, %s204
      %p208 = scmp.eq.s32.totalorder %s37, 0
      %p209 = por %p207, %p208
      %p210 = scmp.ne.s32.totalorder %s202, %s204
      %p211 = scmp.eq.s32.totalorder %s42, 1
      %p212 = por %p210, %p211
      %p213 = scmp.ne.s32.totalorder %s204, %s205
      %p214 = scmp.eq.s32.totalorder %s42, 0
      %p215 = por %p213, %p214
      %p216 = scmp.ne.s32.totalorder %s204, %s205
      %p217 = scmp.eq.s32.totalorder %s43, 1
      %p218 = por %p216, %p217
      %p220 = scmp.ne.s32.totalorder %s205, %s219
      %p221 = scmp.eq.s32.totalorder %s43, 0
      %p222 = por %p220, %p221
      %s224 = sadd.s32 %s223, 1
      %p227 = scmp.eq.s32.totalorder %s37, 1
      %p228 = scmp.ne.s32.totalorder %s223, %s225
      %p229 = scmp.eq.s32.totalorder %s37, 0
      %p230 = por %p228, %p229
      %p231 = scmp.ne.s32.totalorder %s223, %s225
      %p232 = scmp.eq.s32.totalorder %s42, 1
      %p233 = por %p231, %p232
      %p234 = scmp.ne.s32.totalorder %s225, %s226
      %p235 = scmp.eq.s32.totalorder %s42, 0
      %p236 = por %p234, %p235
      %p237 = scmp.ne.s32.totalorder %s225, %s226
      %p238 = scmp.eq.s32.totalorder %s43, 1
      %p239 = por %p237, %p238
      %p241 = scmp.ne.s32.totalorder %s226, %s240
      %p242 = scmp.eq.s32.totalorder %s43, 0
      %p243 = por %p241, %p242
      %s245 = sadd.s32 %s244, 1
      %p248 = scmp.eq.s32.totalorder %s37, 1
      %p249 = scmp.ne.s32.totalorder %s244, %s246
      %p250 = scmp.eq.s32.totalorder %s37, 0
      %p251 = por %p249, %p250
      %p252 = scmp.ne.s32.totalorder %s244, %s246
      %p253 = scmp.eq.s32.totalorder %s42, 1
      %p254 = por %p252, %p253
      %p255 = scmp.ne.s32.totalorder %s246, %s247
      %p256 = scmp.eq.s32.totalorder %s42, 0
      %p257 = por %p255, %p256
      %p258 = scmp.ne.s32.totalorder %s246, %s247
      %p259 = scmp.eq.s32.totalorder %s43, 1
      %p260 = por %p258, %p259
      %p262 = scmp.ne.s32.totalorder %s247, %s261
      %p263 = scmp.eq.s32.totalorder %s43, 0
      %p264 = por %p262, %p263
      %s266 = sadd.s32 %s265, 1
      %p269 = scmp.eq.s32.totalorder %s37, 1
      %p270 = scmp.ne.s32.totalorder %s265, %s267
      %p271 = scmp.eq.s32.totalorder %s37, 0
      %p272 = por %p270, %p271
      %p273 = scmp.ne.s32.totalorder %s265, %s267
      %p274 = scmp.eq.s32.totalorder %s42, 1
      %p275 = por %p273, %p274
      %p276 = scmp.ne.s32.totalorder %s267, %s268
      %p277 = scmp.eq.s32.totalorder %s42, 0
      %p278 = por %p276, %p277
      %p279 = scmp.ne.s32.totalorder %s267, %s268
      %p280 = scmp.eq.s32.totalorder %s43, 1
      %p281 = por %p279, %p280
      %p283 = scmp.ne.s32.totalorder %s268, %s282
      %p284 = scmp.eq.s32.totalorder %s43, 0
      %p285 = por %p283, %p284
      %s287 = sadd.s32 %s286, 1
      %p290 = scmp.eq.s32.totalorder %s37, 1
      %p291 = scmp.ne.s32.totalorder %s286, %s288
      %p292 = scmp.eq.s32.totalorder %s37, 0
      %p293 = por %p291, %p292
      %p294 = scmp.ne.s32.totalorder %s286, %s288
      %p295 = scmp.eq.s32.totalorder %s42, 1
      %p296 = por %p294, %p295
      %p297 = scmp.ne.s32.totalorder %s288, %s289
      %p298 = scmp.eq.s32.totalorder %s42, 0
      %p299 = por %p297, %p298
      %p300 = scmp.ne.s32.totalorder %s288, %s289
      %p301 = scmp.eq.s32.totalorder %s43, 1
      %p302 = por %p300, %p301
      %p304 = scmp.ne.s32.totalorder %s289, %s303
      %p305 = scmp.eq.s32.totalorder %s43, 0
      %p306 = por %p304, %p305
      %s308 = sadd.s32 %s307, 1
      %p311 = scmp.eq.s32.totalorder %s37, 1
      %p312 = scmp.ne.s32.totalorder %s307, %s309
      %p313 = scmp.eq.s32.totalorder %s37, 0
      %p314 = por %p312, %p313
      %p315 = scmp.ne.s32.totalorder %s307, %s309
      %p316 = scmp.eq.s32.totalorder %s42, 1
      %p317 = por %p315, %p316
      %p318 = scmp.ne.s32.totalorder %s309, %s310
      %p319 = scmp.eq.s32.totalorder %s42, 0
      %p320 = por %p318, %p319
      %p321 = scmp.ne.s32.totalorder %s309, %s310
      %p322 = scmp.eq.s32.totalorder %s43, 1
      %p323 = por %p321, %p322
      %p325 = scmp.ne.s32.totalorder %s310, %s324
      %p326 = scmp.eq.s32.totalorder %s43, 0
      %p327 = por %p325, %p326
      %s329 = sadd.s32 %s328, 1
      %p332 = scmp.eq.s32.totalorder %s37, 1
      %p333 = scmp.ne.s32.totalorder %s328, %s330
      %p334 = scmp.eq.s32.totalorder %s37, 0
      %p335 = por %p333, %p334
      %p336 = scmp.ne.s32.totalorder %s328, %s330
      %p337 = scmp.eq.s32.totalorder %s42, 1
      %p338 = por %p336, %p337
      %p339 = scmp.ne.s32.totalorder %s330, %s331
      %p340 = scmp.eq.s32.totalorder %s42, 0
      %p341 = por %p339, %p340
      %p342 = scmp.ne.s32.totalorder %s330, %s331
      %p343 = scmp.eq.s32.totalorder %s43, 1
      %p344 = por %p342, %p343
      %p346 = scmp.ne.s32.totalorder %s331, %s345
      %p347 = scmp.eq.s32.totalorder %s43, 0
      %p348 = por %p346, %p347
      %s350 = sadd.s32 %s349, 1
      %p353 = scmp.eq.s32.totalorder %s37, 1
      %p354 = scmp.ne.s32.totalorder %s349, %s351
      %p355 = scmp.eq.s32.totalorder %s37, 0
      %p356 = por %p354, %p355
      %p357 = scmp.ne.s32.totalorder %s349, %s351
      %p358 = scmp.eq.s32.totalorder %s42, 1
      %p359 = por %p357, %p358
      %p360 = scmp.ne.s32.totalorder %s351, %s352
      %p361 = scmp.eq.s32.totalorder %s42, 0
      %p362 = por %p360, %p361
      %p363 = scmp.ne.s32.totalorder %s351, %s352
      %p364 = scmp.eq.s32.totalorder %s43, 1
      %p365 = por %p363, %p364
      %p367 = scmp.ne.s32.totalorder %s352, %s366
      %p368 = scmp.eq.s32.totalorder %s43, 0
      %p369 = por %p367, %p368
      %s371 = sadd.s32 %s370, 1
      %p374 = scmp.eq.s32.totalorder %s37, 1
      %p375 = scmp.ne.s32.totalorder %s370, %s372
      %p376 = scmp.eq.s32.totalorder %s37, 0
      %p377 = por %p375, %p376
      %p378 = scmp.ne.s32.totalorder %s370, %s372
      %p379 = scmp.eq.s32.totalorder %s42, 1
      %p380 = por %p378, %p379
      %p381 = scmp.ne.s32.totalorder %s372, %s373
      %p382 = scmp.eq.s32.totalorder %s42, 0
      %p383 = por %p381, %p382
      %p384 = scmp.ne.s32.totalorder %s372, %s373
      %p385 = scmp.eq.s32.totalorder %s43, 1
      %p386 = por %p384, %p385
      %p388 = scmp.ne.s32.totalorder %s373, %s387
      %p389 = scmp.eq.s32.totalorder %s43, 0
      %p390 = por %p388, %p389
      %s392 = sadd.s32 %s391, 1
      %p395 = scmp.eq.s32.totalorder %s37, 1
      %p396 = scmp.ne.s32.totalorder %s391, %s393
      %p397 = scmp.eq.s32.totalorder %s37, 0
      %p398 = por %p396, %p397
      %p399 = scmp.ne.s32.totalorder %s391, %s393
      %p400 = scmp.eq.s32.totalorder %s42, 1
      %p401 = por %p399, %p400
      %p402 = scmp.ne.s32.totalorder %s393, %s394
      %p403 = scmp.eq.s32.totalorder %s42, 0
      %p404 = por %p402, %p403
      %p405 = scmp.ne.s32.totalorder %s393, %s394
      %p406 = scmp.eq.s32.totalorder %s43, 1
      %p407 = por %p405, %p406
      %p409 = scmp.ne.s32.totalorder %s394, %s408
      %p410 = scmp.eq.s32.totalorder %s43, 0
      %p411 = por %p409, %p410
      %s413 = sadd.s32 %s412, 1
      %p416 = scmp.eq.s32.totalorder %s37, 1
      %p417 = scmp.ne.s32.totalorder %s412, %s414
      %p418 = scmp.eq.s32.totalorder %s37, 0
      %p419 = por %p417, %p418
      %p420 = scmp.ne.s32.totalorder %s412, %s414
      %p421 = scmp.eq.s32.totalorder %s42, 1
      %p422 = por %p420, %p421
      %p423 = scmp.ne.s32.totalorder %s414, %s415
      %p424 = scmp.eq.s32.totalorder %s42, 0
      %p425 = por %p423, %p424
      %p426 = scmp.ne.s32.totalorder %s414, %s415
      %p427 = scmp.eq.s32.totalorder %s43, 1
      %p428 = por %p426, %p427
      %p430 = scmp.ne.s32.totalorder %s415, %s429
      %p431 = scmp.eq.s32.totalorder %s43, 0
      %p432 = por %p430, %p431
      %s434 = sadd.s32 %s433, 1
      %p437 = scmp.eq.s32.totalorder %s37, 1
      %p438 = scmp.ne.s32.totalorder %s433, %s435
      %p439 = scmp.eq.s32.totalorder %s37, 0
      %p440 = por %p438, %p439
      %p441 = scmp.ne.s32.totalorder %s433, %s435
      %p442 = scmp.eq.s32.totalorder %s42, 1
      %p443 = por %p441, %p442
      %p444 = scmp.ne.s32.totalorder %s435, %s436
      %p445 = scmp.eq.s32.totalorder %s42, 0
      %p446 = por %p444, %p445
      %p447 = scmp.ne.s32.totalorder %s435, %s436
      %p448 = scmp.eq.s32.totalorder %s43, 1
      %p449 = por %p447, %p448
      %p451 = scmp.ne.s32.totalorder %s436, %s450
      %p452 = scmp.eq.s32.totalorder %s43, 0
      %p453 = por %p451, %p452
      %s454 = ssub.s32 %s37, %s44
      %p455 = scmp.eq.s32.totalorder %s454, 0
      %s457 = sadd.s32 %s456, 1
      %s458 = scalar_select %p455, %s456, %s457
      %p461 = pneg %p455
      %p462 = scmp.eq.s32.totalorder %s37, 1
      %p463 = por %p461, %p462
      %p464 = scmp.ne.s32.totalorder %s456, %s459
      %p465 = scmp.eq.s32.totalorder %s37, 0
      %p466 = por %p464, %p465
      %p467 = scmp.ne.s32.totalorder %s456, %s459
      %p468 = scmp.eq.s32.totalorder %s42, 1
      %p469 = por %p467, %p468
      %p470 = scmp.ne.s32.totalorder %s459, %s460
      %p471 = scmp.eq.s32.totalorder %s42, 0
      %p472 = por %p470, %p471
      %p473 = scmp.ne.s32.totalorder %s459, %s460
      %p474 = scmp.eq.s32.totalorder %s43, 1
      %p475 = por %p473, %p474
      %p477 = scmp.ne.s32.totalorder %s460, %s476
      %p478 = scmp.eq.s32.totalorder %s43, 0
      %p479 = por %p477, %p478
      %p480 = scmp.le.s32.totalorder 1, %s37
      %p481 = scmp.lt.s32.totalorder %s37, 3
      %p482 = pnand %p480, %p481
      %p483 = pneg %p482
      // Predicated region
      $region9: #{tpu_custom_call.1} parent=5 // pred_check
        _
      $region10: #{tpu_custom_call.1} parent=5 // pred_check_branch
        %485 = sbr.rel (%p482) target = $region12
      $region11: #{tpu_custom_call.1} parent=5 // pred_region
        %s486 = ssub.s32 %s37, 1
        // Predicated region
        $region13: #{tpu_custom_call.1} parent=11 // pred_check
          %p487 = pneg %p110
        $region14: #{tpu_custom_call.1} parent=11 // pred_check_branch
          %489 = sbr.rel (%p487) target = $region16
        $region15: #{tpu_custom_call.1} parent=11 // pred_region
          %s491 = ssub.s32 512, 512
          %492 = vsyncadd [#allocation7], %s491
          %s493 = sshll.u32 [#allocation6], 4
          %s494 = int_to_ptr.vmem [resolvable:$true] %s493
          %499 = dma.hbm_to_vmem [thread:$0]  %s2, 512, %s494, [#allocation7], 128, 128, 8
        $region16: #{tpu_custom_call.1} parent=11 // pred_fallthru
          _
        // Predicated region
        $region17: #{tpu_custom_call.1} parent=11 // pred_check
          %p500 = pneg %p131
        $region18: #{tpu_custom_call.1} parent=11 // pred_check_branch
          %502 = sbr.rel (%p500) target = $region20
        $region19: #{tpu_custom_call.1} parent=11 // pred_region
          _
        $region20: #{tpu_custom_call.1} parent=11 // pred_fallthru
          _
        // Predicated region
        $region21: #{tpu_custom_call.1} parent=11 // pred_check
          %p503 = pneg %p152
        $region22: #{tpu_custom_call.1} parent=11 // pred_check_branch
          %505 = sbr.rel (%p503) target = $region24
        $region23: #{tpu_custom_call.1} parent=11 // pred_region
          %s507 = ssub.s32 512, 512
          %508 = vsyncadd [#allocation7], %s507
          %s509 = sshll.u32 [#allocation8], 4
          %s510 = int_to_ptr.vmem [resolvable:$true] %s509
          %515 = dma.hbm_to_vmem [thread:$0]  %s4, 512, %s510, [#allocation7], 128, 128, 8
        $region24: #{tpu_custom_call.1} parent=11 // pred_fallthru
          _
        // Predicated region
        $region25: #{tpu_custom_call.1} parent=11 // pred_check
          %p516 = pneg %p173
        $region26: #{tpu_custom_call.1} parent=11 // pred_check_branch
          %518 = sbr.rel (%p516) target = $region28
        $region27: #{tpu_custom_call.1} parent=11 // pred_region
          %s520 = ssub.s32 16, 16
          %521 = vsyncadd [#allocation10], %s520
          %s523 = sshll.u32 [#allocation9], 4
          %s524 = int_to_ptr.vmem [resolvable:$true] %s523
          %526 = dma.hbm_to_vmem [thread:$0]  %s5, 16, %s524, [#allocation10]
        $region28: #{tpu_custom_call.1} parent=11 // pred_fallthru
          _
        // Predicated region
        $region29: #{tpu_custom_call.1} parent=11 // pred_check
          %p527 = pneg %p194
        $region30: #{tpu_custom_call.1} parent=11 // pred_check_branch
          %529 = sbr.rel (%p527) target = $region32
        $region31: #{tpu_custom_call.1} parent=11 // pred_region
          _
        $region32: #{tpu_custom_call.1} parent=11 // pred_fallthru
          _
        // Predicated region
        $region33: #{tpu_custom_call.1} parent=11 // pred_check
          %p530 = pneg %p215
        $region34: #{tpu_custom_call.1} parent=11 // pred_check_branch
          %532 = sbr.rel (%p530) target = $region36
        $region35: #{tpu_custom_call.1} parent=11 // pred_region
          _
        $region36: #{tpu_custom_call.1} parent=11 // pred_fallthru
          _
        // Predicated region
        $region37: #{tpu_custom_call.1} parent=11 // pred_check
          %p533 = pneg %p236
        $region38: #{tpu_custom_call.1} parent=11 // pred_check_branch
          %535 = sbr.rel (%p533) target = $region40
        $region39: #{tpu_custom_call.1} parent=11 // pred_region
          %s537 = ssub.s32 512, 512
          %538 = vsyncadd [#allocation10], %s537
          %s539 = sshll.u32 [#allocation11], 4
          %s540 = int_to_ptr.vmem [resolvable:$true] %s539
          %545 = dma.hbm_to_vmem [thread:$0]  %s8, 512, %s540, [#allocation10], 128, 128, 8
        $region40: #{tpu_custom_call.1} parent=11 // pred_fallthru
          _
        // Predicated region
        $region41: #{tpu_custom_call.1} parent=11 // pred_check
          %p546 = pneg %p257
        $region42: #{tpu_custom_call.1} parent=11 // pred_check_branch
          %548 = sbr.rel (%p546) target = $region44
        $region43: #{tpu_custom_call.1} parent=11 // pred_region
          %s550 = ssub.s32 16, 16
          %551 = vsyncadd [#allocation13], %s550
          %s553 = sshll.u32 [#allocation12], 4
          %s554 = int_to_ptr.vmem [resolvable:$true] %s553
          %556 = dma.hbm_to_vmem [thread:$0]  %s9, 16, %s554, [#allocation13]
        $region44: #{tpu_custom_call.1} parent=11 // pred_fallthru
          _
        // Predicated region
        $region45: #{tpu_custom_call.1} parent=11 // pred_check
          %p557 = pneg %p278
        $region46: #{tpu_custom_call.1} parent=11 // pred_check_branch
          %559 = sbr.rel (%p557) target = $region48
        $region47: #{tpu_custom_call.1} parent=11 // pred_region
          %s561 = ssub.s32 512, 512
          %562 = vsyncadd [#allocation13], %s561
          %s563 = sshll.u32 [#allocation14], 4
          %s564 = int_to_ptr.vmem [resolvable:$true] %s563
          %569 = dma.hbm_to_vmem [thread:$0]  %s10, 512, %s564, [#allocation13], 128, 128, 8
        $region48: #{tpu_custom_call.1} parent=11 // pred_fallthru
          _
        // Predicated region
        $region49: #{tpu_custom_call.1} parent=11 // pred_check
          %p570 = pneg %p299
        $region50: #{tpu_custom_call.1} parent=11 // pred_check_branch
          %572 = sbr.rel (%p570) target = $region52
        $region51: #{tpu_custom_call.1} parent=11 // pred_region
          %s574 = ssub.s32 16, 16
          %575 = vsyncadd [#allocation16], %s574
          %s577 = sshll.u32 [#allocation15], 4
          %s578 = int_to_ptr.vmem [resolvable:$true] %s577
          %580 = dma.hbm_to_vmem [thread:$0]  %s11, 16, %s578, [#allocation16]
        $region52: #{tpu_custom_call.1} parent=11 // pred_fallthru
          _
        // Predicated region
        $region53: #{tpu_custom_call.1} parent=11 // pred_check
          %p581 = pneg %p320
        $region54: #{tpu_custom_call.1} parent=11 // pred_check_branch
          %583 = sbr.rel (%p581) target = $region56
        $region55: #{tpu_custom_call.1} parent=11 // pred_region
          %s585 = ssub.s32 512, 512
          %586 = vsyncadd [#allocation16], %s585
          %s587 = sshll.u32 [#allocation17], 4
          %s588 = int_to_ptr.vmem [resolvable:$true] %s587
          %593 = dma.hbm_to_vmem [thread:$0]  %s12, 512, %s588, [#allocation16], 128, 128, 8
        $region56: #{tpu_custom_call.1} parent=11 // pred_fallthru
          _
        // Predicated region
        $region57: #{tpu_custom_call.1} parent=11 // pred_check
          %p594 = pneg %p341
        $region58: #{tpu_custom_call.1} parent=11 // pred_check_branch
          %596 = sbr.rel (%p594) target = $region60
        $region59: #{tpu_custom_call.1} parent=11 // pred_region
          %s598 = ssub.s32 16, 16
          %599 = vsyncadd [#allocation19], %s598
          %s601 = sshll.u32 [#allocation18], 4
          %s602 = int_to_ptr.vmem [resolvable:$true] %s601
          %604 = dma.hbm_to_vmem [thread:$0]  %s13, 16, %s602, [#allocation19]
        $region60: #{tpu_custom_call.1} parent=11 // pred_fallthru
          _
        // Predicated region
        $region61: #{tpu_custom_call.1} parent=11 // pred_check
          %p605 = pneg %p362
        $region62: #{tpu_custom_call.1} parent=11 // pred_check_branch
          %607 = sbr.rel (%p605) target = $region64
        $region63: #{tpu_custom_call.1} parent=11 // pred_region
          %s609 = ssub.s32 512, 512
          %610 = vsyncadd [#allocation19], %s609
          %s611 = sshll.u32 [#allocation20], 4
          %s612 = int_to_ptr.vmem [resolvable:$true] %s611
          %617 = dma.hbm_to_vmem [thread:$0]  %s14, 512, %s612, [#allocation19], 128, 128, 8
        $region64: #{tpu_custom_call.1} parent=11 // pred_fallthru
          _
        // Predicated region
        $region65: #{tpu_custom_call.1} parent=11 // pred_check
          %p618 = pneg %p383
        $region66: #{tpu_custom_call.1} parent=11 // pred_check_branch
          %620 = sbr.rel (%p618) target = $region68
        $region67: #{tpu_custom_call.1} parent=11 // pred_region
          %s622 = ssub.s32 512, 512
          %623 = vsyncadd [#allocation22], %s622
          %s624 = sshll.u32 [#allocation21], 4
          %s625 = int_to_ptr.vmem [resolvable:$true] %s624
          %630 = dma.hbm_to_vmem [thread:$0]  %s15, 512, %s625, [#allocation22], 128, 128, 8
        $region68: #{tpu_custom_call.1} parent=11 // pred_fallthru
          _
        // Predicated region
        $region69: #{tpu_custom_call.1} parent=11 // pred_check
          %p631 = pneg %p404
        $region70: #{tpu_custom_call.1} parent=11 // pred_check_branch
          %633 = sbr.rel (%p631) target = $region72
        $region71: #{tpu_custom_call.1} parent=11 // pred_region
          %s635 = ssub.s32 16, 16
          %636 = vsyncadd [#allocation22], %s635
          %s638 = sshll.u32 [#allocation23], 4
          %s639 = int_to_ptr.vmem [resolvable:$true] %s638
          %641 = dma.hbm_to_vmem [thread:$0]  %s16, 16, %s639, [#allocation22]
        $region72: #{tpu_custom_call.1} parent=11 // pred_fallthru
          _
        // Predicated region
        $region73: #{tpu_custom_call.1} parent=11 // pred_check
          %p642 = pneg %p425
        $region74: #{tpu_custom_call.1} parent=11 // pred_check_branch
          %644 = sbr.rel (%p642) target = $region76
        $region75: #{tpu_custom_call.1} parent=11 // pred_region
          _
        $region76: #{tpu_custom_call.1} parent=11 // pred_fallthru
          _
        // Predicated region
        $region77: #{tpu_custom_call.1} parent=11 // pred_check
          %p645 = pneg %p446
        $region78: #{tpu_custom_call.1} parent=11 // pred_check_branch
          %647 = sbr.rel (%p645) target = $region80
        $region79: #{tpu_custom_call.1} parent=11 // pred_region
          _
        $region80: #{tpu_custom_call.1} parent=11 // pred_fallthru
          _
      $region12: #{tpu_custom_call.1} parent=5 // pred_fallthru
        _
      %p648 = scmp.lt.s32.totalorder %s37, 2
      // Predicated region
      $region81: #{tpu_custom_call.1} parent=5 // pred_check
        %p649 = pneg %p648
      $region82: #{tpu_custom_call.1} parent=5 // pred_check_branch
        %651 = sbr.rel (%p649) target = $region84
      $region83: #{tpu_custom_call.1} parent=5 // pred_region
        // Predicated region
        $region85: #{tpu_custom_call.1} parent=83 // pred_check
          %p652 = pneg %p57
        $region86: #{tpu_custom_call.1} parent=83 // pred_check_branch
          %654 = sbr.rel (%p652) target = $region88
        $region87: #{tpu_custom_call.1} parent=83 // pred_region
          %s655 = smul.u32 2, %s37
          %p656 = scmp.lt.s32.totalorder %s655, 3
          %s657 = scalar_select %p656, %s655, 3
          %s658 = smul.addr %s657, 2
          %s659 = smul.addr %s658, 8
          %s660 = scalar_lea.vmem %s0, %s659
          %s661 = smul.u32 2, %s37
        $region88: #{tpu_custom_call.1} parent=83 // pred_fallthru
          _
        // Predicated region
        $region89: #{tpu_custom_call.1} parent=83 // pred_check
          %p662 = pneg %p83
        $region90: #{tpu_custom_call.1} parent=83 // pred_check_branch
          %664 = sbr.rel (%p662) target = $region92
        $region91: #{tpu_custom_call.1} parent=83 // pred_region
          %s665 = sand.u32 %s73, 1
          %s666 = scalar_lea.sflag [#allocation4], %s665
          %s667 = sand.u32 %s73, 1
          %s668 = smul.addr %s667, 16
          %s669 = scalar_lea.vmem [#allocation3], %s668
          %s670 = smul.u32 2, %s37
          %s672 = ssub.s32 256, 256
          %673 = vsyncadd %s666, %s672
          %s674 = smul.addr %s670, 128
          %s675 = scalar_lea.hbm %s1, %s674
          %s676 = sshll.u32 %s669, 4
          %s677 = int_to_ptr.vmem [resolvable:$true] %s676
          %682 = dma.hbm_to_vmem [thread:$0]  %s675, 256, %s677, %s666, 128, 128, 8
        $region92: #{tpu_custom_call.1} parent=83 // pred_fallthru
          _
      $region84: #{tpu_custom_call.1} parent=5 // pred_fallthru
        _
      %p683 = scmp.le.s32.totalorder 1, %s37
      %p684 = scmp.lt.s32.totalorder %s37, 3
      %p685 = pnand %p683, %p684
      %p686 = pneg %p685
      // Predicated region
      $region93: #{tpu_custom_call.1} parent=5 // pred_check
        _
      $region94: #{tpu_custom_call.1} parent=5 // pred_check_branch
        %688 = sbr.rel (%p685) target = $region96
      $region95: #{tpu_custom_call.1} parent=5 // pred_region
        %s689 = ssub.s32 %s37, 1
        %s690 = sand.u32 %s76, 1
        %s691 = scalar_lea.sflag [#allocation4], %s690
        %s692 = sand.u32 %s76, 1
        %s693 = smul.addr %s692, 16
        %s694 = scalar_lea.vmem [#allocation3], %s693
        // Predicated region
        $region97: #{tpu_custom_call.1} parent=95 // pred_check
          %p695 = pneg %p89
        $region98: #{tpu_custom_call.1} parent=95 // pred_check_branch
          %697 = sbr.rel (%p695) target = $region100
        $region99: #{tpu_custom_call.1} parent=95 // pred_region
          %698 = dma.done %s691, 256
        $region100: #{tpu_custom_call.1} parent=95 // pred_fallthru
          _
        // Predicated region
        $region101: #{tpu_custom_call.1} parent=95 // pred_check
          %p699 = pneg %p110
        $region102: #{tpu_custom_call.1} parent=95 // pred_check_branch
          %701 = sbr.rel (%p699) target = $region104
        $region103: #{tpu_custom_call.1} parent=95 // pred_region
          %702 = dma.done [#allocation7], 512
        $region104: #{tpu_custom_call.1} parent=95 // pred_fallthru
          _
        // Predicated region
        $region105: #{tpu_custom_call.1} parent=95 // pred_check
          %p703 = pneg %p152
        $region106: #{tpu_custom_call.1} parent=95 // pred_check_branch
          %705 = sbr.rel (%p703) target = $region108
        $region107: #{tpu_custom_call.1} parent=95 // pred_region
          %706 = dma.done [#allocation7], 512
        $region108: #{tpu_custom_call.1} parent=95 // pred_fallthru
          _
        // Predicated region
        $region109: #{tpu_custom_call.1} parent=95 // pred_check
          %p707 = pneg %p173
        $region110: #{tpu_custom_call.1} parent=95 // pred_check_branch
          %709 = sbr.rel (%p707) target = $region112
        $region111: #{tpu_custom_call.1} parent=95 // pred_region
          %710 = dma.done [#allocation10], 16
        $region112: #{tpu_custom_call.1} parent=95 // pred_fallthru
          _
        // Predicated region
        $region113: #{tpu_custom_call.1} parent=95 // pred_check
          %p711 = pneg %p236
        $region114: #{tpu_custom_call.1} parent=95 // pred_check_branch
          %713 = sbr.rel (%p711) target = $region116
        $region115: #{tpu_custom_call.1} parent=95 // pred_region
          %714 = dma.done [#allocation10], 512
        $region116: #{tpu_custom_call.1} parent=95 // pred_fallthru
          _
        // Predicated region
        $region117: #{tpu_custom_call.1} parent=95 // pred_check
          %p715 = pneg %p257
        $region118: #{tpu_custom_call.1} parent=95 // pred_check_branch
          %717 = sbr.rel (%p715) target = $region120
        $region119: #{tpu_custom_call.1} parent=95 // pred_region
          %718 = dma.done [#allocation13], 16
        $region120: #{tpu_custom_call.1} parent=95 // pred_fallthru
          _
        // Predicated region
        $region121: #{tpu_custom_call.1} parent=95 // pred_check
          %p719 = pneg %p278
        $region122: #{tpu_custom_call.1} parent=95 // pred_check_branch
          %721 = sbr.rel (%p719) target = $region124
        $region123: #{tpu_custom_call.1} parent=95 // pred_region
          %722 = dma.done [#allocation13], 512
        $region124: #{tpu_custom_call.1} parent=95 // pred_fallthru
          _
        // Predicated region
        $region125: #{tpu_custom_call.1} parent=95 // pred_check
          %p723 = pneg %p299
        $region126: #{tpu_custom_call.1} parent=95 // pred_check_branch
          %725 = sbr.rel (%p723) target = $region128
        $region127: #{tpu_custom_call.1} parent=95 // pred_region
          %726 = dma.done [#allocation16], 16
        $region128: #{tpu_custom_call.1} parent=95 // pred_fallthru
          _
        // Predicated region
        $region129: #{tpu_custom_call.1} parent=95 // pred_check
          %p727 = pneg %p320
        $region130: #{tpu_custom_call.1} parent=95 // pred_check_branch
          %729 = sbr.rel (%p727) target = $region132
        $region131: #{tpu_custom_call.1} parent=95 // pred_region
          %730 = dma.done [#allocation16], 512
        $region132: #{tpu_custom_call.1} parent=95 // pred_fallthru
          _
        // Predicated region
        $region133: #{tpu_custom_call.1} parent=95 // pred_check
          %p731 = pneg %p341
        $region134: #{tpu_custom_call.1} parent=95 // pred_check_branch
          %733 = sbr.rel (%p731) target = $region136
        $region135: #{tpu_custom_call.1} parent=95 // pred_region
          %734 = dma.done [#allocation19], 16
        $region136: #{tpu_custom_call.1} parent=95 // pred_fallthru
          _
        // Predicated region
        $region137: #{tpu_custom_call.1} parent=95 // pred_check
          %p735 = pneg %p362
        $region138: #{tpu_custom_call.1} parent=95 // pred_check_branch
          %737 = sbr.rel (%p735) target = $region140
        $region139: #{tpu_custom_call.1} parent=95 // pred_region
          %738 = dma.done [#allocation19], 512
        $region140: #{tpu_custom_call.1} parent=95 // pred_fallthru
          _
        // Predicated region
        $region141: #{tpu_custom_call.1} parent=95 // pred_check
          %p739 = pneg %p383
        $region142: #{tpu_custom_call.1} parent=95 // pred_check_branch
          %741 = sbr.rel (%p739) target = $region144
        $region143: #{tpu_custom_call.1} parent=95 // pred_region
          %742 = dma.done [#allocation22], 512
        $region144: #{tpu_custom_call.1} parent=95 // pred_fallthru
          _
        // Predicated region
        $region145: #{tpu_custom_call.1} parent=95 // pred_check
          %p743 = pneg %p404
        $region146: #{tpu_custom_call.1} parent=95 // pred_check_branch
          %745 = sbr.rel (%p743) target = $region148
        $region147: #{tpu_custom_call.1} parent=95 // pred_region
          %746 = dma.done [#allocation22], 16
        $region148: #{tpu_custom_call.1} parent=95 // pred_fallthru
          _
        %s747 = smul.u32 2, %s42
        %p748 = scmp.lt.s32.totalorder %s747, 3
        %s749 = scalar_select %p748, %s747, 3
        %s750 = smul.addr %s749, 2
        %s751 = smul.addr %s750, 8
        %s752 = scalar_lea.vmem %s0, %s751
        %p753 = pneg %p63
        %p754 = pneg %p60
        %s755 = sand.u32 %s76, 1
        %s756 = scalar_lea.sflag [#allocation4], %s755
        %s757 = sand.u32 %s76, 1
        %s758 = smul.addr %s757, 16
        %s759 = scalar_lea.vmem [#allocation3], %s758
        %p760 = pneg %p89
        %p761 = pneg %p86
        %p762 = pneg %p110
        %p763 = pneg %p107
        %p764 = pneg %p131
        %p765 = pneg %p128
        %p766 = pneg %p152
        %p767 = pneg %p149
        %p768 = pneg %p173
        %p769 = pneg %p170
        %p770 = pneg %p194
        %p771 = pneg %p191
        %p772 = pneg %p215
        %p773 = pneg %p212
        %p774 = pneg %p236
        %p775 = pneg %p233
        %p776 = pneg %p257
        %p777 = pneg %p254
        %p778 = pneg %p278
        %p779 = pneg %p275
        %p780 = pneg %p299
        %p781 = pneg %p296
        %p782 = pneg %p320
        %p783 = pneg %p317
        %p784 = pneg %p341
        %p785 = pneg %p338
        %p786 = pneg %p362
        %p787 = pneg %p359
        %p788 = pneg %p383
        %p789 = pneg %p380
        %p790 = pneg %p404
        %p791 = pneg %p401
        %p792 = pneg %p425
        %p793 = pneg %p422
        %p794 = pneg %p446
        %p795 = pneg %p443
        %p796 = pneg %p472
        %p797 = pneg %p469
        %s798 = sand.u32 %s459, 1
        %s799 = scalar_lea.sflag [#allocation5], %s798
        %s800 = sand.u32 %s459, 1
        %s801 = smul.addr %s800, 2
        %s802 = scalar_lea.vmem [#allocation24], %s801
        %s803 = smul.u32 2, %s42
        %p804 = scmp.lt.s32.totalorder %s803, 3
        %s805 = scalar_select %p804, %s803, 3
        %s806 = smul.addr %s805, 2
        %s807 = smul.addr %s806, 8
        %s808 = scalar_lea.vmem %s0, %s807
        %s809 = smul.u32 2, %s42
        %s810 = smul.u32 2, %s42
        %v811 = vld [vmem:[%s808] sm:$0xff]
        %v812 = vld [vmem:[%s808 + $0x8] sm:$0xff]
        %v813 = vld [vmem:[%s808 + $0x10] sm:$0xff]
        %v814 = vld [vmem:[%s808 + $0x18] sm:$0xff]
        %v815 = vld [vmem:[%s694] sm:$0xff]
        %v816 = vld [vmem:[%s694 + $0x8] sm:$0xff]
        %v817 = vld [vmem:[#allocation6] sm:$0xff]
        %v818 = vld [vmem:[#allocation6 + $0x8] sm:$0xff]
        %v819 = vld [vmem:[#allocation6 + $0x10] sm:$0xff]
        %v820 = vld [vmem:[#allocation6 + $0x18] sm:$0xff]
        %v821 = vld [vmem:[%s3] sm:$0x1]
        %v823 = vlaneseq
        %v824 = vshrl.u32 %v823, 7
        %v825 = vsub.s32 0, %v824
        %v826 = vrot.slane %v821, %v825
        %vm828 = vcmask 261120
        %v830 = vsel %vm828, %v811, 0
        %v833 = vsel %vm828, %v812, 0
        %v836 = vsel %vm828, %v813, 0
        %v839 = vsel %vm828, %v814, 0
        %841 = vmatprep.subr.mxu0 0.0
        %842 = vmatpush1.msra.mxu0 0.0
        %843 = vmatprep.subr.mxu0 0.0
        %844 = vmatpush1.msra.mxu0 0.0
        %845 = vmatprep.subr.mxu0 0.0
        %846 = vmatpush1.msra.mxu0 0.0
        %847 = vmatprep.subr.mxu0 0.0
        %848 = vmatpush1.msra.mxu0 0.0
        %849 = vmatprep.subr.mxu0 0.0
        %850 = vmatpush1.msra.mxu0 0.0
        %851 = vmatprep.subr.mxu0 0.0
        %852 = vmatpush1.msra.mxu0 0.0
        %853 = vmatprep.subr.mxu0 0.0
        %854 = vmatpush1.msra.mxu0 0.0
        %855 = vmatprep.subr.mxu0 0.0
        %856 = vmatpush1.msra.mxu0 0.0
        %857 = vmatprep.subr.mxu0 0.0
        %858 = vmatpush1.msra.mxu0 0.0
        %859 = vmatprep.subr.mxu0 0.0
        %860 = vmatpush1.msra.mxu0 0.0
        %861 = vmatprep.subr.mxu0 0.0
        %862 = vmatpush1.msra.mxu0 0.0
        %863 = vmatprep.subr.mxu0 0.0
        %864 = vmatpush1.msra.mxu0 0.0
        %865 = vmatprep.subr.mxu0 0.0
        %866 = vmatpush1.msra.mxu0 %v820
        %867 = vmatprep.subr.mxu0 0.0
        %868 = vmatpush1.msra.mxu0 %v819
        %869 = vmatprep.subr.mxu0 0.0
        %870 = vmatpush1.msra.mxu0 %v818
        %871 = vmatprep.subr.mxu0 0.0
        %872 = vmatpush1.msra.mxu0 %v817
        %873 = vmatprep.subr.mxu0 0.0
        %874 = vmatpush2.msra.mxu0 0.0
        %875 = vmatprep.subr.mxu0 0.0
        %876 = vmatpush2.msra.mxu0 0.0
        %877 = vmatprep.subr.mxu0 0.0
        %878 = vmatpush2.msra.mxu0 0.0
        %879 = vmatprep.subr.mxu0 0.0
        %880 = vmatpush2.msra.mxu0 0.0
        %881 = vmatprep.subr.mxu0 0.0
        %882 = vmatpush2.msra.mxu0 0.0
        %883 = vmatprep.subr.mxu0 0.0
        %884 = vmatpush2.msra.mxu0 0.0
        %885 = vmatprep.subr.mxu0 0.0
        %886 = vmatpush2.msra.mxu0 0.0
        %887 = vmatprep.subr.mxu0 0.0
        %888 = vmatpush2.msra.mxu0 0.0
        %889 = vmatprep.subr.mxu0 0.0
        %890 = vmatpush2.msra.mxu0 0.0
        %891 = vmatprep.subr.mxu0 0.0
        %892 = vmatpush2.msra.mxu0 0.0
        %893 = vmatprep.subr.mxu0 0.0
        %894 = vmatpush2.msra.mxu0 0.0
        %895 = vmatprep.subr.mxu0 0.0
        %896 = vmatpush2.msra.mxu0 0.0
        %897 = vmatprep.subr.mxu0 0.0
        %898 = vmatpush2.msra.mxu0 0.0
        %899 = vmatprep.subr.mxu0 0.0
        %900 = vmatpush2.msra.mxu0 0.0
        %901 = vmatprep.subr.mxu0 0.0
        %902 = vmatpush2.msra.mxu0 0.0
        %903 = vmatprep.subr.mxu0 0.0
        %904 = vmatpush2.msra.mxu0 0.0
        %905 = vmatprep.mubr.f32.mxu0 0.0
        %906 = vmatmul.mubr.f32.gmra.mxu0 %v830
        %v907 = vpop.f32.mrf.mxu0
        %v908 = vadd.f32 %v826, %v907
        %v909 = vpop.f32.mrf.mxu0
        %910 = vmatprep.mubr.f32.mxu0 0.0
        %911 = vmatmul.mubr.f32.gmra.mxu0 %v833
        %v912 = vpop.f32.mrf.mxu0
        %v913 = vadd.f32 %v826, %v912
        %v914 = vpop.f32.mrf.mxu0
        %915 = vmatprep.mubr.f32.mxu0 0.0
        %916 = vmatmul.mubr.f32.gmra.mxu0 %v836
        %v917 = vpop.f32.mrf.mxu0
        %v918 = vadd.f32 %v826, %v917
        %v919 = vpop.f32.mrf.mxu0
        %920 = vmatprep.mubr.f32.mxu0 0.0
        %921 = vmatmul.mubr.f32.gmra.mxu0 %v839
        %v922 = vpop.f32.mrf.mxu0
        %v923 = vadd.f32 %v826, %v922
        %v924 = vpop.f32.mrf.mxu0
        %925 = vdwg.mxu0
        %v926 = vld [vmem:[#allocation8] sm:$0xff]
        %v927 = vld [vmem:[#allocation8 + $0x8] sm:$0xff]
        %v928 = vld [vmem:[#allocation8 + $0x10] sm:$0xff]
        %v929 = vld [vmem:[#allocation8 + $0x18] sm:$0xff]
        %v930 = vld [vmem:[#allocation9] sm:$0x1]
        %v932 = vlaneseq
        %v933 = vshrl.u32 %v932, 7
        %v934 = vsub.s32 0, %v933
        %v935 = vrot.slane %v930, %v934
        %v938 = vsel %vm828, %v815, 0
        %v941 = vsel %vm828, %v816, 0
        %943 = vmatprep.subr.mxu0 0.0
        %944 = vmatpush1.msra.mxu0 0.0
        %945 = vmatprep.subr.mxu0 0.0
        %946 = vmatpush1.msra.mxu0 0.0
        %947 = vmatprep.subr.mxu0 0.0
        %948 = vmatpush1.msra.mxu0 0.0
        %949 = vmatprep.subr.mxu0 0.0
        %950 = vmatpush1.msra.mxu0 0.0
        %951 = vmatprep.subr.mxu0 0.0
        %952 = vmatpush1.msra.mxu0 0.0
        %953 = vmatprep.subr.mxu0 0.0
        %954 = vmatpush1.msra.mxu0 0.0
        %955 = vmatprep.subr.mxu0 0.0
        %956 = vmatpush1.msra.mxu0 0.0
        %957 = vmatprep.subr.mxu0 0.0
        %958 = vmatpush1.msra.mxu0 0.0
        %959 = vmatprep.subr.mxu0 0.0
        %960 = vmatpush1.msra.mxu0 0.0
        %961 = vmatprep.subr.mxu0 0.0
        %962 = vmatpush1.msra.mxu0 0.0
        %963 = vmatprep.subr.mxu0 0.0
        %964 = vmatpush1.msra.mxu0 0.0
        %965 = vmatprep.subr.mxu0 0.0
        %966 = vmatpush1.msra.mxu0 0.0
        %967 = vmatprep.subr.mxu0 0.0
        %968 = vmatpush1.msra.mxu0 %v929
        %969 = vmatprep.subr.mxu0 0.0
        %970 = vmatpush1.msra.mxu0 %v928
        %971 = vmatprep.subr.mxu0 0.0
        %972 = vmatpush1.msra.mxu0 %v927
        %973 = vmatprep.subr.mxu0 0.0
        %974 = vmatpush1.msra.mxu0 %v926
        %975 = vmatprep.subr.mxu0 0.0
        %976 = vmatpush2.msra.mxu0 0.0
        %977 = vmatprep.subr.mxu0 0.0
        %978 = vmatpush2.msra.mxu0 0.0
        %979 = vmatprep.subr.mxu0 0.0
        %980 = vmatpush2.msra.mxu0 0.0
        %981 = vmatprep.subr.mxu0 0.0
        %982 = vmatpush2.msra.mxu0 0.0
        %983 = vmatprep.subr.mxu0 0.0
        %984 = vmatpush2.msra.mxu0 0.0
        %985 = vmatprep.subr.mxu0 0.0
        %986 = vmatpush2.msra.mxu0 0.0
        %987 = vmatprep.subr.mxu0 0.0
        %988 = vmatpush2.msra.mxu0 0.0
        %989 = vmatprep.subr.mxu0 0.0
        %990 = vmatpush2.msra.mxu0 0.0
        %991 = vmatprep.subr.mxu0 0.0
        %992 = vmatpush2.msra.mxu0 0.0
        %993 = vmatprep.subr.mxu0 0.0
        %994 = vmatpush2.msra.mxu0 0.0
        %995 = vmatprep.subr.mxu0 0.0
        %996 = vmatpush2.msra.mxu0 0.0
        %997 = vmatprep.subr.mxu0 0.0
        %998 = vmatpush2.msra.mxu0 0.0
        %999 = vmatprep.subr.mxu0 0.0
        %1000 = vmatpush2.msra.mxu0 0.0
        %1001 = vmatprep.subr.mxu0 0.0
        %1002 = vmatpush2.msra.mxu0 0.0
        %1003 = vmatprep.subr.mxu0 0.0
        %1004 = vmatpush2.msra.mxu0 0.0
        %1005 = vmatprep.subr.mxu0 0.0
        %1006 = vmatpush2.msra.mxu0 0.0
        %1007 = vmatprep.mubr.f32.mxu0 0.0
        %1008 = vmatmul.mubr.f32.gmra.mxu0 %v938
        %v1009 = vpop.f32.mrf.mxu0
        %v1010 = vadd.f32 %v935, %v1009
        %v1011 = vpop.f32.mrf.mxu0
        %1012 = vmatprep.mubr.f32.mxu0 0.0
        %1013 = vmatmul.mubr.f32.gmra.mxu0 %v941
        %v1014 = vpop.f32.mrf.mxu0
        %v1015 = vadd.f32 %v935, %v1014
        %v1016 = vpop.f32.mrf.mxu0
        %1017 = vdwg.mxu0
        %v1018 = vld [vmem:[%s6] sm:$0xff]
        %v1019 = vld [vmem:[%s6 + $0x8] sm:$0xff]
        %v1020 = vld [vmem:[%s6 + $0x10] sm:$0xff]
        %v1021 = vld [vmem:[%s6 + $0x18] sm:$0xff]
        %v1023 = vsel %vm828, %v908, 0
        %v1026 = vsel %vm828, %v913, 0
        %v1029 = vsel %vm828, %v918, 0
        %v1032 = vsel %vm828, %v923, 0
        %1034 = vmatprep.subr.mxu0 0.0
        %1035 = vmatpush1.msra.mxu0 0.0
        %1036 = vmatprep.subr.mxu0 0.0
        %1037 = vmatpush1.msra.mxu0 0.0
        %1038 = vmatprep.subr.mxu0 0.0
        %1039 = vmatpush1.msra.mxu0 0.0
        %1040 = vmatprep.subr.mxu0 0.0
        %1041 = vmatpush1.msra.mxu0 0.0
        %1042 = vmatprep.subr.mxu0 0.0
        %1043 = vmatpush1.msra.mxu0 0.0
        %1044 = vmatprep.subr.mxu0 0.0
        %1045 = vmatpush1.msra.mxu0 0.0
        %1046 = vmatprep.subr.mxu0 0.0
        %1047 = vmatpush1.msra.mxu0 0.0
        %1048 = vmatprep.subr.mxu0 0.0
        %1049 = vmatpush1.msra.mxu0 0.0
        %1050 = vmatprep.subr.mxu0 0.0
        %1051 = vmatpush1.msra.mxu0 0.0
        %1052 = vmatprep.subr.mxu0 0.0
        %1053 = vmatpush1.msra.mxu0 0.0
        %1054 = vmatprep.subr.mxu0 0.0
        %1055 = vmatpush1.msra.mxu0 0.0
        %1056 = vmatprep.subr.mxu0 0.0
        %1057 = vmatpush1.msra.mxu0 0.0
        %1058 = vmatprep.subr.mxu0 0.0
        %1059 = vmatpush1.msra.mxu0 %v1021
        %1060 = vmatprep.subr.mxu0 0.0
        %1061 = vmatpush1.msra.mxu0 %v1020
        %1062 = vmatprep.subr.mxu0 0.0
        %1063 = vmatpush1.msra.mxu0 %v1019
        %1064 = vmatprep.subr.mxu0 0.0
        %1065 = vmatpush1.msra.mxu0 %v1018
        %1066 = vmatprep.subr.mxu0 0.0
        %1067 = vmatpush2.msra.mxu0 0.0
        %1068 = vmatprep.subr.mxu0 0.0
        %1069 = vmatpush2.msra.mxu0 0.0
        %1070 = vmatprep.subr.mxu0 0.0
        %1071 = vmatpush2.msra.mxu0 0.0
        %1072 = vmatprep.subr.mxu0 0.0
        %1073 = vmatpush2.msra.mxu0 0.0
        %1074 = vmatprep.subr.mxu0 0.0
        %1075 = vmatpush2.msra.mxu0 0.0
        %1076 = vmatprep.subr.mxu0 0.0
        %1077 = vmatpush2.msra.mxu0 0.0
        %1078 = vmatprep.subr.mxu0 0.0
        %1079 = vmatpush2.msra.mxu0 0.0
        %1080 = vmatprep.subr.mxu0 0.0
        %1081 = vmatpush2.msra.mxu0 0.0
        %1082 = vmatprep.subr.mxu0 0.0
        %1083 = vmatpush2.msra.mxu0 0.0
        %1084 = vmatprep.subr.mxu0 0.0
        %1085 = vmatpush2.msra.mxu0 0.0
        %1086 = vmatprep.subr.mxu0 0.0
        %1087 = vmatpush2.msra.mxu0 0.0
        %1088 = vmatprep.subr.mxu0 0.0
        %1089 = vmatpush2.msra.mxu0 0.0
        %1090 = vmatprep.subr.mxu0 0.0
        %1091 = vmatpush2.msra.mxu0 0.0
        %1092 = vmatprep.subr.mxu0 0.0
        %1093 = vmatpush2.msra.mxu0 0.0
        %1094 = vmatprep.subr.mxu0 0.0
        %1095 = vmatpush2.msra.mxu0 0.0
        %1096 = vmatprep.subr.mxu0 0.0
        %1097 = vmatpush2.msra.mxu0 0.0
        %1098 = vmatprep.mubr.f32.mxu0 0.0
        %1099 = vmatmul.mubr.f32.gmra.mxu0 %v1023
        %v1100 = vpop.f32.mrf.mxu0
        %v1101 = vadd.f32 0.0, %v1100
        %v1102 = vpop.f32.mrf.mxu0
        %1103 = vmatprep.mubr.f32.mxu0 0.0
        %1104 = vmatmul.mubr.f32.gmra.mxu0 %v1026
        %v1105 = vpop.f32.mrf.mxu0
        %v1106 = vadd.f32 0.0, %v1105
        %v1107 = vpop.f32.mrf.mxu0
        %1108 = vmatprep.mubr.f32.mxu0 0.0
        %1109 = vmatmul.mubr.f32.gmra.mxu0 %v1029
        %v1110 = vpop.f32.mrf.mxu0
        %v1111 = vadd.f32 0.0, %v1110
        %v1112 = vpop.f32.mrf.mxu0
        %1113 = vmatprep.mubr.f32.mxu0 0.0
        %1114 = vmatmul.mubr.f32.gmra.mxu0 %v1032
        %v1115 = vpop.f32.mrf.mxu0
        %v1116 = vadd.f32 0.0, %v1115
        %v1117 = vpop.f32.mrf.mxu0
        %1118 = vdwg.mxu0
        %v1119 = vld [vmem:[%s7] sm:$0xff]
        %v1120 = vld [vmem:[%s7 + $0x8] sm:$0xff]
        %v1121 = vld [vmem:[%s7 + $0x10] sm:$0xff]
        %v1122 = vld [vmem:[%s7 + $0x18] sm:$0xff]
        %v1124 = vsel %vm828, %v1010, 0
        %v1127 = vsel %vm828, %v1015, 0
        %1129 = vmatprep.subr.mxu0 0.0
        %1130 = vmatpush1.msra.mxu0 0.0
        %1131 = vmatprep.subr.mxu0 0.0
        %1132 = vmatpush1.msra.mxu0 0.0
        %1133 = vmatprep.subr.mxu0 0.0
        %1134 = vmatpush1.msra.mxu0 0.0
        %1135 = vmatprep.subr.mxu0 0.0
        %1136 = vmatpush1.msra.mxu0 0.0
        %1137 = vmatprep.subr.mxu0 0.0
        %1138 = vmatpush1.msra.mxu0 0.0
        %1139 = vmatprep.subr.mxu0 0.0
        %1140 = vmatpush1.msra.mxu0 0.0
        %1141 = vmatprep.subr.mxu0 0.0
        %1142 = vmatpush1.msra.mxu0 0.0
        %1143 = vmatprep.subr.mxu0 0.0
        %1144 = vmatpush1.msra.mxu0 0.0
        %1145 = vmatprep.subr.mxu0 0.0
        %1146 = vmatpush1.msra.mxu0 0.0
        %1147 = vmatprep.subr.mxu0 0.0
        %1148 = vmatpush1.msra.mxu0 0.0
        %1149 = vmatprep.subr.mxu0 0.0
        %1150 = vmatpush1.msra.mxu0 0.0
        %1151 = vmatprep.subr.mxu0 0.0
        %1152 = vmatpush1.msra.mxu0 0.0
        %1153 = vmatprep.subr.mxu0 0.0
        %1154 = vmatpush1.msra.mxu0 %v1122
        %1155 = vmatprep.subr.mxu0 0.0
        %1156 = vmatpush1.msra.mxu0 %v1121
        %1157 = vmatprep.subr.mxu0 0.0
        %1158 = vmatpush1.msra.mxu0 %v1120
        %1159 = vmatprep.subr.mxu0 0.0
        %1160 = vmatpush1.msra.mxu0 %v1119
        %1161 = vmatprep.subr.mxu0 0.0
        %1162 = vmatpush2.msra.mxu0 0.0
        %1163 = vmatprep.subr.mxu0 0.0
        %1164 = vmatpush2.msra.mxu0 0.0
        %1165 = vmatprep.subr.mxu0 0.0
        %1166 = vmatpush2.msra.mxu0 0.0
        %1167 = vmatprep.subr.mxu0 0.0
        %1168 = vmatpush2.msra.mxu0 0.0
        %1169 = vmatprep.subr.mxu0 0.0
        %1170 = vmatpush2.msra.mxu0 0.0
        %1171 = vmatprep.subr.mxu0 0.0
        %1172 = vmatpush2.msra.mxu0 0.0
        %1173 = vmatprep.subr.mxu0 0.0
        %1174 = vmatpush2.msra.mxu0 0.0
        %1175 = vmatprep.subr.mxu0 0.0
        %1176 = vmatpush2.msra.mxu0 0.0
        %1177 = vmatprep.subr.mxu0 0.0
        %1178 = vmatpush2.msra.mxu0 0.0
        %1179 = vmatprep.subr.mxu0 0.0
        %1180 = vmatpush2.msra.mxu0 0.0
        %1181 = vmatprep.subr.mxu0 0.0
        %1182 = vmatpush2.msra.mxu0 0.0
        %1183 = vmatprep.subr.mxu0 0.0
        %1184 = vmatpush2.msra.mxu0 0.0
        %1185 = vmatprep.subr.mxu0 0.0
        %1186 = vmatpush2.msra.mxu0 0.0
        %1187 = vmatprep.subr.mxu0 0.0
        %1188 = vmatpush2.msra.mxu0 0.0
        %1189 = vmatprep.subr.mxu0 0.0
        %1190 = vmatpush2.msra.mxu0 0.0
        %1191 = vmatprep.subr.mxu0 0.0
        %1192 = vmatpush2.msra.mxu0 0.0
        %1193 = vmatprep.mubr.f32.mxu0 0.0
        %1194 = vmatmul.mubr.f32.gmra.mxu0 %v1124
        %v1195 = vpop.f32.mrf.mxu0
        %v1196 = vadd.f32 0.0, %v1195
        %v1197 = vpop.f32.mrf.mxu0
        %1198 = vmatprep.mubr.f32.mxu0 0.0
        %1199 = vmatmul.mubr.f32.gmra.mxu0 %v1127
        %v1200 = vpop.f32.mrf.mxu0
        %v1201 = vadd.f32 0.0, %v1200
        %v1202 = vpop.f32.mrf.mxu0
        %1203 = vdwg.mxu0
        %1204 = vxpose.xlu0.b32.start [1/16] %v1101, 128
        %1205 = vxpose.xlu0.b32.cont [2/16] %v1106, 128
        %1206 = vxpose.xlu0.b32.cont [3/16] %v1111, 128
        %1207 = vxpose.xlu0.b32.cont [4/16] %v1116, 128
        %1208 = vxpose.xlu0.b32.cont [5/16] 0.0, 128
        %1209 = vxpose.xlu0.b32.cont [6/16] 0.0, 128
        %1210 = vxpose.xlu0.b32.cont [7/16] 0.0, 128
        %1211 = vxpose.xlu0.b32.cont [8/16] 0.0, 128
        %1212 = vxpose.xlu0.b32.cont [9/16] 0.0, 128
        %1213 = vxpose.xlu0.b32.cont [10/16] 0.0, 128
        %1214 = vxpose.xlu0.b32.cont [11/16] 0.0, 128
        %1215 = vxpose.xlu0.b32.cont [12/16] 0.0, 128
        %1216 = vxpose.xlu0.b32.cont [13/16] 0.0, 128
        %1217 = vxpose.xlu0.b32.cont [14/16] 0.0, 128
        %1218 = vxpose.xlu0.b32.cont [15/16] 0.0, 128
        %1219 = vxpose.xlu0.b32.end [16/16] 0.0, 128
        %v1220 = vpop.trf.xlu0
        %v1221 = vpop.trf.xlu0
        %v1222 = vpop.trf.xlu0
        %v1223 = vpop.trf.xlu0
        %v1224 = vpop.trf.xlu0
        %v1225 = vpop.trf.xlu0
        %v1226 = vpop.trf.xlu0
        %v1227 = vpop.trf.xlu0
        %v1228 = vpop.trf.xlu0
        %v1229 = vpop.trf.xlu0
        %v1230 = vpop.trf.xlu0
        %v1231 = vpop.trf.xlu0
        %v1232 = vpop.trf.xlu0
        %v1233 = vpop.trf.xlu0
        %v1234 = vpop.trf.xlu0
        %v1235 = vpop.trf.xlu0
        %1237 = vset.pattern.permute.xlu0 0
        %1238 = vperm.xlu0 %1237, %v1196
        %v1239 = vpop.permute.xlu0 %1238
        %v1241 = vlaneseq
        %v1242 = vshrl.u32 %v1241, 7
        %v1243 = vsub.s32 0, %v1242
        %v1244 = vrot.slane %v1220, %v1243
        %v1245 = vadd.f32 %v1239, %v1244
        %v1246 = vtanh.pop %v1245
        %v1247 = vmul.f32 %v1246, 1.442695
        %v1248 = vpow.pop %v1247
        %vm1249 = vcmask 130048
        %v1250 = vsel %vm1249, %v1248, 0.0
        %1251 = vadd.xlane.f32.xlu0 %v1250
        %v1252 = vpop.xlane.xlu0 %1251
        %v1253 = vrcp.pop %v1252
        %v1254 = vmul.f32 %v1248, %v1253
        %v1256 = vsel %vm1249, %v1254, 0
        %1258 = vmatprep.subr.mxu0 0.0
        %1259 = vmatpush1.msra.mxu0 0.0
        %1260 = vmatprep.subr.mxu0 0.0
        %1261 = vmatpush1.msra.mxu0 0.0
        %1262 = vmatprep.subr.mxu0 0.0
        %1263 = vmatpush1.msra.mxu0 0.0
        %1264 = vmatprep.subr.mxu0 0.0
        %1265 = vmatpush1.msra.mxu0 0.0
        %1266 = vmatprep.subr.mxu0 0.0
        %1267 = vmatpush1.msra.mxu0 0.0
        %1268 = vmatprep.subr.mxu0 0.0
        %1269 = vmatpush1.msra.mxu0 0.0
        %1270 = vmatprep.subr.mxu0 0.0
        %1271 = vmatpush1.msra.mxu0 0.0
        %1272 = vmatprep.subr.mxu0 0.0
        %1273 = vmatpush1.msra.mxu0 0.0
        %1274 = vmatprep.subr.mxu0 0.0
        %1275 = vmatpush1.msra.mxu0 0.0
        %1276 = vmatprep.subr.mxu0 0.0
        %1277 = vmatpush1.msra.mxu0 0.0
        %1278 = vmatprep.subr.mxu0 0.0
        %1279 = vmatpush1.msra.mxu0 0.0
        %1280 = vmatprep.subr.mxu0 0.0
        %1281 = vmatpush1.msra.mxu0 0.0
        %1282 = vmatprep.subr.mxu0 0.0
        %1283 = vmatpush1.msra.mxu0 0.0
        %1284 = vmatprep.subr.mxu0 0.0
        %1285 = vmatpush1.msra.mxu0 0.0
        %1286 = vmatprep.subr.mxu0 0.0
        %1287 = vmatpush1.msra.mxu0 %v913
        %1288 = vmatprep.subr.mxu0 0.0
        %1289 = vmatpush1.msra.mxu0 %v908
        %1290 = vmatprep.subr.mxu0 0.0
        %1291 = vmatpush2.msra.mxu0 0.0
        %1292 = vmatprep.subr.mxu0 0.0
        %1293 = vmatpush2.msra.mxu0 0.0
        %1294 = vmatprep.subr.mxu0 0.0
        %1295 = vmatpush2.msra.mxu0 0.0
        %1296 = vmatprep.subr.mxu0 0.0
        %1297 = vmatpush2.msra.mxu0 0.0
        %1298 = vmatprep.subr.mxu0 0.0
        %1299 = vmatpush2.msra.mxu0 0.0
        %1300 = vmatprep.subr.mxu0 0.0
        %1301 = vmatpush2.msra.mxu0 0.0
        %1302 = vmatprep.subr.mxu0 0.0
        %1303 = vmatpush2.msra.mxu0 0.0
        %1304 = vmatprep.subr.mxu0 0.0
        %1305 = vmatpush2.msra.mxu0 0.0
        %1306 = vmatprep.subr.mxu0 0.0
        %1307 = vmatpush2.msra.mxu0 0.0
        %1308 = vmatprep.subr.mxu0 0.0
        %1309 = vmatpush2.msra.mxu0 0.0
        %1310 = vmatprep.subr.mxu0 0.0
        %1311 = vmatpush2.msra.mxu0 0.0
        %1312 = vmatprep.subr.mxu0 0.0
        %1313 = vmatpush2.msra.mxu0 0.0
        %1314 = vmatprep.subr.mxu0 0.0
        %1315 = vmatpush2.msra.mxu0 0.0
        %1316 = vmatprep.subr.mxu0 0.0
        %1317 = vmatpush2.msra.mxu0 0.0
        %1318 = vmatprep.subr.mxu0 0.0
        %1319 = vmatpush2.msra.mxu0 0.0
        %1320 = vmatprep.subr.mxu0 0.0
        %1321 = vmatpush2.msra.mxu0 0.0
        %1322 = vmatprep.mubr.f32.mxu0 0.0
        %1323 = vmatmul.mubr.f32.gmra.mxu0 %v1256
        %v1324 = vpop.f32.mrf.mxu0
        %v1325 = vadd.f32 0.0, %v1324
        %v1326 = vpop.f32.mrf.mxu0
        %1327 = vdwg.mxu0
        %1328 = vst.msk [vmem:[#allocation2] sm:$0xff] %vm1249, %v1325
        %1329 = vset.pattern.permute.xlu0 1
        %1330 = vperm.xlu0 %1329, %v1196
        %v1331 = vpop.permute.xlu0 %1330
        %v1333 = vlaneseq
        %v1334 = vshrl.u32 %v1333, 7
        %v1335 = vsub.s32 1, %v1334
        %v1336 = vrot.slane %v1220, %v1335
        %v1337 = vadd.f32 %v1331, %v1336
        %v1338 = vtanh.pop %v1337
        %v1339 = vmul.f32 %v1338, 1.442695
        %v1340 = vpow.pop %v1339
        %v1341 = vsel %vm1249, %v1340, 0.0
        %1342 = vadd.xlane.f32.xlu0 %v1341
        %v1343 = vpop.xlane.xlu0 %1342
        %v1344 = vrcp.pop %v1343
        %v1345 = vmul.f32 %v1340, %v1344
        %1346 = vrot.lane.b32.xlu0 %v908, 112
        %v1347 = vpop.permute.xlu0 %1346
        %1348 = vrot.lane.b32.xlu0 %v913, 112
        %v1349 = vpop.permute.xlu0 %1348
        %v1353 = vsel %vm1249, %v1345, 0
        %1355 = vmatprep.subr.mxu0 0.0
        %1356 = vmatpush1.msra.mxu0 0.0
        %1357 = vmatprep.subr.mxu0 0.0
        %1358 = vmatpush1.msra.mxu0 0.0
        %1359 = vmatprep.subr.mxu0 0.0
        %1360 = vmatpush1.msra.mxu0 0.0
        %1361 = vmatprep.subr.mxu0 0.0
        %1362 = vmatpush1.msra.mxu0 0.0
        %1363 = vmatprep.subr.mxu0 0.0
        %1364 = vmatpush1.msra.mxu0 0.0
        %1365 = vmatprep.subr.mxu0 0.0
        %1366 = vmatpush1.msra.mxu0 0.0
        %1367 = vmatprep.subr.mxu0 0.0
        %1368 = vmatpush1.msra.mxu0 0.0
        %1369 = vmatprep.subr.mxu0 0.0
        %1370 = vmatpush1.msra.mxu0 0.0
        %1371 = vmatprep.subr.mxu0 0.0
        %1372 = vmatpush1.msra.mxu0 0.0
        %1373 = vmatprep.subr.mxu0 0.0
        %1374 = vmatpush1.msra.mxu0 0.0
        %1375 = vmatprep.subr.mxu0 0.0
        %1376 = vmatpush1.msra.mxu0 0.0
        %1377 = vmatprep.subr.mxu0 0.0
        %1378 = vmatpush1.msra.mxu0 0.0
        %1379 = vmatprep.subr.mxu0 0.0
        %1380 = vmatpush1.msra.mxu0 0.0
        %1381 = vmatprep.subr.mxu0 0.0
        %1382 = vmatpush1.msra.mxu0 0.0
        %1383 = vmatprep.subr.mxu0 0.0
        %1384 = vmatpush1.msra.mxu0 %v1349
        %1385 = vmatprep.subr.mxu0 0.0
        %1386 = vmatpush1.msra.mxu0 %v1347
        %1387 = vmatprep.subr.mxu0 0.0
        %1388 = vmatpush2.msra.mxu0 0.0
        %1389 = vmatprep.subr.mxu0 0.0
        %1390 = vmatpush2.msra.mxu0 0.0
        %1391 = vmatprep.subr.mxu0 0.0
        %1392 = vmatpush2.msra.mxu0 0.0
        %1393 = vmatprep.subr.mxu0 0.0
        %1394 = vmatpush2.msra.mxu0 0.0
        %1395 = vmatprep.subr.mxu0 0.0
        %1396 = vmatpush2.msra.mxu0 0.0
        %1397 = vmatprep.subr.mxu0 0.0
        %1398 = vmatpush2.msra.mxu0 0.0
        %1399 = vmatprep.subr.mxu0 0.0
        %1400 = vmatpush2.msra.mxu0 0.0
        %1401 = vmatprep.subr.mxu0 0.0
        %1402 = vmatpush2.msra.mxu0 0.0
        %1403 = vmatprep.subr.mxu0 0.0
        %1404 = vmatpush2.msra.mxu0 0.0
        %1405 = vmatprep.subr.mxu0 0.0
        %1406 = vmatpush2.msra.mxu0 0.0
        %1407 = vmatprep.subr.mxu0 0.0
        %1408 = vmatpush2.msra.mxu0 0.0
        %1409 = vmatprep.subr.mxu0 0.0
        %1410 = vmatpush2.msra.mxu0 0.0
        %1411 = vmatprep.subr.mxu0 0.0
        %1412 = vmatpush2.msra.mxu0 0.0
        %1413 = vmatprep.subr.mxu0 0.0
        %1414 = vmatpush2.msra.mxu0 0.0
        %1415 = vmatprep.subr.mxu0 0.0
        %1416 = vmatpush2.msra.mxu0 0.0
        %1417 = vmatprep.subr.mxu0 0.0
        %1418 = vmatpush2.msra.mxu0 0.0
        %1419 = vmatprep.mubr.f32.mxu0 0.0
        %1420 = vmatmul.mubr.f32.gmra.mxu0 %v1353
        %v1421 = vpop.f32.mrf.mxu0
        %v1422 = vadd.f32 0.0, %v1421
        %v1423 = vpop.f32.mrf.mxu0
        %1424 = vdwg.mxu0
        %1426 = vrot.lane.b32.xlu0 %v1422, 16
        %v1427 = vpop.permute.xlu0 %1426
        %vm1429 = vcmask 261248
        %1430 = vst.msk [vmem:[#allocation2] sm:$0xff] %vm1429, %v1427
        %1432 = vset.pattern.permute.xlu0 0
        %1433 = vperm.xlu0 %1432, %v1201
        %v1434 = vpop.permute.xlu0 %1433
        %v1436 = vadd.f32 %v1434, %v1244
        %v1437 = vtanh.pop %v1436
        %v1438 = vmul.f32 %v1437, 1.442695
        %v1439 = vpow.pop %v1438
        %1441 = vrot.lane.b32.xlu0 %v1439, 112
        %v1442 = vpop.permute.xlu0 %1441
        %v1444 = vsel %vm1249, %v1442, 0.0
        %1445 = vadd.xlane.f32.xlu0 %v1444
        %v1446 = vpop.xlane.xlu0 %1445
        %v1447 = vrcp.pop %v1446
        %v1448 = vmul.f32 %v1439, %v1447
        %1450 = vrot.lane.b32.xlu0 %v1448, 112
        %v1451 = vpop.permute.xlu0 %1450
        %v1452 = vsel %vm1249, %v1451, 0
        %1454 = vmatprep.subr.mxu0 0.0
        %1455 = vmatpush1.msra.mxu0 0.0
        %1456 = vmatprep.subr.mxu0 0.0
        %1457 = vmatpush1.msra.mxu0 0.0
        %1458 = vmatprep.subr.mxu0 0.0
        %1459 = vmatpush1.msra.mxu0 0.0
        %1460 = vmatprep.subr.mxu0 0.0
        %1461 = vmatpush1.msra.mxu0 0.0
        %1462 = vmatprep.subr.mxu0 0.0
        %1463 = vmatpush1.msra.mxu0 0.0
        %1464 = vmatprep.subr.mxu0 0.0
        %1465 = vmatpush1.msra.mxu0 0.0
        %1466 = vmatprep.subr.mxu0 0.0
        %1467 = vmatpush1.msra.mxu0 0.0
        %1468 = vmatprep.subr.mxu0 0.0
        %1469 = vmatpush1.msra.mxu0 0.0
        %1470 = vmatprep.subr.mxu0 0.0
        %1471 = vmatpush1.msra.mxu0 0.0
        %1472 = vmatprep.subr.mxu0 0.0
        %1473 = vmatpush1.msra.mxu0 0.0
        %1474 = vmatprep.subr.mxu0 0.0
        %1475 = vmatpush1.msra.mxu0 0.0
        %1476 = vmatprep.subr.mxu0 0.0
        %1477 = vmatpush1.msra.mxu0 0.0
        %1478 = vmatprep.subr.mxu0 0.0
        %1479 = vmatpush1.msra.mxu0 0.0
        %1480 = vmatprep.subr.mxu0 0.0
        %1481 = vmatpush1.msra.mxu0 0.0
        %1482 = vmatprep.subr.mxu0 0.0
        %1483 = vmatpush1.msra.mxu0 %v923
        %1484 = vmatprep.subr.mxu0 0.0
        %1485 = vmatpush1.msra.mxu0 %v918
        %1486 = vmatprep.subr.mxu0 0.0
        %1487 = vmatpush2.msra.mxu0 0.0
        %1488 = vmatprep.subr.mxu0 0.0
        %1489 = vmatpush2.msra.mxu0 0.0
        %1490 = vmatprep.subr.mxu0 0.0
        %1491 = vmatpush2.msra.mxu0 0.0
        %1492 = vmatprep.subr.mxu0 0.0
        %1493 = vmatpush2.msra.mxu0 0.0
        %1494 = vmatprep.subr.mxu0 0.0
        %1495 = vmatpush2.msra.mxu0 0.0
        %1496 = vmatprep.subr.mxu0 0.0
        %1497 = vmatpush2.msra.mxu0 0.0
        %1498 = vmatprep.subr.mxu0 0.0
        %1499 = vmatpush2.msra.mxu0 0.0
        %1500 = vmatprep.subr.mxu0 0.0
        %1501 = vmatpush2.msra.mxu0 0.0
        %1502 = vmatprep.subr.mxu0 0.0
        %1503 = vmatpush2.msra.mxu0 0.0
        %1504 = vmatprep.subr.mxu0 0.0
        %1505 = vmatpush2.msra.mxu0 0.0
        %1506 = vmatprep.subr.mxu0 0.0
        %1507 = vmatpush2.msra.mxu0 0.0
        %1508 = vmatprep.subr.mxu0 0.0
        %1509 = vmatpush2.msra.mxu0 0.0
        %1510 = vmatprep.subr.mxu0 0.0
        %1511 = vmatpush2.msra.mxu0 0.0
        %1512 = vmatprep.subr.mxu0 0.0
        %1513 = vmatpush2.msra.mxu0 0.0
        %1514 = vmatprep.subr.mxu0 0.0
        %1515 = vmatpush2.msra.mxu0 0.0
        %1516 = vmatprep.subr.mxu0 0.0
        %1517 = vmatpush2.msra.mxu0 0.0
        %1518 = vmatprep.mubr.f32.mxu0 0.0
        %1519 = vmatmul.mubr.f32.gmra.mxu0 %v1452
        %v1520 = vpop.f32.mrf.mxu0
        %v1521 = vadd.f32 0.0, %v1520
        %v1522 = vpop.f32.mrf.mxu0
        %1523 = vdwg.mxu0
        %1524 = vst.msk [vmem:[#allocation2 + $0x8] sm:$0xff] %vm1249, %v1521
        %1525 = vset.pattern.permute.xlu0 1
        %1526 = vperm.xlu0 %1525, %v1201
        %v1527 = vpop.permute.xlu0 %1526
        %v1529 = vadd.f32 %v1527, %v1336
        %v1530 = vtanh.pop %v1529
        %v1531 = vmul.f32 %v1530, 1.442695
        %v1532 = vpow.pop %v1531
        %1534 = vrot.lane.b32.xlu0 %v1532, 112
        %v1535 = vpop.permute.xlu0 %1534
        %v1537 = vsel %vm1249, %v1535, 0.0
        %1538 = vadd.xlane.f32.xlu0 %v1537
        %v1539 = vpop.xlane.xlu0 %1538
        %v1540 = vrcp.pop %v1539
        %v1541 = vmul.f32 %v1532, %v1540
        %1543 = vrot.lane.b32.xlu0 %v1541, 112
        %v1544 = vpop.permute.xlu0 %1543
        %1545 = vrot.lane.b32.xlu0 %v918, 112
        %v1546 = vpop.permute.xlu0 %1545
        %1547 = vrot.lane.b32.xlu0 %v923, 112
        %v1548 = vpop.permute.xlu0 %1547
        %v1551 = vsel %vm1249, %v1544, 0
        %1553 = vmatprep.subr.mxu0 0.0
        %1554 = vmatpush1.msra.mxu0 0.0
        %1555 = vmatprep.subr.mxu0 0.0
        %1556 = vmatpush1.msra.mxu0 0.0
        %1557 = vmatprep.subr.mxu0 0.0
        %1558 = vmatpush1.msra.mxu0 0.0
        %1559 = vmatprep.subr.mxu0 0.0
        %1560 = vmatpush1.msra.mxu0 0.0
        %1561 = vmatprep.subr.mxu0 0.0
        %1562 = vmatpush1.msra.mxu0 0.0
        %1563 = vmatprep.subr.mxu0 0.0
        %1564 = vmatpush1.msra.mxu0 0.0
        %1565 = vmatprep.subr.mxu0 0.0
        %1566 = vmatpush1.msra.mxu0 0.0
        %1567 = vmatprep.subr.mxu0 0.0
        %1568 = vmatpush1.msra.mxu0 0.0
        %1569 = vmatprep.subr.mxu0 0.0
        %1570 = vmatpush1.msra.mxu0 0.0
        %1571 = vmatprep.subr.mxu0 0.0
        %1572 = vmatpush1.msra.mxu0 0.0
        %1573 = vmatprep.subr.mxu0 0.0
        %1574 = vmatpush1.msra.mxu0 0.0
        %1575 = vmatprep.subr.mxu0 0.0
        %1576 = vmatpush1.msra.mxu0 0.0
        %1577 = vmatprep.subr.mxu0 0.0
        %1578 = vmatpush1.msra.mxu0 0.0
        %1579 = vmatprep.subr.mxu0 0.0
        %1580 = vmatpush1.msra.mxu0 0.0
        %1581 = vmatprep.subr.mxu0 0.0
        %1582 = vmatpush1.msra.mxu0 %v1548
        %1583 = vmatprep.subr.mxu0 0.0
        %1584 = vmatpush1.msra.mxu0 %v1546
        %1585 = vmatprep.subr.mxu0 0.0
        %1586 = vmatpush2.msra.mxu0 0.0
        %1587 = vmatprep.subr.mxu0 0.0
        %1588 = vmatpush2.msra.mxu0 0.0
        %1589 = vmatprep.subr.mxu0 0.0
        %1590 = vmatpush2.msra.mxu0 0.0
        %1591 = vmatprep.subr.mxu0 0.0
        %1592 = vmatpush2.msra.mxu0 0.0
        %1593 = vmatprep.subr.mxu0 0.0
        %1594 = vmatpush2.msra.mxu0 0.0
        %1595 = vmatprep.subr.mxu0 0.0
        %1596 = vmatpush2.msra.mxu0 0.0
        %1597 = vmatprep.subr.mxu0 0.0
        %1598 = vmatpush2.msra.mxu0 0.0
        %1599 = vmatprep.subr.mxu0 0.0
        %1600 = vmatpush2.msra.mxu0 0.0
        %1601 = vmatprep.subr.mxu0 0.0
        %1602 = vmatpush2.msra.mxu0 0.0
        %1603 = vmatprep.subr.mxu0 0.0
        %1604 = vmatpush2.msra.mxu0 0.0
        %1605 = vmatprep.subr.mxu0 0.0
        %1606 = vmatpush2.msra.mxu0 0.0
        %1607 = vmatprep.subr.mxu0 0.0
        %1608 = vmatpush2.msra.mxu0 0.0
        %1609 = vmatprep.subr.mxu0 0.0
        %1610 = vmatpush2.msra.mxu0 0.0
        %1611 = vmatprep.subr.mxu0 0.0
        %1612 = vmatpush2.msra.mxu0 0.0
        %1613 = vmatprep.subr.mxu0 0.0
        %1614 = vmatpush2.msra.mxu0 0.0
        %1615 = vmatprep.subr.mxu0 0.0
        %1616 = vmatpush2.msra.mxu0 0.0
        %1617 = vmatprep.mubr.f32.mxu0 0.0
        %1618 = vmatmul.mubr.f32.gmra.mxu0 %v1551
        %v1619 = vpop.f32.mrf.mxu0
        %v1620 = vadd.f32 0.0, %v1619
        %v1621 = vpop.f32.mrf.mxu0
        %1622 = vdwg.mxu0
        %1624 = vrot.lane.b32.xlu0 %v1620, 16
        %v1625 = vpop.permute.xlu0 %1624
        %1627 = vst.msk [vmem:[#allocation2 + $0x8] sm:$0xff] %vm1429, %v1625
        %v1628 = vld [vmem:[#allocation2] sm:$0xff]
        %v1629 = vld [vmem:[#allocation2 + $0x8] sm:$0xff]
        %v1630 = vld [vmem:[#allocation11] sm:$0xff]
        %v1631 = vld [vmem:[#allocation11 + $0x8] sm:$0xff]
        %v1632 = vld [vmem:[#allocation11 + $0x10] sm:$0xff]
        %v1633 = vld [vmem:[#allocation11 + $0x18] sm:$0xff]
        %v1634 = vld [vmem:[#allocation12] sm:$0x1]
        %v1636 = vlaneseq
        %v1637 = vshrl.u32 %v1636, 7
        %v1638 = vsub.s32 0, %v1637
        %v1639 = vrot.slane %v1634, %v1638
        %v1642 = vsel %vm828, %v1628, 0
        %v1645 = vsel %vm828, %v1629, 0
        %1647 = vmatprep.subr.mxu0 0.0
        %1648 = vmatpush1.msra.mxu0 0.0
        %1649 = vmatprep.subr.mxu0 0.0
        %1650 = vmatpush1.msra.mxu0 0.0
        %1651 = vmatprep.subr.mxu0 0.0
        %1652 = vmatpush1.msra.mxu0 0.0
        %1653 = vmatprep.subr.mxu0 0.0
        %1654 = vmatpush1.msra.mxu0 0.0
        %1655 = vmatprep.subr.mxu0 0.0
        %1656 = vmatpush1.msra.mxu0 0.0
        %1657 = vmatprep.subr.mxu0 0.0
        %1658 = vmatpush1.msra.mxu0 0.0
        %1659 = vmatprep.subr.mxu0 0.0
        %1660 = vmatpush1.msra.mxu0 0.0
        %1661 = vmatprep.subr.mxu0 0.0
        %1662 = vmatpush1.msra.mxu0 0.0
        %1663 = vmatprep.subr.mxu0 0.0
        %1664 = vmatpush1.msra.mxu0 0.0
        %1665 = vmatprep.subr.mxu0 0.0
        %1666 = vmatpush1.msra.mxu0 0.0
        %1667 = vmatprep.subr.mxu0 0.0
        %1668 = vmatpush1.msra.mxu0 0.0
        %1669 = vmatprep.subr.mxu0 0.0
        %1670 = vmatpush1.msra.mxu0 0.0
        %1671 = vmatprep.subr.mxu0 0.0
        %1672 = vmatpush1.msra.mxu0 %v1633
        %1673 = vmatprep.subr.mxu0 0.0
        %1674 = vmatpush1.msra.mxu0 %v1632
        %1675 = vmatprep.subr.mxu0 0.0
        %1676 = vmatpush1.msra.mxu0 %v1631
        %1677 = vmatprep.subr.mxu0 0.0
        %1678 = vmatpush1.msra.mxu0 %v1630
        %1679 = vmatprep.subr.mxu0 0.0
        %1680 = vmatpush2.msra.mxu0 0.0
        %1681 = vmatprep.subr.mxu0 0.0
        %1682 = vmatpush2.msra.mxu0 0.0
        %1683 = vmatprep.subr.mxu0 0.0
        %1684 = vmatpush2.msra.mxu0 0.0
        %1685 = vmatprep.subr.mxu0 0.0
        %1686 = vmatpush2.msra.mxu0 0.0
        %1687 = vmatprep.subr.mxu0 0.0
        %1688 = vmatpush2.msra.mxu0 0.0
        %1689 = vmatprep.subr.mxu0 0.0
        %1690 = vmatpush2.msra.mxu0 0.0
        %1691 = vmatprep.subr.mxu0 0.0
        %1692 = vmatpush2.msra.mxu0 0.0
        %1693 = vmatprep.subr.mxu0 0.0
        %1694 = vmatpush2.msra.mxu0 0.0
        %1695 = vmatprep.subr.mxu0 0.0
        %1696 = vmatpush2.msra.mxu0 0.0
        %1697 = vmatprep.subr.mxu0 0.0
        %1698 = vmatpush2.msra.mxu0 0.0
        %1699 = vmatprep.subr.mxu0 0.0
        %1700 = vmatpush2.msra.mxu0 0.0
        %1701 = vmatprep.subr.mxu0 0.0
        %1702 = vmatpush2.msra.mxu0 0.0
        %1703 = vmatprep.subr.mxu0 0.0
        %1704 = vmatpush2.msra.mxu0 0.0
        %1705 = vmatprep.subr.mxu0 0.0
        %1706 = vmatpush2.msra.mxu0 0.0
        %1707 = vmatprep.subr.mxu0 0.0
        %1708 = vmatpush2.msra.mxu0 0.0
        %1709 = vmatprep.subr.mxu0 0.0
        %1710 = vmatpush2.msra.mxu0 0.0
        %1711 = vmatprep.mubr.f32.mxu0 0.0
        %1712 = vmatmul.mubr.f32.gmra.mxu0 %v1642
        %v1713 = vpop.f32.mrf.mxu0
        %v1714 = vadd.f32 %v1639, %v1713
        %v1715 = vpop.f32.mrf.mxu0
        %1716 = vmatprep.mubr.f32.mxu0 0.0
        %1717 = vmatmul.mubr.f32.gmra.mxu0 %v1645
        %v1718 = vpop.f32.mrf.mxu0
        %v1719 = vadd.f32 %v1639, %v1718
        %v1720 = vpop.f32.mrf.mxu0
        %1721 = vdwg.mxu0
        %v1722 = vld [vmem:[#allocation14] sm:$0xff]
        %v1723 = vld [vmem:[#allocation14 + $0x8] sm:$0xff]
        %v1724 = vld [vmem:[#allocation14 + $0x10] sm:$0xff]
        %v1725 = vld [vmem:[#allocation14 + $0x18] sm:$0xff]
        %v1726 = vld [vmem:[#allocation15] sm:$0x1]
        %v1728 = vlaneseq
        %v1729 = vshrl.u32 %v1728, 7
        %v1730 = vsub.s32 0, %v1729
        %v1731 = vrot.slane %v1726, %v1730
        %v1734 = vsel %vm828, %v1714, 0
        %v1737 = vsel %vm828, %v1719, 0
        %1739 = vmatprep.subr.mxu0 0.0
        %1740 = vmatpush1.msra.mxu0 0.0
        %1741 = vmatprep.subr.mxu0 0.0
        %1742 = vmatpush1.msra.mxu0 0.0
        %1743 = vmatprep.subr.mxu0 0.0
        %1744 = vmatpush1.msra.mxu0 0.0
        %1745 = vmatprep.subr.mxu0 0.0
        %1746 = vmatpush1.msra.mxu0 0.0
        %1747 = vmatprep.subr.mxu0 0.0
        %1748 = vmatpush1.msra.mxu0 0.0
        %1749 = vmatprep.subr.mxu0 0.0
        %1750 = vmatpush1.msra.mxu0 0.0
        %1751 = vmatprep.subr.mxu0 0.0
        %1752 = vmatpush1.msra.mxu0 0.0
        %1753 = vmatprep.subr.mxu0 0.0
        %1754 = vmatpush1.msra.mxu0 0.0
        %1755 = vmatprep.subr.mxu0 0.0
        %1756 = vmatpush1.msra.mxu0 0.0
        %1757 = vmatprep.subr.mxu0 0.0
        %1758 = vmatpush1.msra.mxu0 0.0
        %1759 = vmatprep.subr.mxu0 0.0
        %1760 = vmatpush1.msra.mxu0 0.0
        %1761 = vmatprep.subr.mxu0 0.0
        %1762 = vmatpush1.msra.mxu0 0.0
        %1763 = vmatprep.subr.mxu0 0.0
        %1764 = vmatpush1.msra.mxu0 %v1725
        %1765 = vmatprep.subr.mxu0 0.0
        %1766 = vmatpush1.msra.mxu0 %v1724
        %1767 = vmatprep.subr.mxu0 0.0
        %1768 = vmatpush1.msra.mxu0 %v1723
        %1769 = vmatprep.subr.mxu0 0.0
        %1770 = vmatpush1.msra.mxu0 %v1722
        %1771 = vmatprep.subr.mxu0 0.0
        %1772 = vmatpush2.msra.mxu0 0.0
        %1773 = vmatprep.subr.mxu0 0.0
        %1774 = vmatpush2.msra.mxu0 0.0
        %1775 = vmatprep.subr.mxu0 0.0
        %1776 = vmatpush2.msra.mxu0 0.0
        %1777 = vmatprep.subr.mxu0 0.0
        %1778 = vmatpush2.msra.mxu0 0.0
        %1779 = vmatprep.subr.mxu0 0.0
        %1780 = vmatpush2.msra.mxu0 0.0
        %1781 = vmatprep.subr.mxu0 0.0
        %1782 = vmatpush2.msra.mxu0 0.0
        %1783 = vmatprep.subr.mxu0 0.0
        %1784 = vmatpush2.msra.mxu0 0.0
        %1785 = vmatprep.subr.mxu0 0.0
        %1786 = vmatpush2.msra.mxu0 0.0
        %1787 = vmatprep.subr.mxu0 0.0
        %1788 = vmatpush2.msra.mxu0 0.0
        %1789 = vmatprep.subr.mxu0 0.0
        %1790 = vmatpush2.msra.mxu0 0.0
        %1791 = vmatprep.subr.mxu0 0.0
        %1792 = vmatpush2.msra.mxu0 0.0
        %1793 = vmatprep.subr.mxu0 0.0
        %1794 = vmatpush2.msra.mxu0 0.0
        %1795 = vmatprep.subr.mxu0 0.0
        %1796 = vmatpush2.msra.mxu0 0.0
        %1797 = vmatprep.subr.mxu0 0.0
        %1798 = vmatpush2.msra.mxu0 0.0
        %1799 = vmatprep.subr.mxu0 0.0
        %1800 = vmatpush2.msra.mxu0 0.0
        %1801 = vmatprep.subr.mxu0 0.0
        %1802 = vmatpush2.msra.mxu0 0.0
        %1803 = vmatprep.mubr.f32.mxu0 0.0
        %1804 = vmatmul.mubr.f32.gmra.mxu0 %v1734
        %v1805 = vpop.f32.mrf.mxu0
        %v1806 = vadd.f32 %v1731, %v1805
        %v1807 = vpop.f32.mrf.mxu0
        %1808 = vmatprep.mubr.f32.mxu0 0.0
        %1809 = vmatmul.mubr.f32.gmra.mxu0 %v1737
        %v1810 = vpop.f32.mrf.mxu0
        %v1811 = vadd.f32 %v1731, %v1810
        %v1812 = vpop.f32.mrf.mxu0
        %1813 = vdwg.mxu0
        %v1814 = vmax.f32 %v1806, 0.0
        %v1815 = vmax.f32 %v1811, 0.0
        %v1816 = vld [vmem:[#allocation17] sm:$0xff]
        %v1817 = vld [vmem:[#allocation17 + $0x8] sm:$0xff]
        %v1818 = vld [vmem:[#allocation17 + $0x10] sm:$0xff]
        %v1819 = vld [vmem:[#allocation17 + $0x18] sm:$0xff]
        %v1820 = vld [vmem:[#allocation18] sm:$0x1]
        %v1822 = vlaneseq
        %v1823 = vshrl.u32 %v1822, 7
        %v1824 = vsub.s32 0, %v1823
        %v1825 = vrot.slane %v1820, %v1824
        %v1828 = vsel %vm828, %v1814, 0
        %v1831 = vsel %vm828, %v1815, 0
        %1833 = vmatprep.subr.mxu0 0.0
        %1834 = vmatpush1.msra.mxu0 0.0
        %1835 = vmatprep.subr.mxu0 0.0
        %1836 = vmatpush1.msra.mxu0 0.0
        %1837 = vmatprep.subr.mxu0 0.0
        %1838 = vmatpush1.msra.mxu0 0.0
        %1839 = vmatprep.subr.mxu0 0.0
        %1840 = vmatpush1.msra.mxu0 0.0
        %1841 = vmatprep.subr.mxu0 0.0
        %1842 = vmatpush1.msra.mxu0 0.0
        %1843 = vmatprep.subr.mxu0 0.0
        %1844 = vmatpush1.msra.mxu0 0.0
        %1845 = vmatprep.subr.mxu0 0.0
        %1846 = vmatpush1.msra.mxu0 0.0
        %1847 = vmatprep.subr.mxu0 0.0
        %1848 = vmatpush1.msra.mxu0 0.0
        %1849 = vmatprep.subr.mxu0 0.0
        %1850 = vmatpush1.msra.mxu0 0.0
        %1851 = vmatprep.subr.mxu0 0.0
        %1852 = vmatpush1.msra.mxu0 0.0
        %1853 = vmatprep.subr.mxu0 0.0
        %1854 = vmatpush1.msra.mxu0 0.0
        %1855 = vmatprep.subr.mxu0 0.0
        %1856 = vmatpush1.msra.mxu0 0.0
        %1857 = vmatprep.subr.mxu0 0.0
        %1858 = vmatpush1.msra.mxu0 %v1819
        %1859 = vmatprep.subr.mxu0 0.0
        %1860 = vmatpush1.msra.mxu0 %v1818
        %1861 = vmatprep.subr.mxu0 0.0
        %1862 = vmatpush1.msra.mxu0 %v1817
        %1863 = vmatprep.subr.mxu0 0.0
        %1864 = vmatpush1.msra.mxu0 %v1816
        %1865 = vmatprep.subr.mxu0 0.0
        %1866 = vmatpush2.msra.mxu0 0.0
        %1867 = vmatprep.subr.mxu0 0.0
        %1868 = vmatpush2.msra.mxu0 0.0
        %1869 = vmatprep.subr.mxu0 0.0
        %1870 = vmatpush2.msra.mxu0 0.0
        %1871 = vmatprep.subr.mxu0 0.0
        %1872 = vmatpush2.msra.mxu0 0.0
        %1873 = vmatprep.subr.mxu0 0.0
        %1874 = vmatpush2.msra.mxu0 0.0
        %1875 = vmatprep.subr.mxu0 0.0
        %1876 = vmatpush2.msra.mxu0 0.0
        %1877 = vmatprep.subr.mxu0 0.0
        %1878 = vmatpush2.msra.mxu0 0.0
        %1879 = vmatprep.subr.mxu0 0.0
        %1880 = vmatpush2.msra.mxu0 0.0
        %1881 = vmatprep.subr.mxu0 0.0
        %1882 = vmatpush2.msra.mxu0 0.0
        %1883 = vmatprep.subr.mxu0 0.0
        %1884 = vmatpush2.msra.mxu0 0.0
        %1885 = vmatprep.subr.mxu0 0.0
        %1886 = vmatpush2.msra.mxu0 0.0
        %1887 = vmatprep.subr.mxu0 0.0
        %1888 = vmatpush2.msra.mxu0 0.0
        %1889 = vmatprep.subr.mxu0 0.0
        %1890 = vmatpush2.msra.mxu0 0.0
        %1891 = vmatprep.subr.mxu0 0.0
        %1892 = vmatpush2.msra.mxu0 0.0
        %1893 = vmatprep.subr.mxu0 0.0
        %1894 = vmatpush2.msra.mxu0 0.0
        %1895 = vmatprep.subr.mxu0 0.0
        %1896 = vmatpush2.msra.mxu0 0.0
        %1897 = vmatprep.mubr.f32.mxu0 0.0
        %1898 = vmatmul.mubr.f32.gmra.mxu0 %v1828
        %v1899 = vpop.f32.mrf.mxu0
        %v1900 = vadd.f32 %v1825, %v1899
        %v1901 = vpop.f32.mrf.mxu0
        %1902 = vmatprep.mubr.f32.mxu0 0.0
        %1903 = vmatmul.mubr.f32.gmra.mxu0 %v1831
        %v1904 = vpop.f32.mrf.mxu0
        %v1905 = vadd.f32 %v1825, %v1904
        %v1906 = vpop.f32.mrf.mxu0
        %1907 = vdwg.mxu0
        %v1908 = vld [vmem:[#allocation20] sm:$0xff]
        %v1909 = vld [vmem:[#allocation20 + $0x8] sm:$0xff]
        %v1910 = vld [vmem:[#allocation20 + $0x10] sm:$0xff]
        %v1911 = vld [vmem:[#allocation20 + $0x18] sm:$0xff]
        %v1912 = vld [vmem:[#allocation23] sm:$0x1]
        %v1914 = vlaneseq
        %v1915 = vshrl.u32 %v1914, 7
        %v1916 = vsub.s32 0, %v1915
        %v1917 = vrot.slane %v1912, %v1916
        %v1920 = vsel %vm828, %v1900, 0
        %v1923 = vsel %vm828, %v1905, 0
        %1925 = vmatprep.subr.mxu0 0.0
        %1926 = vmatpush1.msra.mxu0 0.0
        %1927 = vmatprep.subr.mxu0 0.0
        %1928 = vmatpush1.msra.mxu0 0.0
        %1929 = vmatprep.subr.mxu0 0.0
        %1930 = vmatpush1.msra.mxu0 0.0
        %1931 = vmatprep.subr.mxu0 0.0
        %1932 = vmatpush1.msra.mxu0 0.0
        %1933 = vmatprep.subr.mxu0 0.0
        %1934 = vmatpush1.msra.mxu0 0.0
        %1935 = vmatprep.subr.mxu0 0.0
        %1936 = vmatpush1.msra.mxu0 0.0
        %1937 = vmatprep.subr.mxu0 0.0
        %1938 = vmatpush1.msra.mxu0 0.0
        %1939 = vmatprep.subr.mxu0 0.0
        %1940 = vmatpush1.msra.mxu0 0.0
        %1941 = vmatprep.subr.mxu0 0.0
        %1942 = vmatpush1.msra.mxu0 0.0
        %1943 = vmatprep.subr.mxu0 0.0
        %1944 = vmatpush1.msra.mxu0 0.0
        %1945 = vmatprep.subr.mxu0 0.0
        %1946 = vmatpush1.msra.mxu0 0.0
        %1947 = vmatprep.subr.mxu0 0.0
        %1948 = vmatpush1.msra.mxu0 0.0
        %1949 = vmatprep.subr.mxu0 0.0
        %1950 = vmatpush1.msra.mxu0 %v1911
        %1951 = vmatprep.subr.mxu0 0.0
        %1952 = vmatpush1.msra.mxu0 %v1910
        %1953 = vmatprep.subr.mxu0 0.0
        %1954 = vmatpush1.msra.mxu0 %v1909
        %1955 = vmatprep.subr.mxu0 0.0
        %1956 = vmatpush1.msra.mxu0 %v1908
        %1957 = vmatprep.subr.mxu0 0.0
        %1958 = vmatpush2.msra.mxu0 0.0
        %1959 = vmatprep.subr.mxu0 0.0
        %1960 = vmatpush2.msra.mxu0 0.0
        %1961 = vmatprep.subr.mxu0 0.0
        %1962 = vmatpush2.msra.mxu0 0.0
        %1963 = vmatprep.subr.mxu0 0.0
        %1964 = vmatpush2.msra.mxu0 0.0
        %1965 = vmatprep.subr.mxu0 0.0
        %1966 = vmatpush2.msra.mxu0 0.0
        %1967 = vmatprep.subr.mxu0 0.0
        %1968 = vmatpush2.msra.mxu0 0.0
        %1969 = vmatprep.subr.mxu0 0.0
        %1970 = vmatpush2.msra.mxu0 0.0
        %1971 = vmatprep.subr.mxu0 0.0
        %1972 = vmatpush2.msra.mxu0 0.0
        %1973 = vmatprep.subr.mxu0 0.0
        %1974 = vmatpush2.msra.mxu0 0.0
        %1975 = vmatprep.subr.mxu0 0.0
        %1976 = vmatpush2.msra.mxu0 0.0
        %1977 = vmatprep.subr.mxu0 0.0
        %1978 = vmatpush2.msra.mxu0 0.0
        %1979 = vmatprep.subr.mxu0 0.0
        %1980 = vmatpush2.msra.mxu0 0.0
        %1981 = vmatprep.subr.mxu0 0.0
        %1982 = vmatpush2.msra.mxu0 0.0
        %1983 = vmatprep.subr.mxu0 0.0
        %1984 = vmatpush2.msra.mxu0 0.0
        %1985 = vmatprep.subr.mxu0 0.0
        %1986 = vmatpush2.msra.mxu0 0.0
        %1987 = vmatprep.subr.mxu0 0.0
        %1988 = vmatpush2.msra.mxu0 0.0
        %1989 = vmatprep.mubr.f32.mxu0 0.0
        %1990 = vmatmul.mubr.f32.gmra.mxu0 %v1920
        %v1991 = vpop.f32.mrf.mxu0
        %v1992 = vadd.f32 %v1917, %v1991
        %v1993 = vpop.f32.mrf.mxu0
        %1994 = vmatprep.mubr.f32.mxu0 0.0
        %1995 = vmatmul.mubr.f32.gmra.mxu0 %v1923
        %v1996 = vpop.f32.mrf.mxu0
        %v1997 = vadd.f32 %v1917, %v1996
        %v1998 = vpop.f32.mrf.mxu0
        %1999 = vdwg.mxu0
        %v2000 = vld [vmem:[#allocation21] sm:$0xff]
        %v2001 = vld [vmem:[#allocation21 + $0x8] sm:$0xff]
        %v2002 = vld [vmem:[#allocation21 + $0x10] sm:$0xff]
        %v2003 = vld [vmem:[#allocation21 + $0x18] sm:$0xff]
        %v2005 = vsel %vm828, 0.0, 0
        %2007 = vmatprep.subr.mxu0 0.0
        %2008 = vmatpush1.msra.mxu0 0.0
        %2009 = vmatprep.subr.mxu0 0.0
        %2010 = vmatpush1.msra.mxu0 0.0
        %2011 = vmatprep.subr.mxu0 0.0
        %2012 = vmatpush1.msra.mxu0 0.0
        %2013 = vmatprep.subr.mxu0 0.0
        %2014 = vmatpush1.msra.mxu0 0.0
        %2015 = vmatprep.subr.mxu0 0.0
        %2016 = vmatpush1.msra.mxu0 0.0
        %2017 = vmatprep.subr.mxu0 0.0
        %2018 = vmatpush1.msra.mxu0 0.0
        %2019 = vmatprep.subr.mxu0 0.0
        %2020 = vmatpush1.msra.mxu0 0.0
        %2021 = vmatprep.subr.mxu0 0.0
        %2022 = vmatpush1.msra.mxu0 0.0
        %2023 = vmatprep.subr.mxu0 0.0
        %2024 = vmatpush1.msra.mxu0 0.0
        %2025 = vmatprep.subr.mxu0 0.0
        %2026 = vmatpush1.msra.mxu0 0.0
        %2027 = vmatprep.subr.mxu0 0.0
        %2028 = vmatpush1.msra.mxu0 0.0
        %2029 = vmatprep.subr.mxu0 0.0
        %2030 = vmatpush1.msra.mxu0 0.0
        %2031 = vmatprep.subr.mxu0 0.0
        %2032 = vmatpush1.msra.mxu0 %v2003
        %2033 = vmatprep.subr.mxu0 0.0
        %2034 = vmatpush1.msra.mxu0 %v2002
        %2035 = vmatprep.subr.mxu0 0.0
        %2036 = vmatpush1.msra.mxu0 %v2001
        %2037 = vmatprep.subr.mxu0 0.0
        %2038 = vmatpush1.msra.mxu0 %v2000
        %2039 = vmatprep.subr.mxu0 0.0
        %2040 = vmatpush2.msra.mxu0 0.0
        %2041 = vmatprep.subr.mxu0 0.0
        %2042 = vmatpush2.msra.mxu0 0.0
        %2043 = vmatprep.subr.mxu0 0.0
        %2044 = vmatpush2.msra.mxu0 0.0
        %2045 = vmatprep.subr.mxu0 0.0
        %2046 = vmatpush2.msra.mxu0 0.0
        %2047 = vmatprep.subr.mxu0 0.0
        %2048 = vmatpush2.msra.mxu0 0.0
        %2049 = vmatprep.subr.mxu0 0.0
        %2050 = vmatpush2.msra.mxu0 0.0
        %2051 = vmatprep.subr.mxu0 0.0
        %2052 = vmatpush2.msra.mxu0 0.0
        %2053 = vmatprep.subr.mxu0 0.0
        %2054 = vmatpush2.msra.mxu0 0.0
        %2055 = vmatprep.subr.mxu0 0.0
        %2056 = vmatpush2.msra.mxu0 0.0
        %2057 = vmatprep.subr.mxu0 0.0
        %2058 = vmatpush2.msra.mxu0 0.0
        %2059 = vmatprep.subr.mxu0 0.0
        %2060 = vmatpush2.msra.mxu0 0.0
        %2061 = vmatprep.subr.mxu0 0.0
        %2062 = vmatpush2.msra.mxu0 0.0
        %2063 = vmatprep.subr.mxu0 0.0
        %2064 = vmatpush2.msra.mxu0 0.0
        %2065 = vmatprep.subr.mxu0 0.0
        %2066 = vmatpush2.msra.mxu0 0.0
        %2067 = vmatprep.subr.mxu0 0.0
        %2068 = vmatpush2.msra.mxu0 0.0
        %2069 = vmatprep.subr.mxu0 0.0
        %2070 = vmatpush2.msra.mxu0 0.0
        %2071 = vmatprep.mubr.f32.mxu0 0.0
        %2072 = vmatmul.mubr.f32.gmra.mxu0 %v2005
        %v2073 = vpop.f32.mrf.mxu0
        %v2074 = vadd.f32 0.0, %v2073
        %v2075 = vpop.f32.mrf.mxu0
        %2076 = vdwg.mxu0
        %v2078 = vrot.slane %v2074, 1
        %v2081 = vadd.f32 %v1992, %v2074
        %v2082 = vadd.f32 %v1997, %v2078
        %v2083 = vxor.u32 %v2081, 2147483648
        %v2084 = vxor.u32 %v2082, 2147483648
        %v2085 = vmul.f32 %v2083, 1.442695
        %v2086 = vpow.pop %v2085
        %v2087 = vmul.f32 %v2084, 1.442695
        %v2088 = vpow.pop %v2087
        %v2089 = vadd.f32 %v2086, 1.0
        %v2090 = vadd.f32 %v2088, 1.0
        %v2091 = vrcp.pop %v2089
        %v2092 = vmul.f32 1.0, %v2091
        %v2093 = vrcp.pop %v2090
        %v2094 = vmul.f32 1.0, %v2093
        %v2095 = vtanh.pop %v2081
        %v2096 = vtanh.pop %v2082
        %v2097 = vmul.f32 %v2092, 0.0
        %v2098 = vmul.f32 %v2094, 0.0
        %2101 = vrot.lane.b32.xlu0 %v2095, 64
        %v2102 = vpop.permute.xlu0 %2101
        %2103 = vrot.lane.b32.xlu0 %v2096, 64
        %v2104 = vpop.permute.xlu0 %2103
        %v2107 = vmul.f32 %v2092, %v2102
        %v2108 = vmul.f32 %v2094, %v2104
        %2111 = vrot.lane.b32.xlu0 %v2107, 32
        %v2112 = vpop.permute.xlu0 %2111
        %2113 = vrot.lane.b32.xlu0 %v2108, 32
        %v2114 = vpop.permute.xlu0 %2113
        %v2117 = vadd.f32 %v2097, %v2112
        %v2118 = vadd.f32 %v2098, %v2114
        %v2119 = vtanh.pop %v2117
        %v2120 = vtanh.pop %v2118
        %2123 = vrot.lane.b32.xlu0 %v2119, 64
        %v2124 = vpop.permute.xlu0 %2123
        %2125 = vrot.lane.b32.xlu0 %v2120, 64
        %v2126 = vpop.permute.xlu0 %2125
        %v2129 = vmul.f32 %v2092, %v2124
        %v2130 = vmul.f32 %v2094, %v2126
        %v2133 = vrot.slane %v2130, 7
        %vm2134 = vcmask 1041409
        %v2135 = vsel %vm2134, %v2133, %v2129
        %2136 = vrot.lane.b32.xlu0 %v2135, 32
        %v2137 = vpop.permute.xlu0 %2136
        %v2138 = vsel %vm828, %v2137, 0
        %2140 = vmatprep.subr.mxu0 0.0
        %2141 = vmatpush1.msra.mxu0 0.0
        %2142 = vmatprep.subr.mxu0 0.0
        %2143 = vmatpush1.msra.mxu0 0.0
        %2144 = vmatprep.subr.mxu0 0.0
        %2145 = vmatpush1.msra.mxu0 0.0
        %2146 = vmatprep.subr.mxu0 0.0
        %2147 = vmatpush1.msra.mxu0 0.0
        %2148 = vmatprep.subr.mxu0 0.0
        %2149 = vmatpush1.msra.mxu0 0.0
        %2150 = vmatprep.subr.mxu0 0.0
        %2151 = vmatpush1.msra.mxu0 0.0
        %2152 = vmatprep.subr.mxu0 0.0
        %2153 = vmatpush1.msra.mxu0 0.0
        %2154 = vmatprep.subr.mxu0 0.0
        %2155 = vmatpush1.msra.mxu0 0.0
        %2156 = vmatprep.subr.mxu0 0.0
        %2157 = vmatpush1.msra.mxu0 0.0
        %2158 = vmatprep.subr.mxu0 0.0
        %2159 = vmatpush1.msra.mxu0 0.0
        %2160 = vmatprep.subr.mxu0 0.0
        %2161 = vmatpush1.msra.mxu0 0.0
        %2162 = vmatprep.subr.mxu0 0.0
        %2163 = vmatpush1.msra.mxu0 0.0
        %2164 = vmatprep.subr.mxu0 0.0
        %2165 = vmatpush1.msra.mxu0 %v2003
        %2166 = vmatprep.subr.mxu0 0.0
        %2167 = vmatpush1.msra.mxu0 %v2002
        %2168 = vmatprep.subr.mxu0 0.0
        %2169 = vmatpush1.msra.mxu0 %v2001
        %2170 = vmatprep.subr.mxu0 0.0
        %2171 = vmatpush1.msra.mxu0 %v2000
        %2172 = vmatprep.subr.mxu0 0.0
        %2173 = vmatpush2.msra.mxu0 0.0
        %2174 = vmatprep.subr.mxu0 0.0
        %2175 = vmatpush2.msra.mxu0 0.0
        %2176 = vmatprep.subr.mxu0 0.0
        %2177 = vmatpush2.msra.mxu0 0.0
        %2178 = vmatprep.subr.mxu0 0.0
        %2179 = vmatpush2.msra.mxu0 0.0
        %2180 = vmatprep.subr.mxu0 0.0
        %2181 = vmatpush2.msra.mxu0 0.0
        %2182 = vmatprep.subr.mxu0 0.0
        %2183 = vmatpush2.msra.mxu0 0.0
        %2184 = vmatprep.subr.mxu0 0.0
        %2185 = vmatpush2.msra.mxu0 0.0
        %2186 = vmatprep.subr.mxu0 0.0
        %2187 = vmatpush2.msra.mxu0 0.0
        %2188 = vmatprep.subr.mxu0 0.0
        %2189 = vmatpush2.msra.mxu0 0.0
        %2190 = vmatprep.subr.mxu0 0.0
        %2191 = vmatpush2.msra.mxu0 0.0
        %2192 = vmatprep.subr.mxu0 0.0
        %2193 = vmatpush2.msra.mxu0 0.0
        %2194 = vmatprep.subr.mxu0 0.0
        %2195 = vmatpush2.msra.mxu0 0.0
        %2196 = vmatprep.subr.mxu0 0.0
        %2197 = vmatpush2.msra.mxu0 0.0
        %2198 = vmatprep.subr.mxu0 0.0
        %2199 = vmatpush2.msra.mxu0 0.0
        %2200 = vmatprep.subr.mxu0 0.0
        %2201 = vmatpush2.msra.mxu0 0.0
        %2202 = vmatprep.subr.mxu0 0.0
        %2203 = vmatpush2.msra.mxu0 0.0
        %2204 = vmatprep.mubr.f32.mxu0 0.0
        %2205 = vmatmul.mubr.f32.gmra.mxu0 %v2138
        %v2206 = vpop.f32.mrf.mxu0
        %v2207 = vadd.f32 0.0, %v2206
        %v2208 = vpop.f32.mrf.mxu0
        %2209 = vdwg.mxu0
        %v2211 = vrot.slane %v2207, 7
        %v2214 = vadd.f32 %v1992, %v2211
        %v2215 = vadd.f32 %v1997, %v2207
        %v2216 = vxor.u32 %v2214, 2147483648
        %v2217 = vxor.u32 %v2215, 2147483648
        %v2218 = vmul.f32 %v2216, 1.442695
        %v2219 = vpow.pop %v2218
        %v2220 = vmul.f32 %v2217, 1.442695
        %v2221 = vpow.pop %v2220
        %v2222 = vadd.f32 %v2219, 1.0
        %v2223 = vadd.f32 %v2221, 1.0
        %v2224 = vrcp.pop %v2222
        %v2225 = vmul.f32 1.0, %v2224
        %v2226 = vrcp.pop %v2223
        %v2227 = vmul.f32 1.0, %v2226
        %v2228 = vtanh.pop %v2214
        %v2229 = vtanh.pop %v2215
        %v2232 = vrot.slane %v2117, 7
        %v2233 = vrot.slane %v2118, 7
        %v2236 = vmul.f32 %v2225, %v2232
        %v2237 = vmul.f32 %v2227, %v2233
        %2240 = vrot.lane.b32.xlu0 %v2228, 64
        %v2241 = vpop.permute.xlu0 %2240
        %2242 = vrot.lane.b32.xlu0 %v2229, 64
        %v2243 = vpop.permute.xlu0 %2242
        %v2246 = vmul.f32 %v2225, %v2241
        %v2247 = vmul.f32 %v2227, %v2243
        %2250 = vrot.lane.b32.xlu0 %v2246, 32
        %v2251 = vpop.permute.xlu0 %2250
        %2252 = vrot.lane.b32.xlu0 %v2247, 32
        %v2253 = vpop.permute.xlu0 %2252
        %v2256 = vadd.f32 %v2236, %v2251
        %v2257 = vadd.f32 %v2237, %v2253
        %v2258 = vtanh.pop %v2256
        %v2259 = vtanh.pop %v2257
        %2262 = vrot.lane.b32.xlu0 %v2258, 64
        %v2263 = vpop.permute.xlu0 %2262
        %2264 = vrot.lane.b32.xlu0 %v2259, 64
        %v2265 = vpop.permute.xlu0 %2264
        %v2268 = vmul.f32 %v2225, %v2263
        %v2269 = vmul.f32 %v2227, %v2265
        %v2272 = vrot.slane %v2268, 1
        %v2273 = vsel %vm2134, %v2269, %v2272
        %2274 = vrot.lane.b32.xlu0 %v2273, 32
        %v2275 = vpop.permute.xlu0 %2274
        %v2276 = vsel %vm828, %v2275, 0
        %2278 = vmatprep.subr.mxu0 0.0
        %2279 = vmatpush1.msra.mxu0 0.0
        %2280 = vmatprep.subr.mxu0 0.0
        %2281 = vmatpush1.msra.mxu0 0.0
        %2282 = vmatprep.subr.mxu0 0.0
        %2283 = vmatpush1.msra.mxu0 0.0
        %2284 = vmatprep.subr.mxu0 0.0
        %2285 = vmatpush1.msra.mxu0 0.0
        %2286 = vmatprep.subr.mxu0 0.0
        %2287 = vmatpush1.msra.mxu0 0.0
        %2288 = vmatprep.subr.mxu0 0.0
        %2289 = vmatpush1.msra.mxu0 0.0
        %2290 = vmatprep.subr.mxu0 0.0
        %2291 = vmatpush1.msra.mxu0 0.0
        %2292 = vmatprep.subr.mxu0 0.0
        %2293 = vmatpush1.msra.mxu0 0.0
        %2294 = vmatprep.subr.mxu0 0.0
        %2295 = vmatpush1.msra.mxu0 0.0
        %2296 = vmatprep.subr.mxu0 0.0
        %2297 = vmatpush1.msra.mxu0 0.0
        %2298 = vmatprep.subr.mxu0 0.0
        %2299 = vmatpush1.msra.mxu0 0.0
        %2300 = vmatprep.subr.mxu0 0.0
        %2301 = vmatpush1.msra.mxu0 0.0
        %2302 = vmatprep.subr.mxu0 0.0
        %2303 = vmatpush1.msra.mxu0 %v2003
        %2304 = vmatprep.subr.mxu0 0.0
        %2305 = vmatpush1.msra.mxu0 %v2002
        %2306 = vmatprep.subr.mxu0 0.0
        %2307 = vmatpush1.msra.mxu0 %v2001
        %2308 = vmatprep.subr.mxu0 0.0
        %2309 = vmatpush1.msra.mxu0 %v2000
        %2310 = vmatprep.subr.mxu0 0.0
        %2311 = vmatpush2.msra.mxu0 0.0
        %2312 = vmatprep.subr.mxu0 0.0
        %2313 = vmatpush2.msra.mxu0 0.0
        %2314 = vmatprep.subr.mxu0 0.0
        %2315 = vmatpush2.msra.mxu0 0.0
        %2316 = vmatprep.subr.mxu0 0.0
        %2317 = vmatpush2.msra.mxu0 0.0
        %2318 = vmatprep.subr.mxu0 0.0
        %2319 = vmatpush2.msra.mxu0 0.0
        %2320 = vmatprep.subr.mxu0 0.0
        %2321 = vmatpush2.msra.mxu0 0.0
        %2322 = vmatprep.subr.mxu0 0.0
        %2323 = vmatpush2.msra.mxu0 0.0
        %2324 = vmatprep.subr.mxu0 0.0
        %2325 = vmatpush2.msra.mxu0 0.0
        %2326 = vmatprep.subr.mxu0 0.0
        %2327 = vmatpush2.msra.mxu0 0.0
        %2328 = vmatprep.subr.mxu0 0.0
        %2329 = vmatpush2.msra.mxu0 0.0
        %2330 = vmatprep.subr.mxu0 0.0
        %2331 = vmatpush2.msra.mxu0 0.0
        %2332 = vmatprep.subr.mxu0 0.0
        %2333 = vmatpush2.msra.mxu0 0.0
        %2334 = vmatprep.subr.mxu0 0.0
        %2335 = vmatpush2.msra.mxu0 0.0
        %2336 = vmatprep.subr.mxu0 0.0
        %2337 = vmatpush2.msra.mxu0 0.0
        %2338 = vmatprep.subr.mxu0 0.0
        %2339 = vmatpush2.msra.mxu0 0.0
        %2340 = vmatprep.subr.mxu0 0.0
        %2341 = vmatpush2.msra.mxu0 0.0
        %2342 = vmatprep.mubr.f32.mxu0 0.0
        %2343 = vmatmul.mubr.f32.gmra.mxu0 %v2276
        %v2344 = vpop.f32.mrf.mxu0
        %v2345 = vadd.f32 0.0, %v2344
        %v2346 = vpop.f32.mrf.mxu0
        %2347 = vdwg.mxu0
        %v2349 = vrot.slane %v2345, 6
        %v2350 = vrot.slane %v2345, 7
        %v2353 = vadd.f32 %v1992, %v2349
        %v2354 = vadd.f32 %v1997, %v2350
        %v2355 = vxor.u32 %v2353, 2147483648
        %v2356 = vxor.u32 %v2354, 2147483648
        %v2357 = vmul.f32 %v2355, 1.442695
        %v2358 = vpow.pop %v2357
        %v2359 = vmul.f32 %v2356, 1.442695
        %v2360 = vpow.pop %v2359
        %v2361 = vadd.f32 %v2358, 1.0
        %v2362 = vadd.f32 %v2360, 1.0
        %v2363 = vrcp.pop %v2361
        %v2364 = vmul.f32 1.0, %v2363
        %v2365 = vrcp.pop %v2362
        %v2366 = vmul.f32 1.0, %v2365
        %v2367 = vtanh.pop %v2353
        %v2368 = vtanh.pop %v2354
        %v2371 = vrot.slane %v2256, 7
        %v2372 = vrot.slane %v2257, 7
        %v2375 = vmul.f32 %v2364, %v2371
        %v2376 = vmul.f32 %v2366, %v2372
        %2379 = vrot.lane.b32.xlu0 %v2367, 64
        %v2380 = vpop.permute.xlu0 %2379
        %2381 = vrot.lane.b32.xlu0 %v2368, 64
        %v2382 = vpop.permute.xlu0 %2381
        %v2385 = vmul.f32 %v2364, %v2380
        %v2386 = vmul.f32 %v2366, %v2382
        %2389 = vrot.lane.b32.xlu0 %v2385, 32
        %v2390 = vpop.permute.xlu0 %2389
        %2391 = vrot.lane.b32.xlu0 %v2386, 32
        %v2392 = vpop.permute.xlu0 %2391
        %v2395 = vadd.f32 %v2375, %v2390
        %v2396 = vadd.f32 %v2376, %v2392
        %v2397 = vtanh.pop %v2395
        %v2398 = vtanh.pop %v2396
        %2401 = vrot.lane.b32.xlu0 %v2397, 64
        %v2402 = vpop.permute.xlu0 %2401
        %2403 = vrot.lane.b32.xlu0 %v2398, 64
        %v2404 = vpop.permute.xlu0 %2403
        %v2407 = vmul.f32 %v2364, %v2402
        %v2408 = vmul.f32 %v2366, %v2404
        %v2411 = vrot.slane %v2407, 2
        %v2412 = vrot.slane %v2408, 1
        %v2413 = vsel %vm2134, %v2412, %v2411
        %2414 = vrot.lane.b32.xlu0 %v2413, 32
        %v2415 = vpop.permute.xlu0 %2414
        %v2416 = vsel %vm828, %v2415, 0
        %2418 = vmatprep.subr.mxu0 0.0
        %2419 = vmatpush1.msra.mxu0 0.0
        %2420 = vmatprep.subr.mxu0 0.0
        %2421 = vmatpush1.msra.mxu0 0.0
        %2422 = vmatprep.subr.mxu0 0.0
        %2423 = vmatpush1.msra.mxu0 0.0
        %2424 = vmatprep.subr.mxu0 0.0
        %2425 = vmatpush1.msra.mxu0 0.0
        %2426 = vmatprep.subr.mxu0 0.0
        %2427 = vmatpush1.msra.mxu0 0.0
        %2428 = vmatprep.subr.mxu0 0.0
        %2429 = vmatpush1.msra.mxu0 0.0
        %2430 = vmatprep.subr.mxu0 0.0
        %2431 = vmatpush1.msra.mxu0 0.0
        %2432 = vmatprep.subr.mxu0 0.0
        %2433 = vmatpush1.msra.mxu0 0.0
        %2434 = vmatprep.subr.mxu0 0.0
        %2435 = vmatpush1.msra.mxu0 0.0
        %2436 = vmatprep.subr.mxu0 0.0
        %2437 = vmatpush1.msra.mxu0 0.0
        %2438 = vmatprep.subr.mxu0 0.0
        %2439 = vmatpush1.msra.mxu0 0.0
        %2440 = vmatprep.subr.mxu0 0.0
        %2441 = vmatpush1.msra.mxu0 0.0
        %2442 = vmatprep.subr.mxu0 0.0
        %2443 = vmatpush1.msra.mxu0 %v2003
        %2444 = vmatprep.subr.mxu0 0.0
        %2445 = vmatpush1.msra.mxu0 %v2002
        %2446 = vmatprep.subr.mxu0 0.0
        %2447 = vmatpush1.msra.mxu0 %v2001
        %2448 = vmatprep.subr.mxu0 0.0
        %2449 = vmatpush1.msra.mxu0 %v2000
        %2450 = vmatprep.subr.mxu0 0.0
        %2451 = vmatpush2.msra.mxu0 0.0
        %2452 = vmatprep.subr.mxu0 0.0
        %2453 = vmatpush2.msra.mxu0 0.0
        %2454 = vmatprep.subr.mxu0 0.0
        %2455 = vmatpush2.msra.mxu0 0.0
        %2456 = vmatprep.subr.mxu0 0.0
        %2457 = vmatpush2.msra.mxu0 0.0
        %2458 = vmatprep.subr.mxu0 0.0
        %2459 = vmatpush2.msra.mxu0 0.0
        %2460 = vmatprep.subr.mxu0 0.0
        %2461 = vmatpush2.msra.mxu0 0.0
        %2462 = vmatprep.subr.mxu0 0.0
        %2463 = vmatpush2.msra.mxu0 0.0
        %2464 = vmatprep.subr.mxu0 0.0
        %2465 = vmatpush2.msra.mxu0 0.0
        %2466 = vmatprep.subr.mxu0 0.0
        %2467 = vmatpush2.msra.mxu0 0.0
        %2468 = vmatprep.subr.mxu0 0.0
        %2469 = vmatpush2.msra.mxu0 0.0
        %2470 = vmatprep.subr.mxu0 0.0
        %2471 = vmatpush2.msra.mxu0 0.0
        %2472 = vmatprep.subr.mxu0 0.0
        %2473 = vmatpush2.msra.mxu0 0.0
        %2474 = vmatprep.subr.mxu0 0.0
        %2475 = vmatpush2.msra.mxu0 0.0
        %2476 = vmatprep.subr.mxu0 0.0
        %2477 = vmatpush2.msra.mxu0 0.0
        %2478 = vmatprep.subr.mxu0 0.0
        %2479 = vmatpush2.msra.mxu0 0.0
        %2480 = vmatprep.subr.mxu0 0.0
        %2481 = vmatpush2.msra.mxu0 0.0
        %2482 = vmatprep.mubr.f32.mxu0 0.0
        %2483 = vmatmul.mubr.f32.gmra.mxu0 %v2416
        %v2484 = vpop.f32.mrf.mxu0
        %v2485 = vadd.f32 0.0, %v2484
        %v2486 = vpop.f32.mrf.mxu0
        %2487 = vdwg.mxu0
        %v2489 = vrot.slane %v2485, 5
        %v2490 = vrot.slane %v2485, 6
        %v2493 = vadd.f32 %v1992, %v2489
        %v2494 = vadd.f32 %v1997, %v2490
        %v2495 = vxor.u32 %v2493, 2147483648
        %v2496 = vxor.u32 %v2494, 2147483648
        %v2497 = vmul.f32 %v2495, 1.442695
        %v2498 = vpow.pop %v2497
        %v2499 = vmul.f32 %v2496, 1.442695
        %v2500 = vpow.pop %v2499
        %v2501 = vadd.f32 %v2498, 1.0
        %v2502 = vadd.f32 %v2500, 1.0
        %v2503 = vrcp.pop %v2501
        %v2504 = vmul.f32 1.0, %v2503
        %v2505 = vrcp.pop %v2502
        %v2506 = vmul.f32 1.0, %v2505
        %v2507 = vtanh.pop %v2493
        %v2508 = vtanh.pop %v2494
        %v2511 = vrot.slane %v2395, 7
        %v2512 = vrot.slane %v2396, 7
        %v2515 = vmul.f32 %v2504, %v2511
        %v2516 = vmul.f32 %v2506, %v2512
        %2519 = vrot.lane.b32.xlu0 %v2507, 64
        %v2520 = vpop.permute.xlu0 %2519
        %2521 = vrot.lane.b32.xlu0 %v2508, 64
        %v2522 = vpop.permute.xlu0 %2521
        %v2525 = vmul.f32 %v2504, %v2520
        %v2526 = vmul.f32 %v2506, %v2522
        %2529 = vrot.lane.b32.xlu0 %v2525, 32
        %v2530 = vpop.permute.xlu0 %2529
        %2531 = vrot.lane.b32.xlu0 %v2526, 32
        %v2532 = vpop.permute.xlu0 %2531
        %v2535 = vadd.f32 %v2515, %v2530
        %v2536 = vadd.f32 %v2516, %v2532
        %v2537 = vtanh.pop %v2535
        %v2538 = vtanh.pop %v2536
        %2541 = vrot.lane.b32.xlu0 %v2537, 64
        %v2542 = vpop.permute.xlu0 %2541
        %2543 = vrot.lane.b32.xlu0 %v2538, 64
        %v2544 = vpop.permute.xlu0 %2543
        %v2547 = vmul.f32 %v2504, %v2542
        %v2548 = vmul.f32 %v2506, %v2544
        %v2551 = vrot.slane %v2547, 3
        %v2552 = vrot.slane %v2548, 2
        %v2553 = vsel %vm2134, %v2552, %v2551
        %2554 = vrot.lane.b32.xlu0 %v2553, 32
        %v2555 = vpop.permute.xlu0 %2554
        %v2556 = vsel %vm828, %v2555, 0
        %2558 = vmatprep.subr.mxu0 0.0
        %2559 = vmatpush1.msra.mxu0 0.0
        %2560 = vmatprep.subr.mxu0 0.0
        %2561 = vmatpush1.msra.mxu0 0.0
        %2562 = vmatprep.subr.mxu0 0.0
        %2563 = vmatpush1.msra.mxu0 0.0
        %2564 = vmatprep.subr.mxu0 0.0
        %2565 = vmatpush1.msra.mxu0 0.0
        %2566 = vmatprep.subr.mxu0 0.0
        %2567 = vmatpush1.msra.mxu0 0.0
        %2568 = vmatprep.subr.mxu0 0.0
        %2569 = vmatpush1.msra.mxu0 0.0
        %2570 = vmatprep.subr.mxu0 0.0
        %2571 = vmatpush1.msra.mxu0 0.0
        %2572 = vmatprep.subr.mxu0 0.0
        %2573 = vmatpush1.msra.mxu0 0.0
        %2574 = vmatprep.subr.mxu0 0.0
        %2575 = vmatpush1.msra.mxu0 0.0
        %2576 = vmatprep.subr.mxu0 0.0
        %2577 = vmatpush1.msra.mxu0 0.0
        %2578 = vmatprep.subr.mxu0 0.0
        %2579 = vmatpush1.msra.mxu0 0.0
        %2580 = vmatprep.subr.mxu0 0.0
        %2581 = vmatpush1.msra.mxu0 0.0
        %2582 = vmatprep.subr.mxu0 0.0
        %2583 = vmatpush1.msra.mxu0 %v2003
        %2584 = vmatprep.subr.mxu0 0.0
        %2585 = vmatpush1.msra.mxu0 %v2002
        %2586 = vmatprep.subr.mxu0 0.0
        %2587 = vmatpush1.msra.mxu0 %v2001
        %2588 = vmatprep.subr.mxu0 0.0
        %2589 = vmatpush1.msra.mxu0 %v2000
        %2590 = vmatprep.subr.mxu0 0.0
        %2591 = vmatpush2.msra.mxu0 0.0
        %2592 = vmatprep.subr.mxu0 0.0
        %2593 = vmatpush2.msra.mxu0 0.0
        %2594 = vmatprep.subr.mxu0 0.0
        %2595 = vmatpush2.msra.mxu0 0.0
        %2596 = vmatprep.subr.mxu0 0.0
        %2597 = vmatpush2.msra.mxu0 0.0
        %2598 = vmatprep.subr.mxu0 0.0
        %2599 = vmatpush2.msra.mxu0 0.0
        %2600 = vmatprep.subr.mxu0 0.0
        %2601 = vmatpush2.msra.mxu0 0.0
        %2602 = vmatprep.subr.mxu0 0.0
        %2603 = vmatpush2.msra.mxu0 0.0
        %2604 = vmatprep.subr.mxu0 0.0
        %2605 = vmatpush2.msra.mxu0 0.0
        %2606 = vmatprep.subr.mxu0 0.0
        %2607 = vmatpush2.msra.mxu0 0.0
        %2608 = vmatprep.subr.mxu0 0.0
        %2609 = vmatpush2.msra.mxu0 0.0
        %2610 = vmatprep.subr.mxu0 0.0
        %2611 = vmatpush2.msra.mxu0 0.0
        %2612 = vmatprep.subr.mxu0 0.0
        %2613 = vmatpush2.msra.mxu0 0.0
        %2614 = vmatprep.subr.mxu0 0.0
        %2615 = vmatpush2.msra.mxu0 0.0
        %2616 = vmatprep.subr.mxu0 0.0
        %2617 = vmatpush2.msra.mxu0 0.0
        %2618 = vmatprep.subr.mxu0 0.0
        %2619 = vmatpush2.msra.mxu0 0.0
        %2620 = vmatprep.subr.mxu0 0.0
        %2621 = vmatpush2.msra.mxu0 0.0
        %2622 = vmatprep.mubr.f32.mxu0 0.0
        %2623 = vmatmul.mubr.f32.gmra.mxu0 %v2556
        %v2624 = vpop.f32.mrf.mxu0
        %v2625 = vadd.f32 0.0, %v2624
        %v2626 = vpop.f32.mrf.mxu0
        %2627 = vdwg.mxu0
        %v2629 = vrot.slane %v2625, 4
        %v2630 = vrot.slane %v2625, 5
        %v2633 = vadd.f32 %v1992, %v2629
        %v2634 = vadd.f32 %v1997, %v2630
        %v2635 = vxor.u32 %v2633, 2147483648
        %v2636 = vxor.u32 %v2634, 2147483648
        %v2637 = vmul.f32 %v2635, 1.442695
        %v2638 = vpow.pop %v2637
        %v2639 = vmul.f32 %v2636, 1.442695
        %v2640 = vpow.pop %v2639
        %v2641 = vadd.f32 %v2638, 1.0
        %v2642 = vadd.f32 %v2640, 1.0
        %v2643 = vrcp.pop %v2641
        %v2644 = vmul.f32 1.0, %v2643
        %v2645 = vrcp.pop %v2642
        %v2646 = vmul.f32 1.0, %v2645
        %v2647 = vtanh.pop %v2633
        %v2648 = vtanh.pop %v2634
        %v2651 = vrot.slane %v2535, 7
        %v2652 = vrot.slane %v2536, 7
        %v2655 = vmul.f32 %v2644, %v2651
        %v2656 = vmul.f32 %v2646, %v2652
        %2659 = vrot.lane.b32.xlu0 %v2647, 64
        %v2660 = vpop.permute.xlu0 %2659
        %2661 = vrot.lane.b32.xlu0 %v2648, 64
        %v2662 = vpop.permute.xlu0 %2661
        %v2665 = vmul.f32 %v2644, %v2660
        %v2666 = vmul.f32 %v2646, %v2662
        %2669 = vrot.lane.b32.xlu0 %v2665, 32
        %v2670 = vpop.permute.xlu0 %2669
        %2671 = vrot.lane.b32.xlu0 %v2666, 32
        %v2672 = vpop.permute.xlu0 %2671
        %v2675 = vadd.f32 %v2655, %v2670
        %v2676 = vadd.f32 %v2656, %v2672
        %v2677 = vtanh.pop %v2675
        %v2678 = vtanh.pop %v2676
        %2681 = vrot.lane.b32.xlu0 %v2677, 64
        %v2682 = vpop.permute.xlu0 %2681
        %2683 = vrot.lane.b32.xlu0 %v2678, 64
        %v2684 = vpop.permute.xlu0 %2683
        %v2687 = vmul.f32 %v2644, %v2682
        %v2688 = vmul.f32 %v2646, %v2684
        %v2691 = vrot.slane %v2687, 4
        %v2692 = vrot.slane %v2688, 3
        %v2693 = vsel %vm2134, %v2692, %v2691
        %2694 = vrot.lane.b32.xlu0 %v2693, 32
        %v2695 = vpop.permute.xlu0 %2694
        %v2696 = vsel %vm828, %v2695, 0
        %2698 = vmatprep.subr.mxu0 0.0
        %2699 = vmatpush1.msra.mxu0 0.0
        %2700 = vmatprep.subr.mxu0 0.0
        %2701 = vmatpush1.msra.mxu0 0.0
        %2702 = vmatprep.subr.mxu0 0.0
        %2703 = vmatpush1.msra.mxu0 0.0
        %2704 = vmatprep.subr.mxu0 0.0
        %2705 = vmatpush1.msra.mxu0 0.0
        %2706 = vmatprep.subr.mxu0 0.0
        %2707 = vmatpush1.msra.mxu0 0.0
        %2708 = vmatprep.subr.mxu0 0.0
        %2709 = vmatpush1.msra.mxu0 0.0
        %2710 = vmatprep.subr.mxu0 0.0
        %2711 = vmatpush1.msra.mxu0 0.0
        %2712 = vmatprep.subr.mxu0 0.0
        %2713 = vmatpush1.msra.mxu0 0.0
        %2714 = vmatprep.subr.mxu0 0.0
        %2715 = vmatpush1.msra.mxu0 0.0
        %2716 = vmatprep.subr.mxu0 0.0
        %2717 = vmatpush1.msra.mxu0 0.0
        %2718 = vmatprep.subr.mxu0 0.0
        %2719 = vmatpush1.msra.mxu0 0.0
        %2720 = vmatprep.subr.mxu0 0.0
        %2721 = vmatpush1.msra.mxu0 0.0
        %2722 = vmatprep.subr.mxu0 0.0
        %2723 = vmatpush1.msra.mxu0 %v2003
        %2724 = vmatprep.subr.mxu0 0.0
        %2725 = vmatpush1.msra.mxu0 %v2002
        %2726 = vmatprep.subr.mxu0 0.0
        %2727 = vmatpush1.msra.mxu0 %v2001
        %2728 = vmatprep.subr.mxu0 0.0
        %2729 = vmatpush1.msra.mxu0 %v2000
        %2730 = vmatprep.subr.mxu0 0.0
        %2731 = vmatpush2.msra.mxu0 0.0
        %2732 = vmatprep.subr.mxu0 0.0
        %2733 = vmatpush2.msra.mxu0 0.0
        %2734 = vmatprep.subr.mxu0 0.0
        %2735 = vmatpush2.msra.mxu0 0.0
        %2736 = vmatprep.subr.mxu0 0.0
        %2737 = vmatpush2.msra.mxu0 0.0
        %2738 = vmatprep.subr.mxu0 0.0
        %2739 = vmatpush2.msra.mxu0 0.0
        %2740 = vmatprep.subr.mxu0 0.0
        %2741 = vmatpush2.msra.mxu0 0.0
        %2742 = vmatprep.subr.mxu0 0.0
        %2743 = vmatpush2.msra.mxu0 0.0
        %2744 = vmatprep.subr.mxu0 0.0
        %2745 = vmatpush2.msra.mxu0 0.0
        %2746 = vmatprep.subr.mxu0 0.0
        %2747 = vmatpush2.msra.mxu0 0.0
        %2748 = vmatprep.subr.mxu0 0.0
        %2749 = vmatpush2.msra.mxu0 0.0
        %2750 = vmatprep.subr.mxu0 0.0
        %2751 = vmatpush2.msra.mxu0 0.0
        %2752 = vmatprep.subr.mxu0 0.0
        %2753 = vmatpush2.msra.mxu0 0.0
        %2754 = vmatprep.subr.mxu0 0.0
        %2755 = vmatpush2.msra.mxu0 0.0
        %2756 = vmatprep.subr.mxu0 0.0
        %2757 = vmatpush2.msra.mxu0 0.0
        %2758 = vmatprep.subr.mxu0 0.0
        %2759 = vmatpush2.msra.mxu0 0.0
        %2760 = vmatprep.subr.mxu0 0.0
        %2761 = vmatpush2.msra.mxu0 0.0
        %2762 = vmatprep.mubr.f32.mxu0 0.0
        %2763 = vmatmul.mubr.f32.gmra.mxu0 %v2696
        %v2764 = vpop.f32.mrf.mxu0
        %v2765 = vadd.f32 0.0, %v2764
        %v2766 = vpop.f32.mrf.mxu0
        %2767 = vdwg.mxu0
        %v2769 = vrot.slane %v2765, 3
        %v2770 = vrot.slane %v2765, 4
        %v2773 = vadd.f32 %v1992, %v2769
        %v2774 = vadd.f32 %v1997, %v2770
        %v2775 = vxor.u32 %v2773, 2147483648
        %v2776 = vxor.u32 %v2774, 2147483648
        %v2777 = vmul.f32 %v2775, 1.442695
        %v2778 = vpow.pop %v2777
        %v2779 = vmul.f32 %v2776, 1.442695
        %v2780 = vpow.pop %v2779
        %v2781 = vadd.f32 %v2778, 1.0
        %v2782 = vadd.f32 %v2780, 1.0
        %v2783 = vrcp.pop %v2781
        %v2784 = vmul.f32 1.0, %v2783
        %v2785 = vrcp.pop %v2782
        %v2786 = vmul.f32 1.0, %v2785
        %v2787 = vtanh.pop %v2773
        %v2788 = vtanh.pop %v2774
        %v2791 = vrot.slane %v2675, 7
        %v2792 = vrot.slane %v2676, 7
        %v2795 = vmul.f32 %v2784, %v2791
        %v2796 = vmul.f32 %v2786, %v2792
        %2799 = vrot.lane.b32.xlu0 %v2787, 64
        %v2800 = vpop.permute.xlu0 %2799
        %2801 = vrot.lane.b32.xlu0 %v2788, 64
        %v2802 = vpop.permute.xlu0 %2801
        %v2805 = vmul.f32 %v2784, %v2800
        %v2806 = vmul.f32 %v2786, %v2802
        %2809 = vrot.lane.b32.xlu0 %v2805, 32
        %v2810 = vpop.permute.xlu0 %2809
        %2811 = vrot.lane.b32.xlu0 %v2806, 32
        %v2812 = vpop.permute.xlu0 %2811
        %v2815 = vadd.f32 %v2795, %v2810
        %v2816 = vadd.f32 %v2796, %v2812
        %v2817 = vtanh.pop %v2815
        %v2818 = vtanh.pop %v2816
        %2821 = vrot.lane.b32.xlu0 %v2817, 64
        %v2822 = vpop.permute.xlu0 %2821
        %2823 = vrot.lane.b32.xlu0 %v2818, 64
        %v2824 = vpop.permute.xlu0 %2823
        %v2827 = vmul.f32 %v2784, %v2822
        %v2828 = vmul.f32 %v2786, %v2824
        %v2831 = vrot.slane %v2827, 5
        %v2832 = vrot.slane %v2828, 4
        %v2833 = vsel %vm2134, %v2832, %v2831
        %2834 = vrot.lane.b32.xlu0 %v2833, 32
        %v2835 = vpop.permute.xlu0 %2834
        %v2836 = vsel %vm828, %v2835, 0
        %2838 = vmatprep.subr.mxu0 0.0
        %2839 = vmatpush1.msra.mxu0 0.0
        %2840 = vmatprep.subr.mxu0 0.0
        %2841 = vmatpush1.msra.mxu0 0.0
        %2842 = vmatprep.subr.mxu0 0.0
        %2843 = vmatpush1.msra.mxu0 0.0
        %2844 = vmatprep.subr.mxu0 0.0
        %2845 = vmatpush1.msra.mxu0 0.0
        %2846 = vmatprep.subr.mxu0 0.0
        %2847 = vmatpush1.msra.mxu0 0.0
        %2848 = vmatprep.subr.mxu0 0.0
        %2849 = vmatpush1.msra.mxu0 0.0
        %2850 = vmatprep.subr.mxu0 0.0
        %2851 = vmatpush1.msra.mxu0 0.0
        %2852 = vmatprep.subr.mxu0 0.0
        %2853 = vmatpush1.msra.mxu0 0.0
        %2854 = vmatprep.subr.mxu0 0.0
        %2855 = vmatpush1.msra.mxu0 0.0
        %2856 = vmatprep.subr.mxu0 0.0
        %2857 = vmatpush1.msra.mxu0 0.0
        %2858 = vmatprep.subr.mxu0 0.0
        %2859 = vmatpush1.msra.mxu0 0.0
        %2860 = vmatprep.subr.mxu0 0.0
        %2861 = vmatpush1.msra.mxu0 0.0
        %2862 = vmatprep.subr.mxu0 0.0
        %2863 = vmatpush1.msra.mxu0 %v2003
        %2864 = vmatprep.subr.mxu0 0.0
        %2865 = vmatpush1.msra.mxu0 %v2002
        %2866 = vmatprep.subr.mxu0 0.0
        %2867 = vmatpush1.msra.mxu0 %v2001
        %2868 = vmatprep.subr.mxu0 0.0
        %2869 = vmatpush1.msra.mxu0 %v2000
        %2870 = vmatprep.subr.mxu0 0.0
        %2871 = vmatpush2.msra.mxu0 0.0
        %2872 = vmatprep.subr.mxu0 0.0
        %2873 = vmatpush2.msra.mxu0 0.0
        %2874 = vmatprep.subr.mxu0 0.0
        %2875 = vmatpush2.msra.mxu0 0.0
        %2876 = vmatprep.subr.mxu0 0.0
        %2877 = vmatpush2.msra.mxu0 0.0
        %2878 = vmatprep.subr.mxu0 0.0
        %2879 = vmatpush2.msra.mxu0 0.0
        %2880 = vmatprep.subr.mxu0 0.0
        %2881 = vmatpush2.msra.mxu0 0.0
        %2882 = vmatprep.subr.mxu0 0.0
        %2883 = vmatpush2.msra.mxu0 0.0
        %2884 = vmatprep.subr.mxu0 0.0
        %2885 = vmatpush2.msra.mxu0 0.0
        %2886 = vmatprep.subr.mxu0 0.0
        %2887 = vmatpush2.msra.mxu0 0.0
        %2888 = vmatprep.subr.mxu0 0.0
        %2889 = vmatpush2.msra.mxu0 0.0
        %2890 = vmatprep.subr.mxu0 0.0
        %2891 = vmatpush2.msra.mxu0 0.0
        %2892 = vmatprep.subr.mxu0 0.0
        %2893 = vmatpush2.msra.mxu0 0.0
        %2894 = vmatprep.subr.mxu0 0.0
        %2895 = vmatpush2.msra.mxu0 0.0
        %2896 = vmatprep.subr.mxu0 0.0
        %2897 = vmatpush2.msra.mxu0 0.0
        %2898 = vmatprep.subr.mxu0 0.0
        %2899 = vmatpush2.msra.mxu0 0.0
        %2900 = vmatprep.subr.mxu0 0.0
        %2901 = vmatpush2.msra.mxu0 0.0
        %2902 = vmatprep.mubr.f32.mxu0 0.0
        %2903 = vmatmul.mubr.f32.gmra.mxu0 %v2836
        %v2904 = vpop.f32.mrf.mxu0
        %v2905 = vadd.f32 0.0, %v2904
        %v2906 = vpop.f32.mrf.mxu0
        %2907 = vdwg.mxu0
        %v2909 = vrot.slane %v2905, 2
        %v2910 = vrot.slane %v2905, 3
        %v2913 = vadd.f32 %v1992, %v2909
        %v2914 = vadd.f32 %v1997, %v2910
        %v2915 = vxor.u32 %v2913, 2147483648
        %v2916 = vxor.u32 %v2914, 2147483648
        %v2917 = vmul.f32 %v2915, 1.442695
        %v2918 = vpow.pop %v2917
        %v2919 = vmul.f32 %v2916, 1.442695
        %v2920 = vpow.pop %v2919
        %v2921 = vadd.f32 %v2918, 1.0
        %v2922 = vadd.f32 %v2920, 1.0
        %v2923 = vrcp.pop %v2921
        %v2924 = vmul.f32 1.0, %v2923
        %v2925 = vrcp.pop %v2922
        %v2926 = vmul.f32 1.0, %v2925
        %v2927 = vtanh.pop %v2913
        %v2928 = vtanh.pop %v2914
        %v2931 = vrot.slane %v2815, 7
        %v2932 = vrot.slane %v2816, 7
        %v2935 = vmul.f32 %v2924, %v2931
        %v2936 = vmul.f32 %v2926, %v2932
        %2939 = vrot.lane.b32.xlu0 %v2927, 64
        %v2940 = vpop.permute.xlu0 %2939
        %2941 = vrot.lane.b32.xlu0 %v2928, 64
        %v2942 = vpop.permute.xlu0 %2941
        %v2945 = vmul.f32 %v2924, %v2940
        %v2946 = vmul.f32 %v2926, %v2942
        %2949 = vrot.lane.b32.xlu0 %v2945, 32
        %v2950 = vpop.permute.xlu0 %2949
        %2951 = vrot.lane.b32.xlu0 %v2946, 32
        %v2952 = vpop.permute.xlu0 %2951
        %v2955 = vadd.f32 %v2935, %v2950
        %v2956 = vadd.f32 %v2936, %v2952
        %v2957 = vtanh.pop %v2955
        %v2958 = vtanh.pop %v2956
        %2961 = vrot.lane.b32.xlu0 %v2957, 64
        %v2962 = vpop.permute.xlu0 %2961
        %2963 = vrot.lane.b32.xlu0 %v2958, 64
        %v2964 = vpop.permute.xlu0 %2963
        %v2967 = vmul.f32 %v2924, %v2962
        %v2968 = vmul.f32 %v2926, %v2964
        %v2971 = vrot.slane %v2967, 6
        %v2972 = vrot.slane %v2968, 5
        %v2973 = vsel %vm2134, %v2972, %v2971
        %2974 = vrot.lane.b32.xlu0 %v2973, 32
        %v2975 = vpop.permute.xlu0 %2974
        %v2976 = vsel %vm828, %v2975, 0
        %2978 = vmatprep.subr.mxu0 0.0
        %2979 = vmatpush1.msra.mxu0 0.0
        %2980 = vmatprep.subr.mxu0 0.0
        %2981 = vmatpush1.msra.mxu0 0.0
        %2982 = vmatprep.subr.mxu0 0.0
        %2983 = vmatpush1.msra.mxu0 0.0
        %2984 = vmatprep.subr.mxu0 0.0
        %2985 = vmatpush1.msra.mxu0 0.0
        %2986 = vmatprep.subr.mxu0 0.0
        %2987 = vmatpush1.msra.mxu0 0.0
        %2988 = vmatprep.subr.mxu0 0.0
        %2989 = vmatpush1.msra.mxu0 0.0
        %2990 = vmatprep.subr.mxu0 0.0
        %2991 = vmatpush1.msra.mxu0 0.0
        %2992 = vmatprep.subr.mxu0 0.0
        %2993 = vmatpush1.msra.mxu0 0.0
        %2994 = vmatprep.subr.mxu0 0.0
        %2995 = vmatpush1.msra.mxu0 0.0
        %2996 = vmatprep.subr.mxu0 0.0
        %2997 = vmatpush1.msra.mxu0 0.0
        %2998 = vmatprep.subr.mxu0 0.0
        %2999 = vmatpush1.msra.mxu0 0.0
        %3000 = vmatprep.subr.mxu0 0.0
        %3001 = vmatpush1.msra.mxu0 0.0
        %3002 = vmatprep.subr.mxu0 0.0
        %3003 = vmatpush1.msra.mxu0 %v2003
        %3004 = vmatprep.subr.mxu0 0.0
        %3005 = vmatpush1.msra.mxu0 %v2002
        %3006 = vmatprep.subr.mxu0 0.0
        %3007 = vmatpush1.msra.mxu0 %v2001
        %3008 = vmatprep.subr.mxu0 0.0
        %3009 = vmatpush1.msra.mxu0 %v2000
        %3010 = vmatprep.subr.mxu0 0.0
        %3011 = vmatpush2.msra.mxu0 0.0
        %3012 = vmatprep.subr.mxu0 0.0
        %3013 = vmatpush2.msra.mxu0 0.0
        %3014 = vmatprep.subr.mxu0 0.0
        %3015 = vmatpush2.msra.mxu0 0.0
        %3016 = vmatprep.subr.mxu0 0.0
        %3017 = vmatpush2.msra.mxu0 0.0
        %3018 = vmatprep.subr.mxu0 0.0
        %3019 = vmatpush2.msra.mxu0 0.0
        %3020 = vmatprep.subr.mxu0 0.0
        %3021 = vmatpush2.msra.mxu0 0.0
        %3022 = vmatprep.subr.mxu0 0.0
        %3023 = vmatpush2.msra.mxu0 0.0
        %3024 = vmatprep.subr.mxu0 0.0
        %3025 = vmatpush2.msra.mxu0 0.0
        %3026 = vmatprep.subr.mxu0 0.0
        %3027 = vmatpush2.msra.mxu0 0.0
        %3028 = vmatprep.subr.mxu0 0.0
        %3029 = vmatpush2.msra.mxu0 0.0
        %3030 = vmatprep.subr.mxu0 0.0
        %3031 = vmatpush2.msra.mxu0 0.0
        %3032 = vmatprep.subr.mxu0 0.0
        %3033 = vmatpush2.msra.mxu0 0.0
        %3034 = vmatprep.subr.mxu0 0.0
        %3035 = vmatpush2.msra.mxu0 0.0
        %3036 = vmatprep.subr.mxu0 0.0
        %3037 = vmatpush2.msra.mxu0 0.0
        %3038 = vmatprep.subr.mxu0 0.0
        %3039 = vmatpush2.msra.mxu0 0.0
        %3040 = vmatprep.subr.mxu0 0.0
        %3041 = vmatpush2.msra.mxu0 0.0
        %3042 = vmatprep.mubr.f32.mxu0 0.0
        %3043 = vmatmul.mubr.f32.gmra.mxu0 %v2976
        %v3044 = vpop.f32.mrf.mxu0
        %v3045 = vadd.f32 0.0, %v3044
        %v3046 = vpop.f32.mrf.mxu0
        %3047 = vdwg.mxu0
        %v3049 = vrot.slane %v3045, 1
        %v3050 = vrot.slane %v3045, 2
        %v3053 = vadd.f32 %v1992, %v3049
        %v3054 = vadd.f32 %v1997, %v3050
        %v3055 = vxor.u32 %v3053, 2147483648
        %v3056 = vxor.u32 %v3054, 2147483648
        %v3057 = vmul.f32 %v3055, 1.442695
        %v3058 = vpow.pop %v3057
        %v3059 = vmul.f32 %v3056, 1.442695
        %v3060 = vpow.pop %v3059
        %v3061 = vadd.f32 %v3058, 1.0
        %v3062 = vadd.f32 %v3060, 1.0
        %v3063 = vrcp.pop %v3061
        %v3064 = vmul.f32 1.0, %v3063
        %v3065 = vrcp.pop %v3062
        %v3066 = vmul.f32 1.0, %v3065
        %v3067 = vtanh.pop %v3053
        %v3068 = vtanh.pop %v3054
        %v3071 = vrot.slane %v2955, 7
        %v3072 = vrot.slane %v2956, 7
        %v3075 = vmul.f32 %v3064, %v3071
        %v3076 = vmul.f32 %v3066, %v3072
        %3079 = vrot.lane.b32.xlu0 %v3067, 64
        %v3080 = vpop.permute.xlu0 %3079
        %3081 = vrot.lane.b32.xlu0 %v3068, 64
        %v3082 = vpop.permute.xlu0 %3081
        %v3085 = vmul.f32 %v3064, %v3080
        %v3086 = vmul.f32 %v3066, %v3082
        %3089 = vrot.lane.b32.xlu0 %v3085, 32
        %v3090 = vpop.permute.xlu0 %3089
        %3091 = vrot.lane.b32.xlu0 %v3086, 32
        %v3092 = vpop.permute.xlu0 %3091
        %v3095 = vadd.f32 %v3075, %v3090
        %v3096 = vadd.f32 %v3076, %v3092
        %v3097 = vtanh.pop %v3095
        %v3098 = vtanh.pop %v3096
        %3101 = vrot.lane.b32.xlu0 %v3097, 64
        %v3102 = vpop.permute.xlu0 %3101
        %3103 = vrot.lane.b32.xlu0 %v3098, 64
        %v3104 = vpop.permute.xlu0 %3103
        %v3107 = vmul.f32 %v3064, %v3102
        %v3108 = vmul.f32 %v3066, %v3104
        %v3109 = vld [vmem:[%s17] sm:$0xff]
        %v3110 = vld [vmem:[%s17 + $0x8] sm:$0xff]
        %v3111 = vld [vmem:[%s17 + $0x10] sm:$0xff]
        %v3112 = vld [vmem:[%s17 + $0x18] sm:$0xff]
        %v3113 = vld [vmem:[%s18] sm:$0x1]
        %v3115 = vlaneseq
        %v3116 = vshrl.u32 %v3115, 7
        %v3117 = vsub.s32 0, %v3116
        %v3118 = vrot.slane %v3113, %v3117
        %v3122 = vrot.slane %v3107, 7
        %v3123 = vrot.slane %v3108, 6
        %v3124 = vsel %vm2134, %v3123, %v3122
        %3125 = vrot.lane.b32.xlu0 %v3124, 32
        %v3126 = vpop.permute.xlu0 %3125
        %v3127 = vsel %vm828, %v3126, 0
        %3129 = vmatprep.subr.mxu0 0.0
        %3130 = vmatpush1.msra.mxu0 0.0
        %3131 = vmatprep.subr.mxu0 0.0
        %3132 = vmatpush1.msra.mxu0 0.0
        %3133 = vmatprep.subr.mxu0 0.0
        %3134 = vmatpush1.msra.mxu0 0.0
        %3135 = vmatprep.subr.mxu0 0.0
        %3136 = vmatpush1.msra.mxu0 0.0
        %3137 = vmatprep.subr.mxu0 0.0
        %3138 = vmatpush1.msra.mxu0 0.0
        %3139 = vmatprep.subr.mxu0 0.0
        %3140 = vmatpush1.msra.mxu0 0.0
        %3141 = vmatprep.subr.mxu0 0.0
        %3142 = vmatpush1.msra.mxu0 0.0
        %3143 = vmatprep.subr.mxu0 0.0
        %3144 = vmatpush1.msra.mxu0 0.0
        %3145 = vmatprep.subr.mxu0 0.0
        %3146 = vmatpush1.msra.mxu0 0.0
        %3147 = vmatprep.subr.mxu0 0.0
        %3148 = vmatpush1.msra.mxu0 0.0
        %3149 = vmatprep.subr.mxu0 0.0
        %3150 = vmatpush1.msra.mxu0 0.0
        %3151 = vmatprep.subr.mxu0 0.0
        %3152 = vmatpush1.msra.mxu0 0.0
        %3153 = vmatprep.subr.mxu0 0.0
        %3154 = vmatpush1.msra.mxu0 %v3112
        %3155 = vmatprep.subr.mxu0 0.0
        %3156 = vmatpush1.msra.mxu0 %v3111
        %3157 = vmatprep.subr.mxu0 0.0
        %3158 = vmatpush1.msra.mxu0 %v3110
        %3159 = vmatprep.subr.mxu0 0.0
        %3160 = vmatpush1.msra.mxu0 %v3109
        %3161 = vmatprep.subr.mxu0 0.0
        %3162 = vmatpush2.msra.mxu0 0.0
        %3163 = vmatprep.subr.mxu0 0.0
        %3164 = vmatpush2.msra.mxu0 0.0
        %3165 = vmatprep.subr.mxu0 0.0
        %3166 = vmatpush2.msra.mxu0 0.0
        %3167 = vmatprep.subr.mxu0 0.0
        %3168 = vmatpush2.msra.mxu0 0.0
        %3169 = vmatprep.subr.mxu0 0.0
        %3170 = vmatpush2.msra.mxu0 0.0
        %3171 = vmatprep.subr.mxu0 0.0
        %3172 = vmatpush2.msra.mxu0 0.0
        %3173 = vmatprep.subr.mxu0 0.0
        %3174 = vmatpush2.msra.mxu0 0.0
        %3175 = vmatprep.subr.mxu0 0.0
        %3176 = vmatpush2.msra.mxu0 0.0
        %3177 = vmatprep.subr.mxu0 0.0
        %3178 = vmatpush2.msra.mxu0 0.0
        %3179 = vmatprep.subr.mxu0 0.0
        %3180 = vmatpush2.msra.mxu0 0.0
        %3181 = vmatprep.subr.mxu0 0.0
        %3182 = vmatpush2.msra.mxu0 0.0
        %3183 = vmatprep.subr.mxu0 0.0
        %3184 = vmatpush2.msra.mxu0 0.0
        %3185 = vmatprep.subr.mxu0 0.0
        %3186 = vmatpush2.msra.mxu0 0.0
        %3187 = vmatprep.subr.mxu0 0.0
        %3188 = vmatpush2.msra.mxu0 0.0
        %3189 = vmatprep.subr.mxu0 0.0
        %3190 = vmatpush2.msra.mxu0 0.0
        %3191 = vmatprep.subr.mxu0 0.0
        %3192 = vmatpush2.msra.mxu0 0.0
        %3193 = vmatprep.mubr.f32.mxu0 0.0
        %3194 = vmatmul.mubr.f32.gmra.mxu0 %v3127
        %v3195 = vpop.f32.mrf.mxu0
        %v3196 = vadd.f32 %v3118, %v3195
        %v3197 = vpop.f32.mrf.mxu0
        %3198 = vdwg.mxu0
        %3199 = vst [vmem:[%s802] sm:$0x3] %v3196
        %s3200 = sand.u32 %s459, 1
        %s3201 = scalar_lea.sflag [#allocation5], %s3200
        %s3202 = sand.u32 %s459, 1
        %s3203 = smul.addr %s3202, 2
        %s3204 = scalar_lea.vmem [#allocation24], %s3203
        // Predicated region
        $region149: #{tpu_custom_call.1} parent=95 // pred_check
          %p3205 = pneg %p469
        $region150: #{tpu_custom_call.1} parent=95 // pred_check_branch
          %3207 = sbr.rel (%p3205) target = $region152
        $region151: #{tpu_custom_call.1} parent=95 // pred_region
          %s3209 = ssub.s32 32, 32
          %3210 = vsyncadd %s3201, %s3209
          %s3211 = smul.addr %s42, 32
          %s3212 = scalar_lea.hbm %s19, %s3211
          %s3214 = sshll.u32 %s3204, 4
          %s3215 = int_to_ptr.vmem [resolvable:$true] %s3214
          %3217 = dma.vmem_to_hbm [thread:$0]  %s3215, 32, %s3212, %s3201
        $region152: #{tpu_custom_call.1} parent=95 // pred_fallthru
          _
      $region96: #{tpu_custom_call.1} parent=5 // pred_fallthru
        _
      %p3218 = scmp.le.s32.totalorder 2, %s37
      // Predicated region
      $region153: #{tpu_custom_call.1} parent=5 // pred_check
        %p3219 = pneg %p3218
      $region154: #{tpu_custom_call.1} parent=5 // pred_check_branch
        %3221 = sbr.rel (%p3219) target = $region156
      $region155: #{tpu_custom_call.1} parent=5 // pred_region
        %s3222 = ssub.s32 %s37, 2
        // Predicated region
        $region157: #{tpu_custom_call.1} parent=155 // pred_check
          %p3223 = pneg %p475
        $region158: #{tpu_custom_call.1} parent=155 // pred_check_branch
          %3225 = sbr.rel (%p3223) target = $region160
        $region159: #{tpu_custom_call.1} parent=155 // pred_region
          %s3226 = sand.u32 %s460, 1
          %s3227 = scalar_lea.sflag [#allocation5], %s3226
          %s3228 = sand.u32 %s460, 1
          %s3229 = smul.addr %s3228, 2
          %s3230 = scalar_lea.vmem [#allocation24], %s3229
          %3231 = dma.done %s3227, 32
        $region160: #{tpu_custom_call.1} parent=155 // pred_fallthru
          _
      $region156: #{tpu_custom_call.1} parent=5 // pred_fallthru
        _
    $region6: #{tpu_custom_call.1} parent=1 // loop_footer
      %s41 = sadd.s32 1, %s37
    $region7: #{tpu_custom_call.1} parent=1 // loop_footer_branch
      %36 = sbr.rel target = $region3
    $region8: #{tpu_custom_call.1} parent=1 // loop_exit
      _
    %3232 = vsyncpa [#allocation4], 1
    %s3233 = scalar_lea.sflag [#allocation4], 1
    %3234 = vsyncpa %s3233, 1
    %3235 = vsyncpa [#allocation7], 1
    %3236 = vsyncpa [#allocation10], 1
    %3237 = vsyncpa [#allocation13], 1
    %3238 = vsyncpa [#allocation16], 1
    %3239 = vsyncpa [#allocation19], 1
    %3240 = vsyncpa [#allocation22], 1
    %3241 = vsyncpa [#allocation5], 1
    %s3242 = scalar_lea.sflag [#allocation5], 1
    %3243 = vsyncpa %s3242, 1

</llo_original>
